<compile_context>
chip_gen: v7x
topology: tpu7x:2x2x1
jax: 0.10.0
libtpu: 0.0.40
codegen_flags: <defaults>
</compile_context>

<pallas_src>
import jax
import jax.numpy as jnp
from jax.experimental import pallas as pl
from jax.experimental.pallas import tpu as pltpu

EPS = 1e-5


def conv1x1_bn_kernel(w_ref, x_ref, gamma_ref, beta_ref, o_ref):
    # w_ref:     (TM, Cin)  f32   tile of the 1x1 conv weight (Cout rows)
    # x_ref:     (Cin, M)   f32   full flattened input, resident across tiles
    # gamma_ref: (TM, 1)    f32   BN scale for this Cout tile
    # beta_ref:  (TM, 1)    f32   BN shift for this Cout tile
    # o_ref:     (TM, M)    f32
    #
    # Cast to bf16 in-kernel (free on the VPU; avoids wrapper-side HBM round
    # trips) and accumulate in f32 on the MXU.
    w = w_ref[...].astype(jnp.bfloat16)
    x = x_ref[...].astype(jnp.bfloat16)
    y = jnp.dot(w, x, preferred_element_type=jnp.float32)        # (TM, M) f32

    # M here is the true, unpadded N*H*W (no column padding is used).
    inv_m = 1.0 / float(y.shape[-1])

    # One-pass per-channel (per-row) batch statistics, all in f32.
    s = jnp.sum(y, axis=-1, keepdims=True)                        # (TM, 1)
    sq = jnp.sum(y * y, axis=-1, keepdims=True)                   # (TM, 1)
    mean = s * inv_m
    var = sq * inv_m - mean * mean                                # biased variance
    inv_std = jax.lax.rsqrt(var + EPS)                            # EUP, f32

    # Fused affine epilogue: o = y*scale + shift.
    scale = inv_std * gamma_ref[...]                              # (TM, 1)
    shift = beta_ref[...] - mean * scale                          # (TM, 1)
    o_ref[...] = y * scale + shift


def _default_tile_cout(cout):
    """Full Cout (grid=(1,)) everywhere; even 2-way split on v7x megacore."""
    try:
        kind = jax.devices()[0].device_kind.lower()
        if "v7" in kind and cout % 2 == 0 and (cout // 2) % 8 == 0:
            return cout // 2
    except Exception:
        pass
    return cout


def conv1x1_batchnorm(x_nchw, weight_oi11, gamma, beta, *, tile_cout=None):
    """x_nchw: (N, C_in, H, W); weight_oi11: (C_out, C_in, 1, 1)."""
    N, Cin, H, W = x_nchw.shape
    Cout = weight_oi11.shape[0]
    M = N * H * W

    # NCHW -> (Cin, M).  For N == 1 this is a free reshape (no transpose op).
    if N == 1:
        x_cm = x_nchw.reshape(Cin, M)
    else:
        x_cm = jnp.moveaxis(x_nchw, 1, 0).reshape(Cin, M)

    x_cm = x_cm.astype(jnp.float32)                     # native dtype, no bf16 copy
    w_oc = weight_oi11.reshape(Cout, Cin).astype(jnp.float32)   # no transpose
    gamma2d = gamma.reshape(Cout, 1).astype(jnp.float32)
    beta2d = beta.reshape(Cout, 1).astype(jnp.float32)

    TM = tile_cout if tile_cout is not None else _default_tile_cout(Cout)
    assert Cout % TM == 0 and TM % 8 == 0, "Cout tile must divide Cout, mult of 8"
    n_tiles = Cout // TM

    cost = pl.CostEstimate(
        flops=2 * M * Cin * Cout,
        transcendentals=Cout,                           # per-channel rsqrt
        bytes_accessed=(x_cm.size * 4 + w_oc.size * 4
                        + Cout * M * 4 + Cout * 2 * 4),
    )

    out_cm = pl.pallas_call(
        conv1x1_bn_kernel,
        out_shape=jax.ShapeDtypeStruct((Cout, M), jnp.float32),
        grid=(n_tiles,),
        in_specs=[
            pl.BlockSpec((TM, Cin), lambda i: (i, 0)),   # weight tile
            pl.BlockSpec((Cin, M), lambda i: (0, 0)),    # x, same block each step
            pl.BlockSpec((TM, 1), lambda i: (i, 0)),     # gamma tile
            pl.BlockSpec((TM, 1), lambda i: (i, 0)),     # beta tile
        ],
        out_specs=pl.BlockSpec((TM, M), lambda i: (i, 0)),
        compiler_params=pltpu.CompilerParams(
            dimension_semantics=("parallel",),           # v7x: shard tiles across TCs
        ),
        cost_estimate=cost,
    )(w_oc, x_cm, gamma2d, beta2d)

    # (Cout, M) -> NCHW.  Free reshape for N == 1.
    if N == 1:
        return out_cm.reshape(1, Cout, H, W)
    return jnp.moveaxis(out_cm.reshape(Cout, N, H, W), 0, 1)


def _reference(x_nchw, weight_oi11, gamma, beta):
    """Pure-JAX f32 reference (training-mode BN forward)."""
    N, Cin, H, W = x_nchw.shape
    Cout = weight_oi11.shape[0]
    x_flat = jnp.transpose(x_nchw, (0, 2, 3, 1)).reshape(-1, Cin)
    y = x_flat @ weight_oi11.reshape(Cout, Cin).T
    mean = jnp.mean(y, axis=0, keepdims=True)
    var = jnp.mean((y - mean) ** 2, axis=0, keepdims=True)
    y = (y - mean) / jnp.sqrt(var + EPS) * gamma.reshape(1, -1) + beta.reshape(1, -1)
    return jnp.transpose(y.reshape(N, H, W, Cout), (0, 3, 1, 2))


if __name__ == "__main__":
    # Module-implied shapes: x179 = randn(1, 720, 14, 14)
    N, C, H, W = 1, 720, 14, 14

    key = jax.random.PRNGKey(0)
    kx, kw = jax.random.split(key)

    x = jax.random.normal(kx, (N, C, H, W), dtype=jnp.float32)
    # Conv2d(720, 720, 1, bias=False) weight: (Cout, Cin, 1, 1).
    conv_w = jax.random.normal(kw, (C, C, 1, 1), dtype=jnp.float32) * 0.05
    # BatchNorm2d affine params (PyTorch default init: gamma=1, beta=0).
    gamma = jnp.ones((C,), dtype=jnp.float32)
    beta = jnp.zeros((C,), dtype=jnp.float32)

    out = jax.block_until_ready(conv1x1_batchnorm(x, conv_w, gamma, beta))
    ref = _reference(x, conv_w, gamma, beta)

    assert out.shape == (N, C, H, W)
    # bf16 matmul inputs (f32 accumulation) => slightly loosened tolerance.
    assert jnp.allclose(out, ref, atol=5e-2, rtol=5e-2), float(
        jnp.max(jnp.abs(out - ref))
    )

    print("KERNEL_OK")
</pallas_src>

<mosaic_0001>
module attributes {stable_mosaic.version = 11 : i64} {
  func.func @conv1x1_bn_kernel(%arg0: i32, %arg1: memref<720x720xf32, #tpu.memory_space<vmem>>, %arg2: memref<720x196xf32, #tpu.memory_space<vmem>>, %arg3: memref<720x1xf32, #tpu.memory_space<vmem>>, %arg4: memref<720x1xf32, #tpu.memory_space<vmem>>, %arg5: memref<720x196xf32, #tpu.memory_space<vmem>>) attributes {dimension_semantics = [#tpu.dimension_semantics<parallel>], iteration_bounds = array<i64: 1>, scalar_prefetch = 0 : i64, scratch_operands = 0 : i64, tpu.core_type = #tpu.core_type<tc>, window_params = [{transform_indices = @transform_0, window_bounds = array<i64: 720, 720>}, {pipeline_mode = #tpu.pipeline_mode<synchronous>, transform_indices = @transform_1, window_bounds = array<i64: 720, 196>}, {transform_indices = @transform_2, window_bounds = array<i64: 720, 1>}, {transform_indices = @transform_3, window_bounds = array<i64: 720, 1>}, {transform_indices = @transform_4, window_bounds = array<i64: 720, 196>}]} {
    %c0 = arith.constant 0 : index
    %c0_0 = arith.constant 0 : index
    %0 = vector.load %arg1[%c0, %c0_0] : memref<720x720xf32, #tpu.memory_space<vmem>>, vector<720x720xf32>
    %1 = arith.truncf %0 : vector<720x720xf32> to vector<720x720xbf16>
    %c0_1 = arith.constant 0 : index
    %c0_2 = arith.constant 0 : index
    %2 = vector.load %arg2[%c0_1, %c0_2] : memref<720x196xf32, #tpu.memory_space<vmem>>, vector<720x196xf32>
    %3 = arith.truncf %2 : vector<720x196xf32> to vector<720x196xbf16>
    %cst = arith.constant dense<0.000000e+00> : vector<720x196xf32>
    %4 = tpu.matmul %1, %3, %cst {dimension_numbers = #tpu.dot_dimension_numbers<[1], [0], [0], [1], [0, 0, 1, 1], [], []>} : vector<720x720xbf16>, vector<720x196xbf16>, vector<720x196xf32> -> vector<720x196xf32>
    %cst_3 = arith.constant dense<0.000000e+00> : vector<720xf32>
    %5 = vector.multi_reduction <add>, %4, %cst_3 [1] : vector<720x196xf32> to vector<720xf32>
    %6 = vector.shape_cast %5 : vector<720xf32> to vector<720x1xf32>
    %7 = arith.mulf %4, %4 : vector<720x196xf32>
    %cst_4 = arith.constant dense<0.000000e+00> : vector<720xf32>
    %8 = vector.multi_reduction <add>, %7, %cst_4 [1] : vector<720x196xf32> to vector<720xf32>
    %9 = vector.shape_cast %8 : vector<720xf32> to vector<720x1xf32>
    %cst_5 = arith.constant 0.00510204071 : f32
    %10 = vector.broadcast %cst_5 : f32 to vector<720x1xf32>
    %11 = arith.mulf %6, %10 : vector<720x1xf32>
    %cst_6 = arith.constant 0.00510204071 : f32
    %12 = vector.broadcast %cst_6 : f32 to vector<720x1xf32>
    %13 = arith.mulf %9, %12 : vector<720x1xf32>
    %14 = arith.mulf %11, %11 : vector<720x1xf32>
    %15 = arith.subf %13, %14 : vector<720x1xf32>
    %cst_7 = arith.constant 9.99999974E-6 : f32
    %16 = vector.broadcast %cst_7 : f32 to vector<720x1xf32>
    %17 = arith.addf %15, %16 : vector<720x1xf32>
    %18 = math.rsqrt %17 : vector<720x1xf32>
    %c0_8 = arith.constant 0 : index
    %c0_9 = arith.constant 0 : index
    %19 = vector.load %arg3[%c0_8, %c0_9] : memref<720x1xf32, #tpu.memory_space<vmem>>, vector<720x1xf32>
    %20 = arith.mulf %18, %19 : vector<720x1xf32>
    %c0_10 = arith.constant 0 : index
    %c0_11 = arith.constant 0 : index
    %21 = vector.load %arg4[%c0_10, %c0_11] : memref<720x1xf32, #tpu.memory_space<vmem>>, vector<720x1xf32>
    %22 = arith.mulf %11, %20 : vector<720x1xf32>
    %23 = arith.subf %21, %22 : vector<720x1xf32>
    %24 = vector.broadcast %20 : vector<720x1xf32> to vector<720x196xf32>
    %25 = arith.mulf %4, %24 : vector<720x196xf32>
    %26 = vector.broadcast %23 : vector<720x1xf32> to vector<720x196xf32>
    %27 = arith.addf %25, %26 : vector<720x196xf32>
    %c0_12 = arith.constant 0 : index
    %c0_13 = arith.constant 0 : index
    %28 = vector.load %arg5[%c0_12, %c0_13] : memref<720x196xf32, #tpu.memory_space<vmem>>, vector<720x196xf32>
    tpu.vector_store %arg5[%c0_12, %c0_13], %27 {strides = array<i32>} : memref<720x196xf32, #tpu.memory_space<vmem>>, vector<720x196xf32>,
    return
  }
  func.func @transform_0(%arg0: i32) -> (i32, i32) {
    %c0_i32 = arith.constant 0 : i32
    %c0_i32_0 = arith.constant 0 : i32
    return %arg0, %c0_i32 : i32, i32
  }
  func.func @transform_1(%arg0: i32) -> (i32, i32) {
    %c0_i32 = arith.constant 0 : i32
    %c0_i32_0 = arith.constant 0 : i32
    %c0_i32_1 = arith.constant 0 : i32
    return %c0_i32, %c0_i32_0 : i32, i32
  }
  func.func @transform_2(%arg0: i32) -> (i32, i32) {
    %c0_i32 = arith.constant 0 : i32
    %c0_i32_0 = arith.constant 0 : i32
    return %arg0, %c0_i32 : i32, i32
  }
  func.func @transform_3(%arg0: i32) -> (i32, i32) {
    %c0_i32 = arith.constant 0 : i32
    %c0_i32_0 = arith.constant 0 : i32
    return %arg0, %c0_i32 : i32, i32
  }
  func.func @transform_4(%arg0: i32) -> (i32, i32) {
    %c0_i32 = arith.constant 0 : i32
    %c0_i32_0 = arith.constant 0 : i32
    return %arg0, %c0_i32 : i32, i32
  }
}

</mosaic_0001>

<llo_original>
// kernel: tpu_custom_call.1
$region0: #{tpu_custom_call.1}
  #allocation0 [shape = 'u32[]', space=smem, size = 0x4, offset = 0x4, fixed_abs, tag = 'smem constant byte address 0x4 - core index']
  #allocation1 [shape = 'u32[144,128]{1,0:T(1,128)}', space=vmem, size = 0x12000, scoped, tag = 'internal scratch']
  %s0 = inlined_call_operand.hbm [shape: f32[720,720], index: 0, kind: input, shape index: {}]
  %s1 = inlined_call_operand.vmem [shape: f32[720,196], index: 1, kind: input, shape index: {}]
  %s2 = inlined_call_operand.vmem [shape: f32[720,1], index: 2, kind: input, shape index: {}]
  %s3 = inlined_call_operand.vmem [shape: f32[720,1], index: 3, kind: input, shape index: {}]
  %s4 = inlined_call_operand.vmem [shape: f32[720,196], index: 4, kind: output, shape index: {}]
  %s5 = sld [smem:[#allocation0]]
  $region30: #{tpu_custom_call.1} parent=0
    _
  %s7 = ssub.s32 1, %s5
  %s8 = scalar_select 0, %s7, %s5
  $region1: #{tpu_custom_call.1} parent=0
    #allocation2 [shape = 'u8[2211840]{0}', space=vmem, size = 0x21c000, scoped, tag = 'input window, operand 0, single buffered']
    #allocation3 [shape = 's32[1]{0}', space=sflag, size = 0x4, scoped, tag = 'scoped memory for tpu_custom_call.1']
    %9 = vsyncpa [#allocation3], 0
    // Predicated region
    $region2: #{tpu_custom_call.1} parent=1 // pred_check
      _
    $region3: #{tpu_custom_call.1} parent=1 // pred_check_branch
      %11 = sbr.rel (0) target = $region5
    $region4: #{tpu_custom_call.1} parent=1 // pred_region
      %s13 = ssub.s32 69120, 69120
      %14 = vsyncadd [#allocation3], %s13
      %s15 = sshll.u32 [#allocation2], 4
      %s16 = int_to_ptr.vmem [resolvable:$true] %s15
      %21 = dma.hbm_to_vmem [thread:$0]  %s0, 69120, %s16, [#allocation3], 768, 768, 48
    $region5: #{tpu_custom_call.1} parent=1 // pred_fallthru
      _
    // Predicated region
    $region6: #{tpu_custom_call.1} parent=1 // pred_check
      _
    $region7: #{tpu_custom_call.1} parent=1 // pred_check_branch
      %23 = sbr.rel (0) target = $region9
    $region8: #{tpu_custom_call.1} parent=1 // pred_region
      _
    $region9: #{tpu_custom_call.1} parent=1 // pred_fallthru
      _
    // Predicated region
    $region10: #{tpu_custom_call.1} parent=1 // pred_check
      _
    $region11: #{tpu_custom_call.1} parent=1 // pred_check_branch
      %25 = sbr.rel (0) target = $region13
    $region12: #{tpu_custom_call.1} parent=1 // pred_region
      _
    $region13: #{tpu_custom_call.1} parent=1 // pred_fallthru
      _
    // Predicated region
    $region14: #{tpu_custom_call.1} parent=1 // pred_check
      _
    $region15: #{tpu_custom_call.1} parent=1 // pred_check_branch
      %27 = sbr.rel (0) target = $region17
    $region16: #{tpu_custom_call.1} parent=1 // pred_region
      _
    $region17: #{tpu_custom_call.1} parent=1 // pred_fallthru
      _
    // Predicated region
    $region18: #{tpu_custom_call.1} parent=1 // pred_check
      _
    $region19: #{tpu_custom_call.1} parent=1 // pred_check_branch
      %29 = sbr.rel (0) target = $region21
    $region20: #{tpu_custom_call.1} parent=1 // pred_region
      %30 = dma.done [#allocation3], 69120
    $region21: #{tpu_custom_call.1} parent=1 // pred_fallthru
      _
    %v32 = vld [vmem:[#allocation2] sm:$0xff]
    %v33 = vld [vmem:[#allocation2 + $0x8] sm:$0xff]
    %v34 = vld [vmem:[#allocation2 + $0x10] sm:$0xff]
    %v35 = vld [vmem:[#allocation2 + $0x18] sm:$0xff]
    %v36 = vld [vmem:[#allocation2 + $0x20] sm:$0xff]
    %v37 = vld [vmem:[#allocation2 + $0x28] sm:$0xff]
    %v38 = vld [vmem:[#allocation2 + $0x30] sm:$0xff]
    %v39 = vld [vmem:[#allocation2 + $0x38] sm:$0xff]
    %v40 = vld [vmem:[#allocation2 + $0x40] sm:$0xff]
    %v41 = vld [vmem:[#allocation2 + $0x48] sm:$0xff]
    %v42 = vld [vmem:[#allocation2 + $0x50] sm:$0xff]
    %v43 = vld [vmem:[#allocation2 + $0x58] sm:$0xff]
    %v44 = vld [vmem:[#allocation2 + $0x60] sm:$0xff]
    %v45 = vld [vmem:[#allocation2 + $0x68] sm:$0xff]
    %v46 = vld [vmem:[#allocation2 + $0x70] sm:$0xff]
    %v47 = vld [vmem:[#allocation2 + $0x78] sm:$0xff]
    %v48 = vld [vmem:[#allocation2 + $0x80] sm:$0xff]
    %v49 = vld [vmem:[#allocation2 + $0x88] sm:$0xff]
    %v50 = vld [vmem:[#allocation2 + $0x90] sm:$0xff]
    %v51 = vld [vmem:[#allocation2 + $0x98] sm:$0xff]
    %v52 = vld [vmem:[#allocation2 + $0xa0] sm:$0xff]
    %v53 = vld [vmem:[#allocation2 + $0xa8] sm:$0xff]
    %v54 = vld [vmem:[#allocation2 + $0xb0] sm:$0xff]
    %v55 = vld [vmem:[#allocation2 + $0xb8] sm:$0xff]
    %v56 = vld [vmem:[#allocation2 + $0xc0] sm:$0xff]
    %v57 = vld [vmem:[#allocation2 + $0xc8] sm:$0xff]
    %v58 = vld [vmem:[#allocation2 + $0xd0] sm:$0xff]
    %v59 = vld [vmem:[#allocation2 + $0xd8] sm:$0xff]
    %v60 = vld [vmem:[#allocation2 + $0xe0] sm:$0xff]
    %v61 = vld [vmem:[#allocation2 + $0xe8] sm:$0xff]
    %v62 = vld [vmem:[#allocation2 + $0xf0] sm:$0xff]
    %v63 = vld [vmem:[#allocation2 + $0xf8] sm:$0xff]
    %v64 = vld [vmem:[#allocation2 + $0x100] sm:$0xff]
    %v65 = vld [vmem:[#allocation2 + $0x108] sm:$0xff]
    %v66 = vld [vmem:[#allocation2 + $0x110] sm:$0xff]
    %v67 = vld [vmem:[#allocation2 + $0x118] sm:$0xff]
    %v68 = vld [vmem:[#allocation2 + $0x120] sm:$0xff]
    %v69 = vld [vmem:[#allocation2 + $0x128] sm:$0xff]
    %v70 = vld [vmem:[#allocation2 + $0x130] sm:$0xff]
    %v71 = vld [vmem:[#allocation2 + $0x138] sm:$0xff]
    %v72 = vld [vmem:[#allocation2 + $0x140] sm:$0xff]
    %v73 = vld [vmem:[#allocation2 + $0x148] sm:$0xff]
    %v74 = vld [vmem:[#allocation2 + $0x150] sm:$0xff]
    %v75 = vld [vmem:[#allocation2 + $0x158] sm:$0xff]
    %v76 = vld [vmem:[#allocation2 + $0x160] sm:$0xff]
    %v77 = vld [vmem:[#allocation2 + $0x168] sm:$0xff]
    %v78 = vld [vmem:[#allocation2 + $0x170] sm:$0xff]
    %v79 = vld [vmem:[#allocation2 + $0x178] sm:$0xff]
    %v80 = vld [vmem:[#allocation2 + $0x180] sm:$0xff]
    %v81 = vld [vmem:[#allocation2 + $0x188] sm:$0xff]
    %v82 = vld [vmem:[#allocation2 + $0x190] sm:$0xff]
    %v83 = vld [vmem:[#allocation2 + $0x198] sm:$0xff]
    %v84 = vld [vmem:[#allocation2 + $0x1a0] sm:$0xff]
    %v85 = vld [vmem:[#allocation2 + $0x1a8] sm:$0xff]
    %v86 = vld [vmem:[#allocation2 + $0x1b0] sm:$0xff]
    %v87 = vld [vmem:[#allocation2 + $0x1b8] sm:$0xff]
    %v88 = vld [vmem:[#allocation2 + $0x1c0] sm:$0xff]
    %v89 = vld [vmem:[#allocation2 + $0x1c8] sm:$0xff]
    %v90 = vld [vmem:[#allocation2 + $0x1d0] sm:$0xff]
    %v91 = vld [vmem:[#allocation2 + $0x1d8] sm:$0xff]
    %v92 = vld [vmem:[#allocation2 + $0x1e0] sm:$0xff]
    %v93 = vld [vmem:[#allocation2 + $0x1e8] sm:$0xff]
    %v94 = vld [vmem:[#allocation2 + $0x1f0] sm:$0xff]
    %v95 = vld [vmem:[#allocation2 + $0x1f8] sm:$0xff]
    %v96 = vld [vmem:[#allocation2 + $0x200] sm:$0xff]
    %v97 = vld [vmem:[#allocation2 + $0x208] sm:$0xff]
    %v98 = vld [vmem:[#allocation2 + $0x210] sm:$0xff]
    %v99 = vld [vmem:[#allocation2 + $0x218] sm:$0xff]
    %v100 = vld [vmem:[#allocation2 + $0x220] sm:$0xff]
    %v101 = vld [vmem:[#allocation2 + $0x228] sm:$0xff]
    %v102 = vld [vmem:[#allocation2 + $0x230] sm:$0xff]
    %v103 = vld [vmem:[#allocation2 + $0x238] sm:$0xff]
    %v104 = vld [vmem:[#allocation2 + $0x240] sm:$0xff]
    %v105 = vld [vmem:[#allocation2 + $0x248] sm:$0xff]
    %v106 = vld [vmem:[#allocation2 + $0x250] sm:$0xff]
    %v107 = vld [vmem:[#allocation2 + $0x258] sm:$0xff]
    %v108 = vld [vmem:[#allocation2 + $0x260] sm:$0xff]
    %v109 = vld [vmem:[#allocation2 + $0x268] sm:$0xff]
    %v110 = vld [vmem:[#allocation2 + $0x270] sm:$0xff]
    %v111 = vld [vmem:[#allocation2 + $0x278] sm:$0xff]
    %v112 = vld [vmem:[#allocation2 + $0x280] sm:$0xff]
    %v113 = vld [vmem:[#allocation2 + $0x288] sm:$0xff]
    %v114 = vld [vmem:[#allocation2 + $0x290] sm:$0xff]
    %v115 = vld [vmem:[#allocation2 + $0x298] sm:$0xff]
    %v116 = vld [vmem:[#allocation2 + $0x2a0] sm:$0xff]
    %v117 = vld [vmem:[#allocation2 + $0x2a8] sm:$0xff]
    %v118 = vld [vmem:[#allocation2 + $0x2b0] sm:$0xff]
    %v119 = vld [vmem:[#allocation2 + $0x2b8] sm:$0xff]
    %v120 = vld [vmem:[#allocation2 + $0x2c0] sm:$0xff]
    %v121 = vld [vmem:[#allocation2 + $0x2c8] sm:$0xff]
    %v122 = vld [vmem:[#allocation2 + $0x2d0] sm:$0xff]
    %v123 = vld [vmem:[#allocation2 + $0x2d8] sm:$0xff]
    %v124 = vld [vmem:[#allocation2 + $0x2e0] sm:$0xff]
    %v125 = vld [vmem:[#allocation2 + $0x2e8] sm:$0xff]
    %v126 = vld [vmem:[#allocation2 + $0x2f0] sm:$0xff]
    %v127 = vld [vmem:[#allocation2 + $0x2f8] sm:$0xff]
    %v128 = vld [vmem:[#allocation2 + $0x300] sm:$0xff]
    %v129 = vld [vmem:[#allocation2 + $0x308] sm:$0xff]
    %v130 = vld [vmem:[#allocation2 + $0x310] sm:$0xff]
    %v131 = vld [vmem:[#allocation2 + $0x318] sm:$0xff]
    %v132 = vld [vmem:[#allocation2 + $0x320] sm:$0xff]
    %v133 = vld [vmem:[#allocation2 + $0x328] sm:$0xff]
    %v134 = vld [vmem:[#allocation2 + $0x330] sm:$0xff]
    %v135 = vld [vmem:[#allocation2 + $0x338] sm:$0xff]
    %v136 = vld [vmem:[#allocation2 + $0x340] sm:$0xff]
    %v137 = vld [vmem:[#allocation2 + $0x348] sm:$0xff]
    %v138 = vld [vmem:[#allocation2 + $0x350] sm:$0xff]
    %v139 = vld [vmem:[#allocation2 + $0x358] sm:$0xff]
    %v140 = vld [vmem:[#allocation2 + $0x360] sm:$0xff]
    %v141 = vld [vmem:[#allocation2 + $0x368] sm:$0xff]
    %v142 = vld [vmem:[#allocation2 + $0x370] sm:$0xff]
    %v143 = vld [vmem:[#allocation2 + $0x378] sm:$0xff]
    %v144 = vld [vmem:[#allocation2 + $0x380] sm:$0xff]
    %v145 = vld [vmem:[#allocation2 + $0x388] sm:$0xff]
    %v146 = vld [vmem:[#allocation2 + $0x390] sm:$0xff]
    %v147 = vld [vmem:[#allocation2 + $0x398] sm:$0xff]
    %v148 = vld [vmem:[#allocation2 + $0x3a0] sm:$0xff]
    %v149 = vld [vmem:[#allocation2 + $0x3a8] sm:$0xff]
    %v150 = vld [vmem:[#allocation2 + $0x3b0] sm:$0xff]
    %v151 = vld [vmem:[#allocation2 + $0x3b8] sm:$0xff]
    %v152 = vld [vmem:[#allocation2 + $0x3c0] sm:$0xff]
    %v153 = vld [vmem:[#allocation2 + $0x3c8] sm:$0xff]
    %v154 = vld [vmem:[#allocation2 + $0x3d0] sm:$0xff]
    %v155 = vld [vmem:[#allocation2 + $0x3d8] sm:$0xff]
    %v156 = vld [vmem:[#allocation2 + $0x3e0] sm:$0xff]
    %v157 = vld [vmem:[#allocation2 + $0x3e8] sm:$0xff]
    %v158 = vld [vmem:[#allocation2 + $0x3f0] sm:$0xff]
    %v159 = vld [vmem:[#allocation2 + $0x3f8] sm:$0xff]
    %v160 = vld [vmem:[#allocation2 + $0x400] sm:$0xff]
    %v161 = vld [vmem:[#allocation2 + $0x408] sm:$0xff]
    %v162 = vld [vmem:[#allocation2 + $0x410] sm:$0xff]
    %v163 = vld [vmem:[#allocation2 + $0x418] sm:$0xff]
    %v164 = vld [vmem:[#allocation2 + $0x420] sm:$0xff]
    %v165 = vld [vmem:[#allocation2 + $0x428] sm:$0xff]
    %v166 = vld [vmem:[#allocation2 + $0x430] sm:$0xff]
    %v167 = vld [vmem:[#allocation2 + $0x438] sm:$0xff]
    %v168 = vld [vmem:[#allocation2 + $0x440] sm:$0xff]
    %v169 = vld [vmem:[#allocation2 + $0x448] sm:$0xff]
    %v170 = vld [vmem:[#allocation2 + $0x450] sm:$0xff]
    %v171 = vld [vmem:[#allocation2 + $0x458] sm:$0xff]
    %v172 = vld [vmem:[#allocation2 + $0x460] sm:$0xff]
    %v173 = vld [vmem:[#allocation2 + $0x468] sm:$0xff]
    %v174 = vld [vmem:[#allocation2 + $0x470] sm:$0xff]
    %v175 = vld [vmem:[#allocation2 + $0x478] sm:$0xff]
    %v176 = vld [vmem:[#allocation2 + $0x480] sm:$0xff]
    %v177 = vld [vmem:[#allocation2 + $0x488] sm:$0xff]
    %v178 = vld [vmem:[#allocation2 + $0x490] sm:$0xff]
    %v179 = vld [vmem:[#allocation2 + $0x498] sm:$0xff]
    %v180 = vld [vmem:[#allocation2 + $0x4a0] sm:$0xff]
    %v181 = vld [vmem:[#allocation2 + $0x4a8] sm:$0xff]
    %v182 = vld [vmem:[#allocation2 + $0x4b0] sm:$0xff]
    %v183 = vld [vmem:[#allocation2 + $0x4b8] sm:$0xff]
    %v184 = vld [vmem:[#allocation2 + $0x4c0] sm:$0xff]
    %v185 = vld [vmem:[#allocation2 + $0x4c8] sm:$0xff]
    %v186 = vld [vmem:[#allocation2 + $0x4d0] sm:$0xff]
    %v187 = vld [vmem:[#allocation2 + $0x4d8] sm:$0xff]
    %v188 = vld [vmem:[#allocation2 + $0x4e0] sm:$0xff]
    %v189 = vld [vmem:[#allocation2 + $0x4e8] sm:$0xff]
    %v190 = vld [vmem:[#allocation2 + $0x4f0] sm:$0xff]
    %v191 = vld [vmem:[#allocation2 + $0x4f8] sm:$0xff]
    %v192 = vld [vmem:[#allocation2 + $0x500] sm:$0xff]
    %v193 = vld [vmem:[#allocation2 + $0x508] sm:$0xff]
    %v194 = vld [vmem:[#allocation2 + $0x510] sm:$0xff]
    %v195 = vld [vmem:[#allocation2 + $0x518] sm:$0xff]
    %v196 = vld [vmem:[#allocation2 + $0x520] sm:$0xff]
    %v197 = vld [vmem:[#allocation2 + $0x528] sm:$0xff]
    %v198 = vld [vmem:[#allocation2 + $0x530] sm:$0xff]
    %v199 = vld [vmem:[#allocation2 + $0x538] sm:$0xff]
    %v200 = vld [vmem:[#allocation2 + $0x540] sm:$0xff]
    %v201 = vld [vmem:[#allocation2 + $0x548] sm:$0xff]
    %v202 = vld [vmem:[#allocation2 + $0x550] sm:$0xff]
    %v203 = vld [vmem:[#allocation2 + $0x558] sm:$0xff]
    %v204 = vld [vmem:[#allocation2 + $0x560] sm:$0xff]
    %v205 = vld [vmem:[#allocation2 + $0x568] sm:$0xff]
    %v206 = vld [vmem:[#allocation2 + $0x570] sm:$0xff]
    %v207 = vld [vmem:[#allocation2 + $0x578] sm:$0xff]
    %v208 = vld [vmem:[#allocation2 + $0x580] sm:$0xff]
    %v209 = vld [vmem:[#allocation2 + $0x588] sm:$0xff]
    %v210 = vld [vmem:[#allocation2 + $0x590] sm:$0xff]
    %v211 = vld [vmem:[#allocation2 + $0x598] sm:$0xff]
    %v212 = vld [vmem:[#allocation2 + $0x5a0] sm:$0xff]
    %v213 = vld [vmem:[#allocation2 + $0x5a8] sm:$0xff]
    %v214 = vld [vmem:[#allocation2 + $0x5b0] sm:$0xff]
    %v215 = vld [vmem:[#allocation2 + $0x5b8] sm:$0xff]
    %v216 = vld [vmem:[#allocation2 + $0x5c0] sm:$0xff]
    %v217 = vld [vmem:[#allocation2 + $0x5c8] sm:$0xff]
    %v218 = vld [vmem:[#allocation2 + $0x5d0] sm:$0xff]
    %v219 = vld [vmem:[#allocation2 + $0x5d8] sm:$0xff]
    %v220 = vld [vmem:[#allocation2 + $0x5e0] sm:$0xff]
    %v221 = vld [vmem:[#allocation2 + $0x5e8] sm:$0xff]
    %v222 = vld [vmem:[#allocation2 + $0x5f0] sm:$0xff]
    %v223 = vld [vmem:[#allocation2 + $0x5f8] sm:$0xff]
    %v224 = vld [vmem:[#allocation2 + $0x600] sm:$0xff]
    %v225 = vld [vmem:[#allocation2 + $0x608] sm:$0xff]
    %v226 = vld [vmem:[#allocation2 + $0x610] sm:$0xff]
    %v227 = vld [vmem:[#allocation2 + $0x618] sm:$0xff]
    %v228 = vld [vmem:[#allocation2 + $0x620] sm:$0xff]
    %v229 = vld [vmem:[#allocation2 + $0x628] sm:$0xff]
    %v230 = vld [vmem:[#allocation2 + $0x630] sm:$0xff]
    %v231 = vld [vmem:[#allocation2 + $0x638] sm:$0xff]
    %v232 = vld [vmem:[#allocation2 + $0x640] sm:$0xff]
    %v233 = vld [vmem:[#allocation2 + $0x648] sm:$0xff]
    %v234 = vld [vmem:[#allocation2 + $0x650] sm:$0xff]
    %v235 = vld [vmem:[#allocation2 + $0x658] sm:$0xff]
    %v236 = vld [vmem:[#allocation2 + $0x660] sm:$0xff]
    %v237 = vld [vmem:[#allocation2 + $0x668] sm:$0xff]
    %v238 = vld [vmem:[#allocation2 + $0x670] sm:$0xff]
    %v239 = vld [vmem:[#allocation2 + $0x678] sm:$0xff]
    %v240 = vld [vmem:[#allocation2 + $0x680] sm:$0xff]
    %v241 = vld [vmem:[#allocation2 + $0x688] sm:$0xff]
    %v242 = vld [vmem:[#allocation2 + $0x690] sm:$0xff]
    %v243 = vld [vmem:[#allocation2 + $0x698] sm:$0xff]
    %v244 = vld [vmem:[#allocation2 + $0x6a0] sm:$0xff]
    %v245 = vld [vmem:[#allocation2 + $0x6a8] sm:$0xff]
    %v246 = vld [vmem:[#allocation2 + $0x6b0] sm:$0xff]
    %v247 = vld [vmem:[#allocation2 + $0x6b8] sm:$0xff]
    %v248 = vld [vmem:[#allocation2 + $0x6c0] sm:$0xff]
    %v249 = vld [vmem:[#allocation2 + $0x6c8] sm:$0xff]
    %v250 = vld [vmem:[#allocation2 + $0x6d0] sm:$0xff]
    %v251 = vld [vmem:[#allocation2 + $0x6d8] sm:$0xff]
    %v252 = vld [vmem:[#allocation2 + $0x6e0] sm:$0xff]
    %v253 = vld [vmem:[#allocation2 + $0x6e8] sm:$0xff]
    %v254 = vld [vmem:[#allocation2 + $0x6f0] sm:$0xff]
    %v255 = vld [vmem:[#allocation2 + $0x6f8] sm:$0xff]
    %v256 = vld [vmem:[#allocation2 + $0x700] sm:$0xff]
    %v257 = vld [vmem:[#allocation2 + $0x708] sm:$0xff]
    %v258 = vld [vmem:[#allocation2 + $0x710] sm:$0xff]
    %v259 = vld [vmem:[#allocation2 + $0x718] sm:$0xff]
    %v260 = vld [vmem:[#allocation2 + $0x720] sm:$0xff]
    %v261 = vld [vmem:[#allocation2 + $0x728] sm:$0xff]
    %v262 = vld [vmem:[#allocation2 + $0x730] sm:$0xff]
    %v263 = vld [vmem:[#allocation2 + $0x738] sm:$0xff]
    %v264 = vld [vmem:[#allocation2 + $0x740] sm:$0xff]
    %v265 = vld [vmem:[#allocation2 + $0x748] sm:$0xff]
    %v266 = vld [vmem:[#allocation2 + $0x750] sm:$0xff]
    %v267 = vld [vmem:[#allocation2 + $0x758] sm:$0xff]
    %v268 = vld [vmem:[#allocation2 + $0x760] sm:$0xff]
    %v269 = vld [vmem:[#allocation2 + $0x768] sm:$0xff]
    %v270 = vld [vmem:[#allocation2 + $0x770] sm:$0xff]
    %v271 = vld [vmem:[#allocation2 + $0x778] sm:$0xff]
    %v272 = vld [vmem:[#allocation2 + $0x780] sm:$0xff]
    %v273 = vld [vmem:[#allocation2 + $0x788] sm:$0xff]
    %v274 = vld [vmem:[#allocation2 + $0x790] sm:$0xff]
    %v275 = vld [vmem:[#allocation2 + $0x798] sm:$0xff]
    %v276 = vld [vmem:[#allocation2 + $0x7a0] sm:$0xff]
    %v277 = vld [vmem:[#allocation2 + $0x7a8] sm:$0xff]
    %v278 = vld [vmem:[#allocation2 + $0x7b0] sm:$0xff]
    %v279 = vld [vmem:[#allocation2 + $0x7b8] sm:$0xff]
    %v280 = vld [vmem:[#allocation2 + $0x7c0] sm:$0xff]
    %v281 = vld [vmem:[#allocation2 + $0x7c8] sm:$0xff]
    %v282 = vld [vmem:[#allocation2 + $0x7d0] sm:$0xff]
    %v283 = vld [vmem:[#allocation2 + $0x7d8] sm:$0xff]
    %v284 = vld [vmem:[#allocation2 + $0x7e0] sm:$0xff]
    %v285 = vld [vmem:[#allocation2 + $0x7e8] sm:$0xff]
    %v286 = vld [vmem:[#allocation2 + $0x7f0] sm:$0xff]
    %v287 = vld [vmem:[#allocation2 + $0x7f8] sm:$0xff]
    %v288 = vld [vmem:[#allocation2 + $0x800] sm:$0xff]
    %v289 = vld [vmem:[#allocation2 + $0x808] sm:$0xff]
    %v290 = vld [vmem:[#allocation2 + $0x810] sm:$0xff]
    %v291 = vld [vmem:[#allocation2 + $0x818] sm:$0xff]
    %v292 = vld [vmem:[#allocation2 + $0x820] sm:$0xff]
    %v293 = vld [vmem:[#allocation2 + $0x828] sm:$0xff]
    %v294 = vld [vmem:[#allocation2 + $0x830] sm:$0xff]
    %v295 = vld [vmem:[#allocation2 + $0x838] sm:$0xff]
    %v296 = vld [vmem:[#allocation2 + $0x840] sm:$0xff]
    %v297 = vld [vmem:[#allocation2 + $0x848] sm:$0xff]
    %v298 = vld [vmem:[#allocation2 + $0x850] sm:$0xff]
    %v299 = vld [vmem:[#allocation2 + $0x858] sm:$0xff]
    %v300 = vld [vmem:[#allocation2 + $0x860] sm:$0xff]
    %v301 = vld [vmem:[#allocation2 + $0x868] sm:$0xff]
    %v302 = vld [vmem:[#allocation2 + $0x870] sm:$0xff]
    %v303 = vld [vmem:[#allocation2 + $0x878] sm:$0xff]
    %v304 = vld [vmem:[#allocation2 + $0x880] sm:$0xff]
    %v305 = vld [vmem:[#allocation2 + $0x888] sm:$0xff]
    %v306 = vld [vmem:[#allocation2 + $0x890] sm:$0xff]
    %v307 = vld [vmem:[#allocation2 + $0x898] sm:$0xff]
    %v308 = vld [vmem:[#allocation2 + $0x8a0] sm:$0xff]
    %v309 = vld [vmem:[#allocation2 + $0x8a8] sm:$0xff]
    %v310 = vld [vmem:[#allocation2 + $0x8b0] sm:$0xff]
    %v311 = vld [vmem:[#allocation2 + $0x8b8] sm:$0xff]
    %v312 = vld [vmem:[#allocation2 + $0x8c0] sm:$0xff]
    %v313 = vld [vmem:[#allocation2 + $0x8c8] sm:$0xff]
    %v314 = vld [vmem:[#allocation2 + $0x8d0] sm:$0xff]
    %v315 = vld [vmem:[#allocation2 + $0x8d8] sm:$0xff]
    %v316 = vld [vmem:[#allocation2 + $0x8e0] sm:$0xff]
    %v317 = vld [vmem:[#allocation2 + $0x8e8] sm:$0xff]
    %v318 = vld [vmem:[#allocation2 + $0x8f0] sm:$0xff]
    %v319 = vld [vmem:[#allocation2 + $0x8f8] sm:$0xff]
    %v320 = vld [vmem:[#allocation2 + $0x900] sm:$0xff]
    %v321 = vld [vmem:[#allocation2 + $0x908] sm:$0xff]
    %v322 = vld [vmem:[#allocation2 + $0x910] sm:$0xff]
    %v323 = vld [vmem:[#allocation2 + $0x918] sm:$0xff]
    %v324 = vld [vmem:[#allocation2 + $0x920] sm:$0xff]
    %v325 = vld [vmem:[#allocation2 + $0x928] sm:$0xff]
    %v326 = vld [vmem:[#allocation2 + $0x930] sm:$0xff]
    %v327 = vld [vmem:[#allocation2 + $0x938] sm:$0xff]
    %v328 = vld [vmem:[#allocation2 + $0x940] sm:$0xff]
    %v329 = vld [vmem:[#allocation2 + $0x948] sm:$0xff]
    %v330 = vld [vmem:[#allocation2 + $0x950] sm:$0xff]
    %v331 = vld [vmem:[#allocation2 + $0x958] sm:$0xff]
    %v332 = vld [vmem:[#allocation2 + $0x960] sm:$0xff]
    %v333 = vld [vmem:[#allocation2 + $0x968] sm:$0xff]
    %v334 = vld [vmem:[#allocation2 + $0x970] sm:$0xff]
    %v335 = vld [vmem:[#allocation2 + $0x978] sm:$0xff]
    %v336 = vld [vmem:[#allocation2 + $0x980] sm:$0xff]
    %v337 = vld [vmem:[#allocation2 + $0x988] sm:$0xff]
    %v338 = vld [vmem:[#allocation2 + $0x990] sm:$0xff]
    %v339 = vld [vmem:[#allocation2 + $0x998] sm:$0xff]
    %v340 = vld [vmem:[#allocation2 + $0x9a0] sm:$0xff]
    %v341 = vld [vmem:[#allocation2 + $0x9a8] sm:$0xff]
    %v342 = vld [vmem:[#allocation2 + $0x9b0] sm:$0xff]
    %v343 = vld [vmem:[#allocation2 + $0x9b8] sm:$0xff]
    %v344 = vld [vmem:[#allocation2 + $0x9c0] sm:$0xff]
    %v345 = vld [vmem:[#allocation2 + $0x9c8] sm:$0xff]
    %v346 = vld [vmem:[#allocation2 + $0x9d0] sm:$0xff]
    %v347 = vld [vmem:[#allocation2 + $0x9d8] sm:$0xff]
    %v348 = vld [vmem:[#allocation2 + $0x9e0] sm:$0xff]
    %v349 = vld [vmem:[#allocation2 + $0x9e8] sm:$0xff]
    %v350 = vld [vmem:[#allocation2 + $0x9f0] sm:$0xff]
    %v351 = vld [vmem:[#allocation2 + $0x9f8] sm:$0xff]
    %v352 = vld [vmem:[#allocation2 + $0xa00] sm:$0xff]
    %v353 = vld [vmem:[#allocation2 + $0xa08] sm:$0xff]
    %v354 = vld [vmem:[#allocation2 + $0xa10] sm:$0xff]
    %v355 = vld [vmem:[#allocation2 + $0xa18] sm:$0xff]
    %v356 = vld [vmem:[#allocation2 + $0xa20] sm:$0xff]
    %v357 = vld [vmem:[#allocation2 + $0xa28] sm:$0xff]
    %v358 = vld [vmem:[#allocation2 + $0xa30] sm:$0xff]
    %v359 = vld [vmem:[#allocation2 + $0xa38] sm:$0xff]
    %v360 = vld [vmem:[#allocation2 + $0xa40] sm:$0xff]
    %v361 = vld [vmem:[#allocation2 + $0xa48] sm:$0xff]
    %v362 = vld [vmem:[#allocation2 + $0xa50] sm:$0xff]
    %v363 = vld [vmem:[#allocation2 + $0xa58] sm:$0xff]
    %v364 = vld [vmem:[#allocation2 + $0xa60] sm:$0xff]
    %v365 = vld [vmem:[#allocation2 + $0xa68] sm:$0xff]
    %v366 = vld [vmem:[#allocation2 + $0xa70] sm:$0xff]
    %v367 = vld [vmem:[#allocation2 + $0xa78] sm:$0xff]
    %v368 = vld [vmem:[#allocation2 + $0xa80] sm:$0xff]
    %v369 = vld [vmem:[#allocation2 + $0xa88] sm:$0xff]
    %v370 = vld [vmem:[#allocation2 + $0xa90] sm:$0xff]
    %v371 = vld [vmem:[#allocation2 + $0xa98] sm:$0xff]
    %v372 = vld [vmem:[#allocation2 + $0xaa0] sm:$0xff]
    %v373 = vld [vmem:[#allocation2 + $0xaa8] sm:$0xff]
    %v374 = vld [vmem:[#allocation2 + $0xab0] sm:$0xff]
    %v375 = vld [vmem:[#allocation2 + $0xab8] sm:$0xff]
    %v376 = vld [vmem:[#allocation2 + $0xac0] sm:$0xff]
    %v377 = vld [vmem:[#allocation2 + $0xac8] sm:$0xff]
    %v378 = vld [vmem:[#allocation2 + $0xad0] sm:$0xff]
    %v379 = vld [vmem:[#allocation2 + $0xad8] sm:$0xff]
    %v380 = vld [vmem:[#allocation2 + $0xae0] sm:$0xff]
    %v381 = vld [vmem:[#allocation2 + $0xae8] sm:$0xff]
    %v382 = vld [vmem:[#allocation2 + $0xaf0] sm:$0xff]
    %v383 = vld [vmem:[#allocation2 + $0xaf8] sm:$0xff]
    %v384 = vld [vmem:[#allocation2 + $0xb00] sm:$0xff]
    %v385 = vld [vmem:[#allocation2 + $0xb08] sm:$0xff]
    %v386 = vld [vmem:[#allocation2 + $0xb10] sm:$0xff]
    %v387 = vld [vmem:[#allocation2 + $0xb18] sm:$0xff]
    %v388 = vld [vmem:[#allocation2 + $0xb20] sm:$0xff]
    %v389 = vld [vmem:[#allocation2 + $0xb28] sm:$0xff]
    %v390 = vld [vmem:[#allocation2 + $0xb30] sm:$0xff]
    %v391 = vld [vmem:[#allocation2 + $0xb38] sm:$0xff]
    %v392 = vld [vmem:[#allocation2 + $0xb40] sm:$0xff]
    %v393 = vld [vmem:[#allocation2 + $0xb48] sm:$0xff]
    %v394 = vld [vmem:[#allocation2 + $0xb50] sm:$0xff]
    %v395 = vld [vmem:[#allocation2 + $0xb58] sm:$0xff]
    %v396 = vld [vmem:[#allocation2 + $0xb60] sm:$0xff]
    %v397 = vld [vmem:[#allocation2 + $0xb68] sm:$0xff]
    %v398 = vld [vmem:[#allocation2 + $0xb70] sm:$0xff]
    %v399 = vld [vmem:[#allocation2 + $0xb78] sm:$0xff]
    %v400 = vld [vmem:[#allocation2 + $0xb80] sm:$0xff]
    %v401 = vld [vmem:[#allocation2 + $0xb88] sm:$0xff]
    %v402 = vld [vmem:[#allocation2 + $0xb90] sm:$0xff]
    %v403 = vld [vmem:[#allocation2 + $0xb98] sm:$0xff]
    %v404 = vld [vmem:[#allocation2 + $0xba0] sm:$0xff]
    %v405 = vld [vmem:[#allocation2 + $0xba8] sm:$0xff]
    %v406 = vld [vmem:[#allocation2 + $0xbb0] sm:$0xff]
    %v407 = vld [vmem:[#allocation2 + $0xbb8] sm:$0xff]
    %v408 = vld [vmem:[#allocation2 + $0xbc0] sm:$0xff]
    %v409 = vld [vmem:[#allocation2 + $0xbc8] sm:$0xff]
    %v410 = vld [vmem:[#allocation2 + $0xbd0] sm:$0xff]
    %v411 = vld [vmem:[#allocation2 + $0xbd8] sm:$0xff]
    %v412 = vld [vmem:[#allocation2 + $0xbe0] sm:$0xff]
    %v413 = vld [vmem:[#allocation2 + $0xbe8] sm:$0xff]
    %v414 = vld [vmem:[#allocation2 + $0xbf0] sm:$0xff]
    %v415 = vld [vmem:[#allocation2 + $0xbf8] sm:$0xff]
    %v416 = vld [vmem:[#allocation2 + $0xc00] sm:$0xff]
    %v417 = vld [vmem:[#allocation2 + $0xc08] sm:$0xff]
    %v418 = vld [vmem:[#allocation2 + $0xc10] sm:$0xff]
    %v419 = vld [vmem:[#allocation2 + $0xc18] sm:$0xff]
    %v420 = vld [vmem:[#allocation2 + $0xc20] sm:$0xff]
    %v421 = vld [vmem:[#allocation2 + $0xc28] sm:$0xff]
    %v422 = vld [vmem:[#allocation2 + $0xc30] sm:$0xff]
    %v423 = vld [vmem:[#allocation2 + $0xc38] sm:$0xff]
    %v424 = vld [vmem:[#allocation2 + $0xc40] sm:$0xff]
    %v425 = vld [vmem:[#allocation2 + $0xc48] sm:$0xff]
    %v426 = vld [vmem:[#allocation2 + $0xc50] sm:$0xff]
    %v427 = vld [vmem:[#allocation2 + $0xc58] sm:$0xff]
    %v428 = vld [vmem:[#allocation2 + $0xc60] sm:$0xff]
    %v429 = vld [vmem:[#allocation2 + $0xc68] sm:$0xff]
    %v430 = vld [vmem:[#allocation2 + $0xc70] sm:$0xff]
    %v431 = vld [vmem:[#allocation2 + $0xc78] sm:$0xff]
    %v432 = vld [vmem:[#allocation2 + $0xc80] sm:$0xff]
    %v433 = vld [vmem:[#allocation2 + $0xc88] sm:$0xff]
    %v434 = vld [vmem:[#allocation2 + $0xc90] sm:$0xff]
    %v435 = vld [vmem:[#allocation2 + $0xc98] sm:$0xff]
    %v436 = vld [vmem:[#allocation2 + $0xca0] sm:$0xff]
    %v437 = vld [vmem:[#allocation2 + $0xca8] sm:$0xff]
    %v438 = vld [vmem:[#allocation2 + $0xcb0] sm:$0xff]
    %v439 = vld [vmem:[#allocation2 + $0xcb8] sm:$0xff]
    %v440 = vld [vmem:[#allocation2 + $0xcc0] sm:$0xff]
    %v441 = vld [vmem:[#allocation2 + $0xcc8] sm:$0xff]
    %v442 = vld [vmem:[#allocation2 + $0xcd0] sm:$0xff]
    %v443 = vld [vmem:[#allocation2 + $0xcd8] sm:$0xff]
    %v444 = vld [vmem:[#allocation2 + $0xce0] sm:$0xff]
    %v445 = vld [vmem:[#allocation2 + $0xce8] sm:$0xff]
    %v446 = vld [vmem:[#allocation2 + $0xcf0] sm:$0xff]
    %v447 = vld [vmem:[#allocation2 + $0xcf8] sm:$0xff]
    %v448 = vld [vmem:[#allocation2 + $0xd00] sm:$0xff]
    %v449 = vld [vmem:[#allocation2 + $0xd08] sm:$0xff]
    %v450 = vld [vmem:[#allocation2 + $0xd10] sm:$0xff]
    %v451 = vld [vmem:[#allocation2 + $0xd18] sm:$0xff]
    %v452 = vld [vmem:[#allocation2 + $0xd20] sm:$0xff]
    %v453 = vld [vmem:[#allocation2 + $0xd28] sm:$0xff]
    %v454 = vld [vmem:[#allocation2 + $0xd30] sm:$0xff]
    %v455 = vld [vmem:[#allocation2 + $0xd38] sm:$0xff]
    %v456 = vld [vmem:[#allocation2 + $0xd40] sm:$0xff]
    %v457 = vld [vmem:[#allocation2 + $0xd48] sm:$0xff]
    %v458 = vld [vmem:[#allocation2 + $0xd50] sm:$0xff]
    %v459 = vld [vmem:[#allocation2 + $0xd58] sm:$0xff]
    %v460 = vld [vmem:[#allocation2 + $0xd60] sm:$0xff]
    %v461 = vld [vmem:[#allocation2 + $0xd68] sm:$0xff]
    %v462 = vld [vmem:[#allocation2 + $0xd70] sm:$0xff]
    %v463 = vld [vmem:[#allocation2 + $0xd78] sm:$0xff]
    %v464 = vld [vmem:[#allocation2 + $0xd80] sm:$0xff]
    %v465 = vld [vmem:[#allocation2 + $0xd88] sm:$0xff]
    %v466 = vld [vmem:[#allocation2 + $0xd90] sm:$0xff]
    %v467 = vld [vmem:[#allocation2 + $0xd98] sm:$0xff]
    %v468 = vld [vmem:[#allocation2 + $0xda0] sm:$0xff]
    %v469 = vld [vmem:[#allocation2 + $0xda8] sm:$0xff]
    %v470 = vld [vmem:[#allocation2 + $0xdb0] sm:$0xff]
    %v471 = vld [vmem:[#allocation2 + $0xdb8] sm:$0xff]
    %v472 = vld [vmem:[#allocation2 + $0xdc0] sm:$0xff]
    %v473 = vld [vmem:[#allocation2 + $0xdc8] sm:$0xff]
    %v474 = vld [vmem:[#allocation2 + $0xdd0] sm:$0xff]
    %v475 = vld [vmem:[#allocation2 + $0xdd8] sm:$0xff]
    %v476 = vld [vmem:[#allocation2 + $0xde0] sm:$0xff]
    %v477 = vld [vmem:[#allocation2 + $0xde8] sm:$0xff]
    %v478 = vld [vmem:[#allocation2 + $0xdf0] sm:$0xff]
    %v479 = vld [vmem:[#allocation2 + $0xdf8] sm:$0xff]
    %v480 = vld [vmem:[#allocation2 + $0xe00] sm:$0xff]
    %v481 = vld [vmem:[#allocation2 + $0xe08] sm:$0xff]
    %v482 = vld [vmem:[#allocation2 + $0xe10] sm:$0xff]
    %v483 = vld [vmem:[#allocation2 + $0xe18] sm:$0xff]
    %v484 = vld [vmem:[#allocation2 + $0xe20] sm:$0xff]
    %v485 = vld [vmem:[#allocation2 + $0xe28] sm:$0xff]
    %v486 = vld [vmem:[#allocation2 + $0xe30] sm:$0xff]
    %v487 = vld [vmem:[#allocation2 + $0xe38] sm:$0xff]
    %v488 = vld [vmem:[#allocation2 + $0xe40] sm:$0xff]
    %v489 = vld [vmem:[#allocation2 + $0xe48] sm:$0xff]
    %v490 = vld [vmem:[#allocation2 + $0xe50] sm:$0xff]
    %v491 = vld [vmem:[#allocation2 + $0xe58] sm:$0xff]
    %v492 = vld [vmem:[#allocation2 + $0xe60] sm:$0xff]
    %v493 = vld [vmem:[#allocation2 + $0xe68] sm:$0xff]
    %v494 = vld [vmem:[#allocation2 + $0xe70] sm:$0xff]
    %v495 = vld [vmem:[#allocation2 + $0xe78] sm:$0xff]
    %v496 = vld [vmem:[#allocation2 + $0xe80] sm:$0xff]
    %v497 = vld [vmem:[#allocation2 + $0xe88] sm:$0xff]
    %v498 = vld [vmem:[#allocation2 + $0xe90] sm:$0xff]
    %v499 = vld [vmem:[#allocation2 + $0xe98] sm:$0xff]
    %v500 = vld [vmem:[#allocation2 + $0xea0] sm:$0xff]
    %v501 = vld [vmem:[#allocation2 + $0xea8] sm:$0xff]
    %v502 = vld [vmem:[#allocation2 + $0xeb0] sm:$0xff]
    %v503 = vld [vmem:[#allocation2 + $0xeb8] sm:$0xff]
    %v504 = vld [vmem:[#allocation2 + $0xec0] sm:$0xff]
    %v505 = vld [vmem:[#allocation2 + $0xec8] sm:$0xff]
    %v506 = vld [vmem:[#allocation2 + $0xed0] sm:$0xff]
    %v507 = vld [vmem:[#allocation2 + $0xed8] sm:$0xff]
    %v508 = vld [vmem:[#allocation2 + $0xee0] sm:$0xff]
    %v509 = vld [vmem:[#allocation2 + $0xee8] sm:$0xff]
    %v510 = vld [vmem:[#allocation2 + $0xef0] sm:$0xff]
    %v511 = vld [vmem:[#allocation2 + $0xef8] sm:$0xff]
    %v512 = vld [vmem:[#allocation2 + $0xf00] sm:$0xff]
    %v513 = vld [vmem:[#allocation2 + $0xf08] sm:$0xff]
    %v514 = vld [vmem:[#allocation2 + $0xf10] sm:$0xff]
    %v515 = vld [vmem:[#allocation2 + $0xf18] sm:$0xff]
    %v516 = vld [vmem:[#allocation2 + $0xf20] sm:$0xff]
    %v517 = vld [vmem:[#allocation2 + $0xf28] sm:$0xff]
    %v518 = vld [vmem:[#allocation2 + $0xf30] sm:$0xff]
    %v519 = vld [vmem:[#allocation2 + $0xf38] sm:$0xff]
    %v520 = vld [vmem:[#allocation2 + $0xf40] sm:$0xff]
    %v521 = vld [vmem:[#allocation2 + $0xf48] sm:$0xff]
    %v522 = vld [vmem:[#allocation2 + $0xf50] sm:$0xff]
    %v523 = vld [vmem:[#allocation2 + $0xf58] sm:$0xff]
    %v524 = vld [vmem:[#allocation2 + $0xf60] sm:$0xff]
    %v525 = vld [vmem:[#allocation2 + $0xf68] sm:$0xff]
    %v526 = vld [vmem:[#allocation2 + $0xf70] sm:$0xff]
    %v527 = vld [vmem:[#allocation2 + $0xf78] sm:$0xff]
    %v528 = vld [vmem:[#allocation2 + $0xf80] sm:$0xff]
    %v529 = vld [vmem:[#allocation2 + $0xf88] sm:$0xff]
    %v530 = vld [vmem:[#allocation2 + $0xf90] sm:$0xff]
    %v531 = vld [vmem:[#allocation2 + $0xf98] sm:$0xff]
    %v532 = vld [vmem:[#allocation2 + $0xfa0] sm:$0xff]
    %v533 = vld [vmem:[#allocation2 + $0xfa8] sm:$0xff]
    %v534 = vld [vmem:[#allocation2 + $0xfb0] sm:$0xff]
    %v535 = vld [vmem:[#allocation2 + $0xfb8] sm:$0xff]
    %v536 = vld [vmem:[#allocation2 + $0xfc0] sm:$0xff]
    %v537 = vld [vmem:[#allocation2 + $0xfc8] sm:$0xff]
    %v538 = vld [vmem:[#allocation2 + $0xfd0] sm:$0xff]
    %v539 = vld [vmem:[#allocation2 + $0xfd8] sm:$0xff]
    %v540 = vld [vmem:[#allocation2 + $0xfe0] sm:$0xff]
    %v541 = vld [vmem:[#allocation2 + $0xfe8] sm:$0xff]
    %v542 = vld [vmem:[#allocation2 + $0xff0] sm:$0xff]
    %v543 = vld [vmem:[#allocation2 + $0xff8] sm:$0xff]
    %v544 = vld [vmem:[#allocation2 + $0x1000] sm:$0xff]
    %v545 = vld [vmem:[#allocation2 + $0x1008] sm:$0xff]
    %v546 = vld [vmem:[#allocation2 + $0x1010] sm:$0xff]
    %v547 = vld [vmem:[#allocation2 + $0x1018] sm:$0xff]
    %v548 = vld [vmem:[#allocation2 + $0x1020] sm:$0xff]
    %v549 = vld [vmem:[#allocation2 + $0x1028] sm:$0xff]
    %v550 = vld [vmem:[#allocation2 + $0x1030] sm:$0xff]
    %v551 = vld [vmem:[#allocation2 + $0x1038] sm:$0xff]
    %v552 = vld [vmem:[#allocation2 + $0x1040] sm:$0xff]
    %v553 = vld [vmem:[#allocation2 + $0x1048] sm:$0xff]
    %v554 = vld [vmem:[#allocation2 + $0x1050] sm:$0xff]
    %v555 = vld [vmem:[#allocation2 + $0x1058] sm:$0xff]
    %v556 = vld [vmem:[#allocation2 + $0x1060] sm:$0xff]
    %v557 = vld [vmem:[#allocation2 + $0x1068] sm:$0xff]
    %v558 = vld [vmem:[#allocation2 + $0x1070] sm:$0xff]
    %v559 = vld [vmem:[#allocation2 + $0x1078] sm:$0xff]
    %v560 = vld [vmem:[#allocation2 + $0x1080] sm:$0xff]
    %v561 = vld [vmem:[#allocation2 + $0x1088] sm:$0xff]
    %v562 = vld [vmem:[#allocation2 + $0x1090] sm:$0xff]
    %v563 = vld [vmem:[#allocation2 + $0x1098] sm:$0xff]
    %v564 = vld [vmem:[#allocation2 + $0x10a0] sm:$0xff]
    %v565 = vld [vmem:[#allocation2 + $0x10a8] sm:$0xff]
    %v566 = vld [vmem:[#allocation2 + $0x10b0] sm:$0xff]
    %v567 = vld [vmem:[#allocation2 + $0x10b8] sm:$0xff]
    %v568 = vld [vmem:[#allocation2 + $0x10c0] sm:$0xff]
    %v569 = vld [vmem:[#allocation2 + $0x10c8] sm:$0xff]
    %v570 = vld [vmem:[#allocation2 + $0x10d0] sm:$0xff]
    %v571 = vld [vmem:[#allocation2 + $0x10d8] sm:$0xff]
    %v572 = vpack.c.bf16 %v38, %v32
    %v573 = vpack.c.bf16 %v39, %v33
    %v574 = vpack.c.bf16 %v40, %v34
    %v575 = vpack.c.bf16 %v41, %v35
    %v576 = vpack.c.bf16 %v42, %v36
    %v577 = vpack.c.bf16 %v43, %v37
    %v578 = vpack.c.bf16 %v50, %v44
    %v579 = vpack.c.bf16 %v51, %v45
    %v580 = vpack.c.bf16 %v52, %v46
    %v581 = vpack.c.bf16 %v53, %v47
    %v582 = vpack.c.bf16 %v54, %v48
    %v583 = vpack.c.bf16 %v55, %v49
    %v584 = vpack.c.bf16 %v62, %v56
    %v585 = vpack.c.bf16 %v63, %v57
    %v586 = vpack.c.bf16 %v64, %v58
    %v587 = vpack.c.bf16 %v65, %v59
    %v588 = vpack.c.bf16 %v66, %v60
    %v589 = vpack.c.bf16 %v67, %v61
    %v590 = vpack.c.bf16 %v74, %v68
    %v591 = vpack.c.bf16 %v75, %v69
    %v592 = vpack.c.bf16 %v76, %v70
    %v593 = vpack.c.bf16 %v77, %v71
    %v594 = vpack.c.bf16 %v78, %v72
    %v595 = vpack.c.bf16 %v79, %v73
    %v596 = vpack.c.bf16 %v86, %v80
    %v597 = vpack.c.bf16 %v87, %v81
    %v598 = vpack.c.bf16 %v88, %v82
    %v599 = vpack.c.bf16 %v89, %v83
    %v600 = vpack.c.bf16 %v90, %v84
    %v601 = vpack.c.bf16 %v91, %v85
    %v602 = vpack.c.bf16 %v98, %v92
    %v603 = vpack.c.bf16 %v99, %v93
    %v604 = vpack.c.bf16 %v100, %v94
    %v605 = vpack.c.bf16 %v101, %v95
    %v606 = vpack.c.bf16 %v102, %v96
    %v607 = vpack.c.bf16 %v103, %v97
    %v608 = vpack.c.bf16 %v110, %v104
    %v609 = vpack.c.bf16 %v111, %v105
    %v610 = vpack.c.bf16 %v112, %v106
    %v611 = vpack.c.bf16 %v113, %v107
    %v612 = vpack.c.bf16 %v114, %v108
    %v613 = vpack.c.bf16 %v115, %v109
    %v614 = vpack.c.bf16 %v122, %v116
    %v615 = vpack.c.bf16 %v123, %v117
    %v616 = vpack.c.bf16 %v124, %v118
    %v617 = vpack.c.bf16 %v125, %v119
    %v618 = vpack.c.bf16 %v126, %v120
    %v619 = vpack.c.bf16 %v127, %v121
    %v620 = vpack.c.bf16 %v134, %v128
    %v621 = vpack.c.bf16 %v135, %v129
    %v622 = vpack.c.bf16 %v136, %v130
    %v623 = vpack.c.bf16 %v137, %v131
    %v624 = vpack.c.bf16 %v138, %v132
    %v625 = vpack.c.bf16 %v139, %v133
    %v626 = vpack.c.bf16 %v146, %v140
    %v627 = vpack.c.bf16 %v147, %v141
    %v628 = vpack.c.bf16 %v148, %v142
    %v629 = vpack.c.bf16 %v149, %v143
    %v630 = vpack.c.bf16 %v150, %v144
    %v631 = vpack.c.bf16 %v151, %v145
    %v632 = vpack.c.bf16 %v158, %v152
    %v633 = vpack.c.bf16 %v159, %v153
    %v634 = vpack.c.bf16 %v160, %v154
    %v635 = vpack.c.bf16 %v161, %v155
    %v636 = vpack.c.bf16 %v162, %v156
    %v637 = vpack.c.bf16 %v163, %v157
    %v638 = vpack.c.bf16 %v170, %v164
    %v639 = vpack.c.bf16 %v171, %v165
    %v640 = vpack.c.bf16 %v172, %v166
    %v641 = vpack.c.bf16 %v173, %v167
    %v642 = vpack.c.bf16 %v174, %v168
    %v643 = vpack.c.bf16 %v175, %v169
    %v644 = vpack.c.bf16 %v182, %v176
    %v645 = vpack.c.bf16 %v183, %v177
    %v646 = vpack.c.bf16 %v184, %v178
    %v647 = vpack.c.bf16 %v185, %v179
    %v648 = vpack.c.bf16 %v186, %v180
    %v649 = vpack.c.bf16 %v187, %v181
    %v650 = vpack.c.bf16 %v194, %v188
    %v651 = vpack.c.bf16 %v195, %v189
    %v652 = vpack.c.bf16 %v196, %v190
    %v653 = vpack.c.bf16 %v197, %v191
    %v654 = vpack.c.bf16 %v198, %v192
    %v655 = vpack.c.bf16 %v199, %v193
    %v656 = vpack.c.bf16 %v206, %v200
    %v657 = vpack.c.bf16 %v207, %v201
    %v658 = vpack.c.bf16 %v208, %v202
    %v659 = vpack.c.bf16 %v209, %v203
    %v660 = vpack.c.bf16 %v210, %v204
    %v661 = vpack.c.bf16 %v211, %v205
    %v662 = vpack.c.bf16 %v218, %v212
    %v663 = vpack.c.bf16 %v219, %v213
    %v664 = vpack.c.bf16 %v220, %v214
    %v665 = vpack.c.bf16 %v221, %v215
    %v666 = vpack.c.bf16 %v222, %v216
    %v667 = vpack.c.bf16 %v223, %v217
    %v668 = vpack.c.bf16 %v230, %v224
    %v669 = vpack.c.bf16 %v231, %v225
    %v670 = vpack.c.bf16 %v232, %v226
    %v671 = vpack.c.bf16 %v233, %v227
    %v672 = vpack.c.bf16 %v234, %v228
    %v673 = vpack.c.bf16 %v235, %v229
    %v674 = vpack.c.bf16 %v242, %v236
    %v675 = vpack.c.bf16 %v243, %v237
    %v676 = vpack.c.bf16 %v244, %v238
    %v677 = vpack.c.bf16 %v245, %v239
    %v678 = vpack.c.bf16 %v246, %v240
    %v679 = vpack.c.bf16 %v247, %v241
    %v680 = vpack.c.bf16 %v254, %v248
    %v681 = vpack.c.bf16 %v255, %v249
    %v682 = vpack.c.bf16 %v256, %v250
    %v683 = vpack.c.bf16 %v257, %v251
    %v684 = vpack.c.bf16 %v258, %v252
    %v685 = vpack.c.bf16 %v259, %v253
    %v686 = vpack.c.bf16 %v266, %v260
    %v687 = vpack.c.bf16 %v267, %v261
    %v688 = vpack.c.bf16 %v268, %v262
    %v689 = vpack.c.bf16 %v269, %v263
    %v690 = vpack.c.bf16 %v270, %v264
    %v691 = vpack.c.bf16 %v271, %v265
    %v692 = vpack.c.bf16 %v278, %v272
    %v693 = vpack.c.bf16 %v279, %v273
    %v694 = vpack.c.bf16 %v280, %v274
    %v695 = vpack.c.bf16 %v281, %v275
    %v696 = vpack.c.bf16 %v282, %v276
    %v697 = vpack.c.bf16 %v283, %v277
    %v698 = vpack.c.bf16 %v290, %v284
    %v699 = vpack.c.bf16 %v291, %v285
    %v700 = vpack.c.bf16 %v292, %v286
    %v701 = vpack.c.bf16 %v293, %v287
    %v702 = vpack.c.bf16 %v294, %v288
    %v703 = vpack.c.bf16 %v295, %v289
    %v704 = vpack.c.bf16 %v302, %v296
    %v705 = vpack.c.bf16 %v303, %v297
    %v706 = vpack.c.bf16 %v304, %v298
    %v707 = vpack.c.bf16 %v305, %v299
    %v708 = vpack.c.bf16 %v306, %v300
    %v709 = vpack.c.bf16 %v307, %v301
    %v710 = vpack.c.bf16 %v314, %v308
    %v711 = vpack.c.bf16 %v315, %v309
    %v712 = vpack.c.bf16 %v316, %v310
    %v713 = vpack.c.bf16 %v317, %v311
    %v714 = vpack.c.bf16 %v318, %v312
    %v715 = vpack.c.bf16 %v319, %v313
    %v716 = vpack.c.bf16 %v326, %v320
    %v717 = vpack.c.bf16 %v327, %v321
    %v718 = vpack.c.bf16 %v328, %v322
    %v719 = vpack.c.bf16 %v329, %v323
    %v720 = vpack.c.bf16 %v330, %v324
    %v721 = vpack.c.bf16 %v331, %v325
    %v722 = vpack.c.bf16 %v338, %v332
    %v723 = vpack.c.bf16 %v339, %v333
    %v724 = vpack.c.bf16 %v340, %v334
    %v725 = vpack.c.bf16 %v341, %v335
    %v726 = vpack.c.bf16 %v342, %v336
    %v727 = vpack.c.bf16 %v343, %v337
    %v728 = vpack.c.bf16 %v350, %v344
    %v729 = vpack.c.bf16 %v351, %v345
    %v730 = vpack.c.bf16 %v352, %v346
    %v731 = vpack.c.bf16 %v353, %v347
    %v732 = vpack.c.bf16 %v354, %v348
    %v733 = vpack.c.bf16 %v355, %v349
    %v734 = vpack.c.bf16 %v362, %v356
    %v735 = vpack.c.bf16 %v363, %v357
    %v736 = vpack.c.bf16 %v364, %v358
    %v737 = vpack.c.bf16 %v365, %v359
    %v738 = vpack.c.bf16 %v366, %v360
    %v739 = vpack.c.bf16 %v367, %v361
    %v740 = vpack.c.bf16 %v374, %v368
    %v741 = vpack.c.bf16 %v375, %v369
    %v742 = vpack.c.bf16 %v376, %v370
    %v743 = vpack.c.bf16 %v377, %v371
    %v744 = vpack.c.bf16 %v378, %v372
    %v745 = vpack.c.bf16 %v379, %v373
    %v746 = vpack.c.bf16 %v386, %v380
    %v747 = vpack.c.bf16 %v387, %v381
    %v748 = vpack.c.bf16 %v388, %v382
    %v749 = vpack.c.bf16 %v389, %v383
    %v750 = vpack.c.bf16 %v390, %v384
    %v751 = vpack.c.bf16 %v391, %v385
    %v752 = vpack.c.bf16 %v398, %v392
    %v753 = vpack.c.bf16 %v399, %v393
    %v754 = vpack.c.bf16 %v400, %v394
    %v755 = vpack.c.bf16 %v401, %v395
    %v756 = vpack.c.bf16 %v402, %v396
    %v757 = vpack.c.bf16 %v403, %v397
    %v758 = vpack.c.bf16 %v410, %v404
    %v759 = vpack.c.bf16 %v411, %v405
    %v760 = vpack.c.bf16 %v412, %v406
    %v761 = vpack.c.bf16 %v413, %v407
    %v762 = vpack.c.bf16 %v414, %v408
    %v763 = vpack.c.bf16 %v415, %v409
    %v764 = vpack.c.bf16 %v422, %v416
    %v765 = vpack.c.bf16 %v423, %v417
    %v766 = vpack.c.bf16 %v424, %v418
    %v767 = vpack.c.bf16 %v425, %v419
    %v768 = vpack.c.bf16 %v426, %v420
    %v769 = vpack.c.bf16 %v427, %v421
    %v770 = vpack.c.bf16 %v434, %v428
    %v771 = vpack.c.bf16 %v435, %v429
    %v772 = vpack.c.bf16 %v436, %v430
    %v773 = vpack.c.bf16 %v437, %v431
    %v774 = vpack.c.bf16 %v438, %v432
    %v775 = vpack.c.bf16 %v439, %v433
    %v776 = vpack.c.bf16 %v446, %v440
    %v777 = vpack.c.bf16 %v447, %v441
    %v778 = vpack.c.bf16 %v448, %v442
    %v779 = vpack.c.bf16 %v449, %v443
    %v780 = vpack.c.bf16 %v450, %v444
    %v781 = vpack.c.bf16 %v451, %v445
    %v782 = vpack.c.bf16 %v458, %v452
    %v783 = vpack.c.bf16 %v459, %v453
    %v784 = vpack.c.bf16 %v460, %v454
    %v785 = vpack.c.bf16 %v461, %v455
    %v786 = vpack.c.bf16 %v462, %v456
    %v787 = vpack.c.bf16 %v463, %v457
    %v788 = vpack.c.bf16 %v470, %v464
    %v789 = vpack.c.bf16 %v471, %v465
    %v790 = vpack.c.bf16 %v472, %v466
    %v791 = vpack.c.bf16 %v473, %v467
    %v792 = vpack.c.bf16 %v474, %v468
    %v793 = vpack.c.bf16 %v475, %v469
    %v794 = vpack.c.bf16 %v482, %v476
    %v795 = vpack.c.bf16 %v483, %v477
    %v796 = vpack.c.bf16 %v484, %v478
    %v797 = vpack.c.bf16 %v485, %v479
    %v798 = vpack.c.bf16 %v486, %v480
    %v799 = vpack.c.bf16 %v487, %v481
    %v800 = vpack.c.bf16 %v494, %v488
    %v801 = vpack.c.bf16 %v495, %v489
    %v802 = vpack.c.bf16 %v496, %v490
    %v803 = vpack.c.bf16 %v497, %v491
    %v804 = vpack.c.bf16 %v498, %v492
    %v805 = vpack.c.bf16 %v499, %v493
    %v806 = vpack.c.bf16 %v506, %v500
    %v807 = vpack.c.bf16 %v507, %v501
    %v808 = vpack.c.bf16 %v508, %v502
    %v809 = vpack.c.bf16 %v509, %v503
    %v810 = vpack.c.bf16 %v510, %v504
    %v811 = vpack.c.bf16 %v511, %v505
    %v812 = vpack.c.bf16 %v518, %v512
    %v813 = vpack.c.bf16 %v519, %v513
    %v814 = vpack.c.bf16 %v520, %v514
    %v815 = vpack.c.bf16 %v521, %v515
    %v816 = vpack.c.bf16 %v522, %v516
    %v817 = vpack.c.bf16 %v523, %v517
    %v818 = vpack.c.bf16 %v530, %v524
    %v819 = vpack.c.bf16 %v531, %v525
    %v820 = vpack.c.bf16 %v532, %v526
    %v821 = vpack.c.bf16 %v533, %v527
    %v822 = vpack.c.bf16 %v534, %v528
    %v823 = vpack.c.bf16 %v535, %v529
    %v824 = vpack.c.bf16 %v542, %v536
    %v825 = vpack.c.bf16 %v543, %v537
    %v826 = vpack.c.bf16 %v544, %v538
    %v827 = vpack.c.bf16 %v545, %v539
    %v828 = vpack.c.bf16 %v546, %v540
    %v829 = vpack.c.bf16 %v547, %v541
    %v830 = vpack.c.bf16 %v554, %v548
    %v831 = vpack.c.bf16 %v555, %v549
    %v832 = vpack.c.bf16 %v556, %v550
    %v833 = vpack.c.bf16 %v557, %v551
    %v834 = vpack.c.bf16 %v558, %v552
    %v835 = vpack.c.bf16 %v559, %v553
    %v836 = vpack.c.bf16 %v566, %v560
    %v837 = vpack.c.bf16 %v567, %v561
    %v838 = vpack.c.bf16 %v568, %v562
    %v839 = vpack.c.bf16 %v569, %v563
    %v840 = vpack.c.bf16 %v570, %v564
    %v841 = vpack.c.bf16 %v571, %v565
    %v842 = vld [vmem:[%s1] sm:$0xff]
    %v843 = vld [vmem:[%s1 + $0x8] sm:$0xff]
    %v844 = vld [vmem:[%s1 + $0x10] sm:$0xff]
    %v845 = vld [vmem:[%s1 + $0x18] sm:$0xff]
    %v846 = vld [vmem:[%s1 + $0x20] sm:$0xff]
    %v847 = vld [vmem:[%s1 + $0x28] sm:$0xff]
    %v848 = vld [vmem:[%s1 + $0x30] sm:$0xff]
    %v849 = vld [vmem:[%s1 + $0x38] sm:$0xff]
    %v850 = vld [vmem:[%s1 + $0x40] sm:$0xff]
    %v851 = vld [vmem:[%s1 + $0x48] sm:$0xff]
    %v852 = vld [vmem:[%s1 + $0x50] sm:$0xff]
    %v853 = vld [vmem:[%s1 + $0x58] sm:$0xff]
    %v854 = vld [vmem:[%s1 + $0x60] sm:$0xff]
    %v855 = vld [vmem:[%s1 + $0x68] sm:$0xff]
    %v856 = vld [vmem:[%s1 + $0x70] sm:$0xff]
    %v857 = vld [vmem:[%s1 + $0x78] sm:$0xff]
    %v858 = vld [vmem:[%s1 + $0x80] sm:$0xff]
    %v859 = vld [vmem:[%s1 + $0x88] sm:$0xff]
    %v860 = vld [vmem:[%s1 + $0x90] sm:$0xff]
    %v861 = vld [vmem:[%s1 + $0x98] sm:$0xff]
    %v862 = vld [vmem:[%s1 + $0xa0] sm:$0xff]
    %v863 = vld [vmem:[%s1 + $0xa8] sm:$0xff]
    %v864 = vld [vmem:[%s1 + $0xb0] sm:$0xff]
    %v865 = vld [vmem:[%s1 + $0xb8] sm:$0xff]
    %v866 = vld [vmem:[%s1 + $0xc0] sm:$0xff]
    %v867 = vld [vmem:[%s1 + $0xc8] sm:$0xff]
    %v868 = vld [vmem:[%s1 + $0xd0] sm:$0xff]
    %v869 = vld [vmem:[%s1 + $0xd8] sm:$0xff]
    %v870 = vld [vmem:[%s1 + $0xe0] sm:$0xff]
    %v871 = vld [vmem:[%s1 + $0xe8] sm:$0xff]
    %v872 = vld [vmem:[%s1 + $0xf0] sm:$0xff]
    %v873 = vld [vmem:[%s1 + $0xf8] sm:$0xff]
    %v874 = vld [vmem:[%s1 + $0x100] sm:$0xff]
    %v875 = vld [vmem:[%s1 + $0x108] sm:$0xff]
    %v876 = vld [vmem:[%s1 + $0x110] sm:$0xff]
    %v877 = vld [vmem:[%s1 + $0x118] sm:$0xff]
    %v878 = vld [vmem:[%s1 + $0x120] sm:$0xff]
    %v879 = vld [vmem:[%s1 + $0x128] sm:$0xff]
    %v880 = vld [vmem:[%s1 + $0x130] sm:$0xff]
    %v881 = vld [vmem:[%s1 + $0x138] sm:$0xff]
    %v882 = vld [vmem:[%s1 + $0x140] sm:$0xff]
    %v883 = vld [vmem:[%s1 + $0x148] sm:$0xff]
    %v884 = vld [vmem:[%s1 + $0x150] sm:$0xff]
    %v885 = vld [vmem:[%s1 + $0x158] sm:$0xff]
    %v886 = vld [vmem:[%s1 + $0x160] sm:$0xff]
    %v887 = vld [vmem:[%s1 + $0x168] sm:$0xff]
    %v888 = vld [vmem:[%s1 + $0x170] sm:$0xff]
    %v889 = vld [vmem:[%s1 + $0x178] sm:$0xff]
    %v890 = vld [vmem:[%s1 + $0x180] sm:$0xff]
    %v891 = vld [vmem:[%s1 + $0x188] sm:$0xff]
    %v892 = vld [vmem:[%s1 + $0x190] sm:$0xff]
    %v893 = vld [vmem:[%s1 + $0x198] sm:$0xff]
    %v894 = vld [vmem:[%s1 + $0x1a0] sm:$0xff]
    %v895 = vld [vmem:[%s1 + $0x1a8] sm:$0xff]
    %v896 = vld [vmem:[%s1 + $0x1b0] sm:$0xff]
    %v897 = vld [vmem:[%s1 + $0x1b8] sm:$0xff]
    %v898 = vld [vmem:[%s1 + $0x1c0] sm:$0xff]
    %v899 = vld [vmem:[%s1 + $0x1c8] sm:$0xff]
    %v900 = vld [vmem:[%s1 + $0x1d0] sm:$0xff]
    %v901 = vld [vmem:[%s1 + $0x1d8] sm:$0xff]
    %v902 = vld [vmem:[%s1 + $0x1e0] sm:$0xff]
    %v903 = vld [vmem:[%s1 + $0x1e8] sm:$0xff]
    %v904 = vld [vmem:[%s1 + $0x1f0] sm:$0xff]
    %v905 = vld [vmem:[%s1 + $0x1f8] sm:$0xff]
    %v906 = vld [vmem:[%s1 + $0x200] sm:$0xff]
    %v907 = vld [vmem:[%s1 + $0x208] sm:$0xff]
    %v908 = vld [vmem:[%s1 + $0x210] sm:$0xff]
    %v909 = vld [vmem:[%s1 + $0x218] sm:$0xff]
    %v910 = vld [vmem:[%s1 + $0x220] sm:$0xff]
    %v911 = vld [vmem:[%s1 + $0x228] sm:$0xff]
    %v912 = vld [vmem:[%s1 + $0x230] sm:$0xff]
    %v913 = vld [vmem:[%s1 + $0x238] sm:$0xff]
    %v914 = vld [vmem:[%s1 + $0x240] sm:$0xff]
    %v915 = vld [vmem:[%s1 + $0x248] sm:$0xff]
    %v916 = vld [vmem:[%s1 + $0x250] sm:$0xff]
    %v917 = vld [vmem:[%s1 + $0x258] sm:$0xff]
    %v918 = vld [vmem:[%s1 + $0x260] sm:$0xff]
    %v919 = vld [vmem:[%s1 + $0x268] sm:$0xff]
    %v920 = vld [vmem:[%s1 + $0x270] sm:$0xff]
    %v921 = vld [vmem:[%s1 + $0x278] sm:$0xff]
    %v922 = vld [vmem:[%s1 + $0x280] sm:$0xff]
    %v923 = vld [vmem:[%s1 + $0x288] sm:$0xff]
    %v924 = vld [vmem:[%s1 + $0x290] sm:$0xff]
    %v925 = vld [vmem:[%s1 + $0x298] sm:$0xff]
    %v926 = vld [vmem:[%s1 + $0x2a0] sm:$0xff]
    %v927 = vld [vmem:[%s1 + $0x2a8] sm:$0xff]
    %v928 = vld [vmem:[%s1 + $0x2b0] sm:$0xff]
    %v929 = vld [vmem:[%s1 + $0x2b8] sm:$0xff]
    %v930 = vld [vmem:[%s1 + $0x2c0] sm:$0xff]
    %v931 = vld [vmem:[%s1 + $0x2c8] sm:$0xff]
    %v932 = vld [vmem:[%s1 + $0x2d0] sm:$0xff]
    %v933 = vld [vmem:[%s1 + $0x2d8] sm:$0xff]
    %v934 = vld [vmem:[%s1 + $0x2e0] sm:$0xff]
    %v935 = vld [vmem:[%s1 + $0x2e8] sm:$0xff]
    %v936 = vld [vmem:[%s1 + $0x2f0] sm:$0xff]
    %v937 = vld [vmem:[%s1 + $0x2f8] sm:$0xff]
    %v938 = vld [vmem:[%s1 + $0x300] sm:$0xff]
    %v939 = vld [vmem:[%s1 + $0x308] sm:$0xff]
    %v940 = vld [vmem:[%s1 + $0x310] sm:$0xff]
    %v941 = vld [vmem:[%s1 + $0x318] sm:$0xff]
    %v942 = vld [vmem:[%s1 + $0x320] sm:$0xff]
    %v943 = vld [vmem:[%s1 + $0x328] sm:$0xff]
    %v944 = vld [vmem:[%s1 + $0x330] sm:$0xff]
    %v945 = vld [vmem:[%s1 + $0x338] sm:$0xff]
    %v946 = vld [vmem:[%s1 + $0x340] sm:$0xff]
    %v947 = vld [vmem:[%s1 + $0x348] sm:$0xff]
    %v948 = vld [vmem:[%s1 + $0x350] sm:$0xff]
    %v949 = vld [vmem:[%s1 + $0x358] sm:$0xff]
    %v950 = vld [vmem:[%s1 + $0x360] sm:$0xff]
    %v951 = vld [vmem:[%s1 + $0x368] sm:$0xff]
    %v952 = vld [vmem:[%s1 + $0x370] sm:$0xff]
    %v953 = vld [vmem:[%s1 + $0x378] sm:$0xff]
    %v954 = vld [vmem:[%s1 + $0x380] sm:$0xff]
    %v955 = vld [vmem:[%s1 + $0x388] sm:$0xff]
    %v956 = vld [vmem:[%s1 + $0x390] sm:$0xff]
    %v957 = vld [vmem:[%s1 + $0x398] sm:$0xff]
    %v958 = vld [vmem:[%s1 + $0x3a0] sm:$0xff]
    %v959 = vld [vmem:[%s1 + $0x3a8] sm:$0xff]
    %v960 = vld [vmem:[%s1 + $0x3b0] sm:$0xff]
    %v961 = vld [vmem:[%s1 + $0x3b8] sm:$0xff]
    %v962 = vld [vmem:[%s1 + $0x3c0] sm:$0xff]
    %v963 = vld [vmem:[%s1 + $0x3c8] sm:$0xff]
    %v964 = vld [vmem:[%s1 + $0x3d0] sm:$0xff]
    %v965 = vld [vmem:[%s1 + $0x3d8] sm:$0xff]
    %v966 = vld [vmem:[%s1 + $0x3e0] sm:$0xff]
    %v967 = vld [vmem:[%s1 + $0x3e8] sm:$0xff]
    %v968 = vld [vmem:[%s1 + $0x3f0] sm:$0xff]
    %v969 = vld [vmem:[%s1 + $0x3f8] sm:$0xff]
    %v970 = vld [vmem:[%s1 + $0x400] sm:$0xff]
    %v971 = vld [vmem:[%s1 + $0x408] sm:$0xff]
    %v972 = vld [vmem:[%s1 + $0x410] sm:$0xff]
    %v973 = vld [vmem:[%s1 + $0x418] sm:$0xff]
    %v974 = vld [vmem:[%s1 + $0x420] sm:$0xff]
    %v975 = vld [vmem:[%s1 + $0x428] sm:$0xff]
    %v976 = vld [vmem:[%s1 + $0x430] sm:$0xff]
    %v977 = vld [vmem:[%s1 + $0x438] sm:$0xff]
    %v978 = vld [vmem:[%s1 + $0x440] sm:$0xff]
    %v979 = vld [vmem:[%s1 + $0x448] sm:$0xff]
    %v980 = vld [vmem:[%s1 + $0x450] sm:$0xff]
    %v981 = vld [vmem:[%s1 + $0x458] sm:$0xff]
    %v982 = vld [vmem:[%s1 + $0x460] sm:$0xff]
    %v983 = vld [vmem:[%s1 + $0x468] sm:$0xff]
    %v984 = vld [vmem:[%s1 + $0x470] sm:$0xff]
    %v985 = vld [vmem:[%s1 + $0x478] sm:$0xff]
    %v986 = vld [vmem:[%s1 + $0x480] sm:$0xff]
    %v987 = vld [vmem:[%s1 + $0x488] sm:$0xff]
    %v988 = vld [vmem:[%s1 + $0x490] sm:$0xff]
    %v989 = vld [vmem:[%s1 + $0x498] sm:$0xff]
    %v990 = vld [vmem:[%s1 + $0x4a0] sm:$0xff]
    %v991 = vld [vmem:[%s1 + $0x4a8] sm:$0xff]
    %v992 = vld [vmem:[%s1 + $0x4b0] sm:$0xff]
    %v993 = vld [vmem:[%s1 + $0x4b8] sm:$0xff]
    %v994 = vld [vmem:[%s1 + $0x4c0] sm:$0xff]
    %v995 = vld [vmem:[%s1 + $0x4c8] sm:$0xff]
    %v996 = vld [vmem:[%s1 + $0x4d0] sm:$0xff]
    %v997 = vld [vmem:[%s1 + $0x4d8] sm:$0xff]
    %v998 = vld [vmem:[%s1 + $0x4e0] sm:$0xff]
    %v999 = vld [vmem:[%s1 + $0x4e8] sm:$0xff]
    %v1000 = vld [vmem:[%s1 + $0x4f0] sm:$0xff]
    %v1001 = vld [vmem:[%s1 + $0x4f8] sm:$0xff]
    %v1002 = vld [vmem:[%s1 + $0x500] sm:$0xff]
    %v1003 = vld [vmem:[%s1 + $0x508] sm:$0xff]
    %v1004 = vld [vmem:[%s1 + $0x510] sm:$0xff]
    %v1005 = vld [vmem:[%s1 + $0x518] sm:$0xff]
    %v1006 = vld [vmem:[%s1 + $0x520] sm:$0xff]
    %v1007 = vld [vmem:[%s1 + $0x528] sm:$0xff]
    %v1008 = vld [vmem:[%s1 + $0x530] sm:$0xff]
    %v1009 = vld [vmem:[%s1 + $0x538] sm:$0xff]
    %v1010 = vld [vmem:[%s1 + $0x540] sm:$0xff]
    %v1011 = vld [vmem:[%s1 + $0x548] sm:$0xff]
    %v1012 = vld [vmem:[%s1 + $0x550] sm:$0xff]
    %v1013 = vld [vmem:[%s1 + $0x558] sm:$0xff]
    %v1014 = vld [vmem:[%s1 + $0x560] sm:$0xff]
    %v1015 = vld [vmem:[%s1 + $0x568] sm:$0xff]
    %v1016 = vld [vmem:[%s1 + $0x570] sm:$0xff]
    %v1017 = vld [vmem:[%s1 + $0x578] sm:$0xff]
    %v1018 = vld [vmem:[%s1 + $0x580] sm:$0xff]
    %v1019 = vld [vmem:[%s1 + $0x588] sm:$0xff]
    %v1020 = vld [vmem:[%s1 + $0x590] sm:$0xff]
    %v1021 = vld [vmem:[%s1 + $0x598] sm:$0xff]
    %v1022 = vpack.c.bf16 %v844, %v842
    %v1023 = vpack.c.bf16 %v845, %v843
    %v1024 = vpack.c.bf16 %v848, %v846
    %v1025 = vpack.c.bf16 %v849, %v847
    %v1026 = vpack.c.bf16 %v852, %v850
    %v1027 = vpack.c.bf16 %v853, %v851
    %v1028 = vpack.c.bf16 %v856, %v854
    %v1029 = vpack.c.bf16 %v857, %v855
    %v1030 = vpack.c.bf16 %v860, %v858
    %v1031 = vpack.c.bf16 %v861, %v859
    %v1032 = vpack.c.bf16 %v864, %v862
    %v1033 = vpack.c.bf16 %v865, %v863
    %v1034 = vpack.c.bf16 %v868, %v866
    %v1035 = vpack.c.bf16 %v869, %v867
    %v1036 = vpack.c.bf16 %v872, %v870
    %v1037 = vpack.c.bf16 %v873, %v871
    %v1038 = vpack.c.bf16 %v876, %v874
    %v1039 = vpack.c.bf16 %v877, %v875
    %v1040 = vpack.c.bf16 %v880, %v878
    %v1041 = vpack.c.bf16 %v881, %v879
    %v1042 = vpack.c.bf16 %v884, %v882
    %v1043 = vpack.c.bf16 %v885, %v883
    %v1044 = vpack.c.bf16 %v888, %v886
    %v1045 = vpack.c.bf16 %v889, %v887
    %v1046 = vpack.c.bf16 %v892, %v890
    %v1047 = vpack.c.bf16 %v893, %v891
    %v1048 = vpack.c.bf16 %v896, %v894
    %v1049 = vpack.c.bf16 %v897, %v895
    %v1050 = vpack.c.bf16 %v900, %v898
    %v1051 = vpack.c.bf16 %v901, %v899
    %v1052 = vpack.c.bf16 %v904, %v902
    %v1053 = vpack.c.bf16 %v905, %v903
    %v1054 = vpack.c.bf16 %v908, %v906
    %v1055 = vpack.c.bf16 %v909, %v907
    %v1056 = vpack.c.bf16 %v912, %v910
    %v1057 = vpack.c.bf16 %v913, %v911
    %v1058 = vpack.c.bf16 %v916, %v914
    %v1059 = vpack.c.bf16 %v917, %v915
    %v1060 = vpack.c.bf16 %v920, %v918
    %v1061 = vpack.c.bf16 %v921, %v919
    %v1062 = vpack.c.bf16 %v924, %v922
    %v1063 = vpack.c.bf16 %v925, %v923
    %v1064 = vpack.c.bf16 %v928, %v926
    %v1065 = vpack.c.bf16 %v929, %v927
    %v1066 = vpack.c.bf16 %v932, %v930
    %v1067 = vpack.c.bf16 %v933, %v931
    %v1068 = vpack.c.bf16 %v936, %v934
    %v1069 = vpack.c.bf16 %v937, %v935
    %v1070 = vpack.c.bf16 %v940, %v938
    %v1071 = vpack.c.bf16 %v941, %v939
    %v1072 = vpack.c.bf16 %v944, %v942
    %v1073 = vpack.c.bf16 %v945, %v943
    %v1074 = vpack.c.bf16 %v948, %v946
    %v1075 = vpack.c.bf16 %v949, %v947
    %v1076 = vpack.c.bf16 %v952, %v950
    %v1077 = vpack.c.bf16 %v953, %v951
    %v1078 = vpack.c.bf16 %v956, %v954
    %v1079 = vpack.c.bf16 %v957, %v955
    %v1080 = vpack.c.bf16 %v960, %v958
    %v1081 = vpack.c.bf16 %v961, %v959
    %v1082 = vpack.c.bf16 %v964, %v962
    %v1083 = vpack.c.bf16 %v965, %v963
    %v1084 = vpack.c.bf16 %v968, %v966
    %v1085 = vpack.c.bf16 %v969, %v967
    %v1086 = vpack.c.bf16 %v972, %v970
    %v1087 = vpack.c.bf16 %v973, %v971
    %v1088 = vpack.c.bf16 %v976, %v974
    %v1089 = vpack.c.bf16 %v977, %v975
    %v1090 = vpack.c.bf16 %v980, %v978
    %v1091 = vpack.c.bf16 %v981, %v979
    %v1092 = vpack.c.bf16 %v984, %v982
    %v1093 = vpack.c.bf16 %v985, %v983
    %v1094 = vpack.c.bf16 %v988, %v986
    %v1095 = vpack.c.bf16 %v989, %v987
    %v1096 = vpack.c.bf16 %v992, %v990
    %v1097 = vpack.c.bf16 %v993, %v991
    %v1098 = vpack.c.bf16 %v996, %v994
    %v1099 = vpack.c.bf16 %v997, %v995
    %v1100 = vpack.c.bf16 %v1000, %v998
    %v1101 = vpack.c.bf16 %v1001, %v999
    %v1102 = vpack.c.bf16 %v1004, %v1002
    %v1103 = vpack.c.bf16 %v1005, %v1003
    %v1104 = vpack.c.bf16 %v1008, %v1006
    %v1105 = vpack.c.bf16 %v1009, %v1007
    %v1106 = vpack.c.bf16 %v1012, %v1010
    %v1107 = vpack.c.bf16 %v1013, %v1011
    %v1108 = vpack.c.bf16 %v1016, %v1014
    %v1109 = vpack.c.bf16 %v1017, %v1015
    %v1110 = vpack.c.bf16 %v1020, %v1018
    %v1111 = vpack.c.bf16 %v1021, %v1019
    %vm1112 = vcmask 654336
    %v1114 = vsel %vm1112, %v577, 0
    %v1117 = vsel %vm1112, %v583, 0
    %v1120 = vsel %vm1112, %v589, 0
    %v1123 = vsel %vm1112, %v595, 0
    %v1126 = vsel %vm1112, %v601, 0
    %v1129 = vsel %vm1112, %v607, 0
    %v1132 = vsel %vm1112, %v613, 0
    %v1135 = vsel %vm1112, %v619, 0
    %v1138 = vsel %vm1112, %v625, 0
    %v1141 = vsel %vm1112, %v631, 0
    %v1144 = vsel %vm1112, %v637, 0
    %v1147 = vsel %vm1112, %v643, 0
    %v1150 = vsel %vm1112, %v649, 0
    %v1153 = vsel %vm1112, %v655, 0
    %v1156 = vsel %vm1112, %v661, 0
    %v1159 = vsel %vm1112, %v667, 0
    %v1162 = vsel %vm1112, %v673, 0
    %v1165 = vsel %vm1112, %v679, 0
    %v1168 = vsel %vm1112, %v685, 0
    %v1171 = vsel %vm1112, %v691, 0
    %v1174 = vsel %vm1112, %v697, 0
    %v1177 = vsel %vm1112, %v703, 0
    %v1180 = vsel %vm1112, %v709, 0
    %v1183 = vsel %vm1112, %v715, 0
    %v1186 = vsel %vm1112, %v721, 0
    %v1189 = vsel %vm1112, %v727, 0
    %v1192 = vsel %vm1112, %v733, 0
    %v1195 = vsel %vm1112, %v739, 0
    %v1198 = vsel %vm1112, %v745, 0
    %v1201 = vsel %vm1112, %v751, 0
    %v1204 = vsel %vm1112, %v757, 0
    %v1207 = vsel %vm1112, %v763, 0
    %v1210 = vsel %vm1112, %v769, 0
    %v1213 = vsel %vm1112, %v775, 0
    %v1216 = vsel %vm1112, %v781, 0
    %v1219 = vsel %vm1112, %v787, 0
    %v1222 = vsel %vm1112, %v793, 0
    %v1225 = vsel %vm1112, %v799, 0
    %v1228 = vsel %vm1112, %v805, 0
    %v1231 = vsel %vm1112, %v811, 0
    %v1234 = vsel %vm1112, %v817, 0
    %v1237 = vsel %vm1112, %v823, 0
    %v1240 = vsel %vm1112, %v829, 0
    %v1243 = vsel %vm1112, %v835, 0
    %v1246 = vsel %vm1112, %v841, 0
    %1248 = vmatprep.subr.bf16.mxu0 %v1023
    %1249 = vmatpush1.bf16.msra.mxu0 %v1022
    %1250 = vmatprep.subr.bf16.mxu0 %v1025
    %1251 = vmatpush1.bf16.msra.mxu0 %v1024
    %1252 = vmatprep.subr.bf16.mxu0 %v1027
    %1253 = vmatpush1.bf16.msra.mxu0 %v1026
    %1254 = vmatprep.subr.bf16.mxu0 %v1029
    %1255 = vmatpush1.bf16.msra.mxu0 %v1028
    %1256 = vmatprep.subr.bf16.mxu0 %v1031
    %1257 = vmatpush1.bf16.msra.mxu0 %v1030
    %1258 = vmatprep.subr.bf16.mxu0 %v1033
    %1259 = vmatpush1.bf16.msra.mxu0 %v1032
    %1260 = vmatprep.subr.bf16.mxu0 %v1035
    %1261 = vmatpush1.bf16.msra.mxu0 %v1034
    %1262 = vmatprep.subr.bf16.mxu0 %v1037
    %1263 = vmatpush1.bf16.msra.mxu0 %v1036
    %1264 = vmatprep.subr.bf16.mxu0 %v1039
    %1265 = vmatpush1.bf16.msra.mxu0 %v1038
    %1266 = vmatprep.subr.bf16.mxu0 %v1041
    %1267 = vmatpush1.bf16.msra.mxu0 %v1040
    %1268 = vmatprep.subr.bf16.mxu0 %v1043
    %1269 = vmatpush1.bf16.msra.mxu0 %v1042
    %1270 = vmatprep.subr.bf16.mxu0 %v1045
    %1271 = vmatpush1.bf16.msra.mxu0 %v1044
    %1272 = vmatprep.subr.bf16.mxu0 %v1047
    %1273 = vmatpush1.bf16.msra.mxu0 %v1046
    %1274 = vmatprep.subr.bf16.mxu0 %v1049
    %1275 = vmatpush1.bf16.msra.mxu0 %v1048
    %1276 = vmatprep.subr.bf16.mxu0 %v1051
    %1277 = vmatpush1.bf16.msra.mxu0 %v1050
    %1278 = vmatprep.subr.bf16.mxu0 %v1053
    %1279 = vmatpush1.bf16.msra.mxu0 %v1052
    %1280 = vmatprep.mubr.bf16.mxu0 %v573
    %1281 = vmatmul.mubr.bf16.gmra.mrb[0].mxu0 %v572
    %v1282 = vpop.f32.mrb[0].mxu0
    %v1283 = vadd.f32 0.0, %v1282
    %v1284 = vpop.f32.mrb[0].mxu0
    %v1285 = vadd.f32 0.0, %v1284
    %v1286 = vpop.f32.mrb[0].mxu0
    %v1287 = vadd.f32 0.0, %v1286
    %v1288 = vpop.f32.mrb[0].mxu0
    %v1289 = vadd.f32 0.0, %v1288
    %1290 = vmatprep.mubr.bf16.mxu0 %v579
    %1291 = vmatmul.mubr.bf16.gmra.mrb[0].mxu0 %v578
    %v1292 = vpop.f32.mrb[0].mxu0
    %v1293 = vadd.f32 0.0, %v1292
    %v1294 = vpop.f32.mrb[0].mxu0
    %v1295 = vadd.f32 0.0, %v1294
    %v1296 = vpop.f32.mrb[0].mxu0
    %v1297 = vadd.f32 0.0, %v1296
    %v1298 = vpop.f32.mrb[0].mxu0
    %v1299 = vadd.f32 0.0, %v1298
    %1300 = vmatprep.mubr.bf16.mxu0 %v585
    %1301 = vmatmul.mubr.bf16.gmra.mrb[0].mxu0 %v584
    %v1302 = vpop.f32.mrb[0].mxu0
    %v1303 = vadd.f32 0.0, %v1302
    %v1304 = vpop.f32.mrb[0].mxu0
    %v1305 = vadd.f32 0.0, %v1304
    %v1306 = vpop.f32.mrb[0].mxu0
    %v1307 = vadd.f32 0.0, %v1306
    %v1308 = vpop.f32.mrb[0].mxu0
    %v1309 = vadd.f32 0.0, %v1308
    %1310 = vmatprep.mubr.bf16.mxu0 %v591
    %1311 = vmatmul.mubr.bf16.gmra.mrb[0].mxu0 %v590
    %v1312 = vpop.f32.mrb[0].mxu0
    %v1313 = vadd.f32 0.0, %v1312
    %v1314 = vpop.f32.mrb[0].mxu0
    %v1315 = vadd.f32 0.0, %v1314
    %v1316 = vpop.f32.mrb[0].mxu0
    %v1317 = vadd.f32 0.0, %v1316
    %v1318 = vpop.f32.mrb[0].mxu0
    %v1319 = vadd.f32 0.0, %v1318
    %1320 = vmatprep.mubr.bf16.mxu0 %v597
    %1321 = vmatmul.mubr.bf16.gmra.mrb[0].mxu0 %v596
    %v1322 = vpop.f32.mrb[0].mxu0
    %v1323 = vadd.f32 0.0, %v1322
    %v1324 = vpop.f32.mrb[0].mxu0
    %v1325 = vadd.f32 0.0, %v1324
    %v1326 = vpop.f32.mrb[0].mxu0
    %v1327 = vadd.f32 0.0, %v1326
    %v1328 = vpop.f32.mrb[0].mxu0
    %v1329 = vadd.f32 0.0, %v1328
    %1330 = vmatprep.mubr.bf16.mxu0 %v603
    %1331 = vmatmul.mubr.bf16.gmra.mrb[0].mxu0 %v602
    %v1332 = vpop.f32.mrb[0].mxu0
    %v1333 = vadd.f32 0.0, %v1332
    %v1334 = vpop.f32.mrb[0].mxu0
    %v1335 = vadd.f32 0.0, %v1334
    %v1336 = vpop.f32.mrb[0].mxu0
    %v1337 = vadd.f32 0.0, %v1336
    %v1338 = vpop.f32.mrb[0].mxu0
    %v1339 = vadd.f32 0.0, %v1338
    %1340 = vmatprep.mubr.bf16.mxu0 %v609
    %1341 = vmatmul.mubr.bf16.gmra.mrb[0].mxu0 %v608
    %v1342 = vpop.f32.mrb[0].mxu0
    %v1343 = vadd.f32 0.0, %v1342
    %v1344 = vpop.f32.mrb[0].mxu0
    %v1345 = vadd.f32 0.0, %v1344
    %v1346 = vpop.f32.mrb[0].mxu0
    %v1347 = vadd.f32 0.0, %v1346
    %v1348 = vpop.f32.mrb[0].mxu0
    %v1349 = vadd.f32 0.0, %v1348
    %1350 = vmatprep.mubr.bf16.mxu0 %v615
    %1351 = vmatmul.mubr.bf16.gmra.mrb[0].mxu0 %v614
    %v1352 = vpop.f32.mrb[0].mxu0
    %v1353 = vadd.f32 0.0, %v1352
    %v1354 = vpop.f32.mrb[0].mxu0
    %v1355 = vadd.f32 0.0, %v1354
    %v1356 = vpop.f32.mrb[0].mxu0
    %v1357 = vadd.f32 0.0, %v1356
    %v1358 = vpop.f32.mrb[0].mxu0
    %v1359 = vadd.f32 0.0, %v1358
    %1360 = vmatprep.mubr.bf16.mxu0 %v621
    %1361 = vmatmul.mubr.bf16.gmra.mrb[0].mxu0 %v620
    %v1362 = vpop.f32.mrb[0].mxu0
    %v1363 = vadd.f32 0.0, %v1362
    %v1364 = vpop.f32.mrb[0].mxu0
    %v1365 = vadd.f32 0.0, %v1364
    %v1366 = vpop.f32.mrb[0].mxu0
    %v1367 = vadd.f32 0.0, %v1366
    %v1368 = vpop.f32.mrb[0].mxu0
    %v1369 = vadd.f32 0.0, %v1368
    %1370 = vmatprep.mubr.bf16.mxu0 %v627
    %1371 = vmatmul.mubr.bf16.gmra.mrb[0].mxu0 %v626
    %v1372 = vpop.f32.mrb[0].mxu0
    %v1373 = vadd.f32 0.0, %v1372
    %v1374 = vpop.f32.mrb[0].mxu0
    %v1375 = vadd.f32 0.0, %v1374
    %v1376 = vpop.f32.mrb[0].mxu0
    %v1377 = vadd.f32 0.0, %v1376
    %v1378 = vpop.f32.mrb[0].mxu0
    %v1379 = vadd.f32 0.0, %v1378
    %1380 = vmatprep.mubr.bf16.mxu0 %v633
    %1381 = vmatmul.mubr.bf16.gmra.mrb[0].mxu0 %v632
    %v1382 = vpop.f32.mrb[0].mxu0
    %v1383 = vadd.f32 0.0, %v1382
    %v1384 = vpop.f32.mrb[0].mxu0
    %v1385 = vadd.f32 0.0, %v1384
    %v1386 = vpop.f32.mrb[0].mxu0
    %v1387 = vadd.f32 0.0, %v1386
    %v1388 = vpop.f32.mrb[0].mxu0
    %v1389 = vadd.f32 0.0, %v1388
    %1390 = vmatprep.mubr.bf16.mxu0 %v639
    %1391 = vmatmul.mubr.bf16.gmra.mrb[0].mxu0 %v638
    %v1392 = vpop.f32.mrb[0].mxu0
    %v1393 = vadd.f32 0.0, %v1392
    %v1394 = vpop.f32.mrb[0].mxu0
    %v1395 = vadd.f32 0.0, %v1394
    %v1396 = vpop.f32.mrb[0].mxu0
    %v1397 = vadd.f32 0.0, %v1396
    %v1398 = vpop.f32.mrb[0].mxu0
    %v1399 = vadd.f32 0.0, %v1398
    %1400 = vmatprep.mubr.bf16.mxu0 %v645
    %1401 = vmatmul.mubr.bf16.gmra.mrb[0].mxu0 %v644
    %v1402 = vpop.f32.mrb[0].mxu0
    %v1403 = vadd.f32 0.0, %v1402
    %v1404 = vpop.f32.mrb[0].mxu0
    %v1405 = vadd.f32 0.0, %v1404
    %v1406 = vpop.f32.mrb[0].mxu0
    %v1407 = vadd.f32 0.0, %v1406
    %v1408 = vpop.f32.mrb[0].mxu0
    %v1409 = vadd.f32 0.0, %v1408
    %1410 = vmatprep.mubr.bf16.mxu0 %v651
    %1411 = vmatmul.mubr.bf16.gmra.mrb[0].mxu0 %v650
    %v1412 = vpop.f32.mrb[0].mxu0
    %v1413 = vadd.f32 0.0, %v1412
    %v1414 = vpop.f32.mrb[0].mxu0
    %v1415 = vadd.f32 0.0, %v1414
    %v1416 = vpop.f32.mrb[0].mxu0
    %v1417 = vadd.f32 0.0, %v1416
    %v1418 = vpop.f32.mrb[0].mxu0
    %v1419 = vadd.f32 0.0, %v1418
    %1420 = vmatprep.mubr.bf16.mxu0 %v657
    %1421 = vmatmul.mubr.bf16.gmra.mrb[0].mxu0 %v656
    %v1422 = vpop.f32.mrb[0].mxu0
    %v1423 = vadd.f32 0.0, %v1422
    %v1424 = vpop.f32.mrb[0].mxu0
    %v1425 = vadd.f32 0.0, %v1424
    %v1426 = vpop.f32.mrb[0].mxu0
    %v1427 = vadd.f32 0.0, %v1426
    %v1428 = vpop.f32.mrb[0].mxu0
    %v1429 = vadd.f32 0.0, %v1428
    %1430 = vmatprep.mubr.bf16.mxu0 %v663
    %1431 = vmatmul.mubr.bf16.gmra.mrb[0].mxu0 %v662
    %v1432 = vpop.f32.mrb[0].mxu0
    %v1433 = vadd.f32 0.0, %v1432
    %v1434 = vpop.f32.mrb[0].mxu0
    %v1435 = vadd.f32 0.0, %v1434
    %v1436 = vpop.f32.mrb[0].mxu0
    %v1437 = vadd.f32 0.0, %v1436
    %v1438 = vpop.f32.mrb[0].mxu0
    %v1439 = vadd.f32 0.0, %v1438
    %1440 = vmatprep.mubr.bf16.mxu0 %v669
    %1441 = vmatmul.mubr.bf16.gmra.mrb[0].mxu0 %v668
    %v1442 = vpop.f32.mrb[0].mxu0
    %v1443 = vadd.f32 0.0, %v1442
    %v1444 = vpop.f32.mrb[0].mxu0
    %v1445 = vadd.f32 0.0, %v1444
    %v1446 = vpop.f32.mrb[0].mxu0
    %v1447 = vadd.f32 0.0, %v1446
    %v1448 = vpop.f32.mrb[0].mxu0
    %v1449 = vadd.f32 0.0, %v1448
    %1450 = vmatprep.mubr.bf16.mxu0 %v675
    %1451 = vmatmul.mubr.bf16.gmra.mrb[0].mxu0 %v674
    %v1452 = vpop.f32.mrb[0].mxu0
    %v1453 = vadd.f32 0.0, %v1452
    %v1454 = vpop.f32.mrb[0].mxu0
    %v1455 = vadd.f32 0.0, %v1454
    %v1456 = vpop.f32.mrb[0].mxu0
    %v1457 = vadd.f32 0.0, %v1456
    %v1458 = vpop.f32.mrb[0].mxu0
    %v1459 = vadd.f32 0.0, %v1458
    %1460 = vmatprep.mubr.bf16.mxu0 %v681
    %1461 = vmatmul.mubr.bf16.gmra.mrb[0].mxu0 %v680
    %v1462 = vpop.f32.mrb[0].mxu0
    %v1463 = vadd.f32 0.0, %v1462
    %v1464 = vpop.f32.mrb[0].mxu0
    %v1465 = vadd.f32 0.0, %v1464
    %v1466 = vpop.f32.mrb[0].mxu0
    %v1467 = vadd.f32 0.0, %v1466
    %v1468 = vpop.f32.mrb[0].mxu0
    %v1469 = vadd.f32 0.0, %v1468
    %1470 = vmatprep.mubr.bf16.mxu0 %v687
    %1471 = vmatmul.mubr.bf16.gmra.mrb[0].mxu0 %v686
    %v1472 = vpop.f32.mrb[0].mxu0
    %v1473 = vadd.f32 0.0, %v1472
    %v1474 = vpop.f32.mrb[0].mxu0
    %v1475 = vadd.f32 0.0, %v1474
    %v1476 = vpop.f32.mrb[0].mxu0
    %v1477 = vadd.f32 0.0, %v1476
    %v1478 = vpop.f32.mrb[0].mxu0
    %v1479 = vadd.f32 0.0, %v1478
    %1480 = vmatprep.mubr.bf16.mxu0 %v693
    %1481 = vmatmul.mubr.bf16.gmra.mrb[0].mxu0 %v692
    %v1482 = vpop.f32.mrb[0].mxu0
    %v1483 = vadd.f32 0.0, %v1482
    %v1484 = vpop.f32.mrb[0].mxu0
    %v1485 = vadd.f32 0.0, %v1484
    %v1486 = vpop.f32.mrb[0].mxu0
    %v1487 = vadd.f32 0.0, %v1486
    %v1488 = vpop.f32.mrb[0].mxu0
    %v1489 = vadd.f32 0.0, %v1488
    %1490 = vmatprep.mubr.bf16.mxu0 %v699
    %1491 = vmatmul.mubr.bf16.gmra.mrb[0].mxu0 %v698
    %v1492 = vpop.f32.mrb[0].mxu0
    %v1493 = vadd.f32 0.0, %v1492
    %v1494 = vpop.f32.mrb[0].mxu0
    %v1495 = vadd.f32 0.0, %v1494
    %v1496 = vpop.f32.mrb[0].mxu0
    %v1497 = vadd.f32 0.0, %v1496
    %v1498 = vpop.f32.mrb[0].mxu0
    %v1499 = vadd.f32 0.0, %v1498
    %1500 = vmatprep.mubr.bf16.mxu0 %v705
    %1501 = vmatmul.mubr.bf16.gmra.mrb[0].mxu0 %v704
    %v1502 = vpop.f32.mrb[0].mxu0
    %v1503 = vadd.f32 0.0, %v1502
    %v1504 = vpop.f32.mrb[0].mxu0
    %v1505 = vadd.f32 0.0, %v1504
    %v1506 = vpop.f32.mrb[0].mxu0
    %v1507 = vadd.f32 0.0, %v1506
    %v1508 = vpop.f32.mrb[0].mxu0
    %v1509 = vadd.f32 0.0, %v1508
    %1510 = vmatprep.mubr.bf16.mxu0 %v711
    %1511 = vmatmul.mubr.bf16.gmra.mrb[0].mxu0 %v710
    %v1512 = vpop.f32.mrb[0].mxu0
    %v1513 = vadd.f32 0.0, %v1512
    %v1514 = vpop.f32.mrb[0].mxu0
    %v1515 = vadd.f32 0.0, %v1514
    %v1516 = vpop.f32.mrb[0].mxu0
    %v1517 = vadd.f32 0.0, %v1516
    %v1518 = vpop.f32.mrb[0].mxu0
    %v1519 = vadd.f32 0.0, %v1518
    %1520 = vmatprep.mubr.bf16.mxu0 %v717
    %1521 = vmatmul.mubr.bf16.gmra.mrb[0].mxu0 %v716
    %v1522 = vpop.f32.mrb[0].mxu0
    %v1523 = vadd.f32 0.0, %v1522
    %v1524 = vpop.f32.mrb[0].mxu0
    %v1525 = vadd.f32 0.0, %v1524
    %v1526 = vpop.f32.mrb[0].mxu0
    %v1527 = vadd.f32 0.0, %v1526
    %v1528 = vpop.f32.mrb[0].mxu0
    %v1529 = vadd.f32 0.0, %v1528
    %1530 = vmatprep.mubr.bf16.mxu0 %v723
    %1531 = vmatmul.mubr.bf16.gmra.mrb[0].mxu0 %v722
    %v1532 = vpop.f32.mrb[0].mxu0
    %v1533 = vadd.f32 0.0, %v1532
    %v1534 = vpop.f32.mrb[0].mxu0
    %v1535 = vadd.f32 0.0, %v1534
    %v1536 = vpop.f32.mrb[0].mxu0
    %v1537 = vadd.f32 0.0, %v1536
    %v1538 = vpop.f32.mrb[0].mxu0
    %v1539 = vadd.f32 0.0, %v1538
    %1540 = vmatprep.mubr.bf16.mxu0 %v729
    %1541 = vmatmul.mubr.bf16.gmra.mrb[0].mxu0 %v728
    %v1542 = vpop.f32.mrb[0].mxu0
    %v1543 = vadd.f32 0.0, %v1542
    %v1544 = vpop.f32.mrb[0].mxu0
    %v1545 = vadd.f32 0.0, %v1544
    %v1546 = vpop.f32.mrb[0].mxu0
    %v1547 = vadd.f32 0.0, %v1546
    %v1548 = vpop.f32.mrb[0].mxu0
    %v1549 = vadd.f32 0.0, %v1548
    %1550 = vmatprep.mubr.bf16.mxu0 %v735
    %1551 = vmatmul.mubr.bf16.gmra.mrb[0].mxu0 %v734
    %v1552 = vpop.f32.mrb[0].mxu0
    %v1553 = vadd.f32 0.0, %v1552
    %v1554 = vpop.f32.mrb[0].mxu0
    %v1555 = vadd.f32 0.0, %v1554
    %v1556 = vpop.f32.mrb[0].mxu0
    %v1557 = vadd.f32 0.0, %v1556
    %v1558 = vpop.f32.mrb[0].mxu0
    %v1559 = vadd.f32 0.0, %v1558
    %1560 = vmatprep.mubr.bf16.mxu0 %v741
    %1561 = vmatmul.mubr.bf16.gmra.mrb[0].mxu0 %v740
    %v1562 = vpop.f32.mrb[0].mxu0
    %v1563 = vadd.f32 0.0, %v1562
    %v1564 = vpop.f32.mrb[0].mxu0
    %v1565 = vadd.f32 0.0, %v1564
    %v1566 = vpop.f32.mrb[0].mxu0
    %v1567 = vadd.f32 0.0, %v1566
    %v1568 = vpop.f32.mrb[0].mxu0
    %v1569 = vadd.f32 0.0, %v1568
    %1570 = vmatprep.mubr.bf16.mxu0 %v747
    %1571 = vmatmul.mubr.bf16.gmra.mrb[0].mxu0 %v746
    %v1572 = vpop.f32.mrb[0].mxu0
    %v1573 = vadd.f32 0.0, %v1572
    %v1574 = vpop.f32.mrb[0].mxu0
    %v1575 = vadd.f32 0.0, %v1574
    %v1576 = vpop.f32.mrb[0].mxu0
    %v1577 = vadd.f32 0.0, %v1576
    %v1578 = vpop.f32.mrb[0].mxu0
    %v1579 = vadd.f32 0.0, %v1578
    %1580 = vmatprep.mubr.bf16.mxu0 %v753
    %1581 = vmatmul.mubr.bf16.gmra.mrb[0].mxu0 %v752
    %v1582 = vpop.f32.mrb[0].mxu0
    %v1583 = vadd.f32 0.0, %v1582
    %v1584 = vpop.f32.mrb[0].mxu0
    %v1585 = vadd.f32 0.0, %v1584
    %v1586 = vpop.f32.mrb[0].mxu0
    %v1587 = vadd.f32 0.0, %v1586
    %v1588 = vpop.f32.mrb[0].mxu0
    %v1589 = vadd.f32 0.0, %v1588
    %1590 = vmatprep.mubr.bf16.mxu0 %v759
    %1591 = vmatmul.mubr.bf16.gmra.mrb[0].mxu0 %v758
    %v1592 = vpop.f32.mrb[0].mxu0
    %v1593 = vadd.f32 0.0, %v1592
    %v1594 = vpop.f32.mrb[0].mxu0
    %v1595 = vadd.f32 0.0, %v1594
    %v1596 = vpop.f32.mrb[0].mxu0
    %v1597 = vadd.f32 0.0, %v1596
    %v1598 = vpop.f32.mrb[0].mxu0
    %v1599 = vadd.f32 0.0, %v1598
    %1600 = vmatprep.mubr.bf16.mxu0 %v765
    %1601 = vmatmul.mubr.bf16.gmra.mrb[0].mxu0 %v764
    %v1602 = vpop.f32.mrb[0].mxu0
    %v1603 = vadd.f32 0.0, %v1602
    %v1604 = vpop.f32.mrb[0].mxu0
    %v1605 = vadd.f32 0.0, %v1604
    %v1606 = vpop.f32.mrb[0].mxu0
    %v1607 = vadd.f32 0.0, %v1606
    %v1608 = vpop.f32.mrb[0].mxu0
    %v1609 = vadd.f32 0.0, %v1608
    %1610 = vmatprep.mubr.bf16.mxu0 %v771
    %1611 = vmatmul.mubr.bf16.gmra.mrb[0].mxu0 %v770
    %v1612 = vpop.f32.mrb[0].mxu0
    %v1613 = vadd.f32 0.0, %v1612
    %v1614 = vpop.f32.mrb[0].mxu0
    %v1615 = vadd.f32 0.0, %v1614
    %v1616 = vpop.f32.mrb[0].mxu0
    %v1617 = vadd.f32 0.0, %v1616
    %v1618 = vpop.f32.mrb[0].mxu0
    %v1619 = vadd.f32 0.0, %v1618
    %1620 = vmatprep.mubr.bf16.mxu0 %v777
    %1621 = vmatmul.mubr.bf16.gmra.mrb[0].mxu0 %v776
    %v1622 = vpop.f32.mrb[0].mxu0
    %v1623 = vadd.f32 0.0, %v1622
    %v1624 = vpop.f32.mrb[0].mxu0
    %v1625 = vadd.f32 0.0, %v1624
    %v1626 = vpop.f32.mrb[0].mxu0
    %v1627 = vadd.f32 0.0, %v1626
    %v1628 = vpop.f32.mrb[0].mxu0
    %v1629 = vadd.f32 0.0, %v1628
    %1630 = vmatprep.mubr.bf16.mxu0 %v783
    %1631 = vmatmul.mubr.bf16.gmra.mrb[0].mxu0 %v782
    %v1632 = vpop.f32.mrb[0].mxu0
    %v1633 = vadd.f32 0.0, %v1632
    %v1634 = vpop.f32.mrb[0].mxu0
    %v1635 = vadd.f32 0.0, %v1634
    %v1636 = vpop.f32.mrb[0].mxu0
    %v1637 = vadd.f32 0.0, %v1636
    %v1638 = vpop.f32.mrb[0].mxu0
    %v1639 = vadd.f32 0.0, %v1638
    %1640 = vmatprep.mubr.bf16.mxu0 %v789
    %1641 = vmatmul.mubr.bf16.gmra.mrb[0].mxu0 %v788
    %v1642 = vpop.f32.mrb[0].mxu0
    %v1643 = vadd.f32 0.0, %v1642
    %v1644 = vpop.f32.mrb[0].mxu0
    %v1645 = vadd.f32 0.0, %v1644
    %v1646 = vpop.f32.mrb[0].mxu0
    %v1647 = vadd.f32 0.0, %v1646
    %v1648 = vpop.f32.mrb[0].mxu0
    %v1649 = vadd.f32 0.0, %v1648
    %1650 = vmatprep.mubr.bf16.mxu0 %v795
    %1651 = vmatmul.mubr.bf16.gmra.mrb[0].mxu0 %v794
    %v1652 = vpop.f32.mrb[0].mxu0
    %v1653 = vadd.f32 0.0, %v1652
    %v1654 = vpop.f32.mrb[0].mxu0
    %v1655 = vadd.f32 0.0, %v1654
    %v1656 = vpop.f32.mrb[0].mxu0
    %v1657 = vadd.f32 0.0, %v1656
    %v1658 = vpop.f32.mrb[0].mxu0
    %v1659 = vadd.f32 0.0, %v1658
    %1660 = vmatprep.mubr.bf16.mxu0 %v801
    %1661 = vmatmul.mubr.bf16.gmra.mrb[0].mxu0 %v800
    %v1662 = vpop.f32.mrb[0].mxu0
    %v1663 = vadd.f32 0.0, %v1662
    %v1664 = vpop.f32.mrb[0].mxu0
    %v1665 = vadd.f32 0.0, %v1664
    %v1666 = vpop.f32.mrb[0].mxu0
    %v1667 = vadd.f32 0.0, %v1666
    %v1668 = vpop.f32.mrb[0].mxu0
    %v1669 = vadd.f32 0.0, %v1668
    %1670 = vmatprep.mubr.bf16.mxu0 %v807
    %1671 = vmatmul.mubr.bf16.gmra.mrb[0].mxu0 %v806
    %v1672 = vpop.f32.mrb[0].mxu0
    %v1673 = vadd.f32 0.0, %v1672
    %v1674 = vpop.f32.mrb[0].mxu0
    %v1675 = vadd.f32 0.0, %v1674
    %v1676 = vpop.f32.mrb[0].mxu0
    %v1677 = vadd.f32 0.0, %v1676
    %v1678 = vpop.f32.mrb[0].mxu0
    %v1679 = vadd.f32 0.0, %v1678
    %1680 = vmatprep.mubr.bf16.mxu0 %v813
    %1681 = vmatmul.mubr.bf16.gmra.mrb[0].mxu0 %v812
    %v1682 = vpop.f32.mrb[0].mxu0
    %v1683 = vadd.f32 0.0, %v1682
    %v1684 = vpop.f32.mrb[0].mxu0
    %v1685 = vadd.f32 0.0, %v1684
    %v1686 = vpop.f32.mrb[0].mxu0
    %v1687 = vadd.f32 0.0, %v1686
    %v1688 = vpop.f32.mrb[0].mxu0
    %v1689 = vadd.f32 0.0, %v1688
    %1690 = vmatprep.mubr.bf16.mxu0 %v819
    %1691 = vmatmul.mubr.bf16.gmra.mrb[0].mxu0 %v818
    %v1692 = vpop.f32.mrb[0].mxu0
    %v1693 = vadd.f32 0.0, %v1692
    %v1694 = vpop.f32.mrb[0].mxu0
    %v1695 = vadd.f32 0.0, %v1694
    %v1696 = vpop.f32.mrb[0].mxu0
    %v1697 = vadd.f32 0.0, %v1696
    %v1698 = vpop.f32.mrb[0].mxu0
    %v1699 = vadd.f32 0.0, %v1698
    %1700 = vmatprep.mubr.bf16.mxu0 %v825
    %1701 = vmatmul.mubr.bf16.gmra.mrb[0].mxu0 %v824
    %v1702 = vpop.f32.mrb[0].mxu0
    %v1703 = vadd.f32 0.0, %v1702
    %v1704 = vpop.f32.mrb[0].mxu0
    %v1705 = vadd.f32 0.0, %v1704
    %v1706 = vpop.f32.mrb[0].mxu0
    %v1707 = vadd.f32 0.0, %v1706
    %v1708 = vpop.f32.mrb[0].mxu0
    %v1709 = vadd.f32 0.0, %v1708
    %1710 = vmatprep.mubr.bf16.mxu0 %v831
    %1711 = vmatmul.mubr.bf16.gmra.mrb[0].mxu0 %v830
    %v1712 = vpop.f32.mrb[0].mxu0
    %v1713 = vadd.f32 0.0, %v1712
    %v1714 = vpop.f32.mrb[0].mxu0
    %v1715 = vadd.f32 0.0, %v1714
    %v1716 = vpop.f32.mrb[0].mxu0
    %v1717 = vadd.f32 0.0, %v1716
    %v1718 = vpop.f32.mrb[0].mxu0
    %v1719 = vadd.f32 0.0, %v1718
    %1720 = vmatprep.mubr.bf16.mxu0 %v837
    %1721 = vmatmul.mubr.bf16.gmra.mrb[0].mxu0 %v836
    %v1722 = vpop.f32.mrb[0].mxu0
    %v1723 = vadd.f32 0.0, %v1722
    %v1724 = vpop.f32.mrb[0].mxu0
    %v1725 = vadd.f32 0.0, %v1724
    %v1726 = vpop.f32.mrb[0].mxu0
    %v1727 = vadd.f32 0.0, %v1726
    %v1728 = vpop.f32.mrb[0].mxu0
    %v1729 = vadd.f32 0.0, %v1728
    %1730 = vdwg.mxu0
    %1731 = vmatprep.subr.bf16.mxu0 %v1055
    %1732 = vmatpush1.bf16.msra.mxu0 %v1054
    %1733 = vmatprep.subr.bf16.mxu0 %v1057
    %1734 = vmatpush1.bf16.msra.mxu0 %v1056
    %1735 = vmatprep.subr.bf16.mxu0 %v1059
    %1736 = vmatpush1.bf16.msra.mxu0 %v1058
    %1737 = vmatprep.subr.bf16.mxu0 %v1061
    %1738 = vmatpush1.bf16.msra.mxu0 %v1060
    %1739 = vmatprep.subr.bf16.mxu0 %v1063
    %1740 = vmatpush1.bf16.msra.mxu0 %v1062
    %1741 = vmatprep.subr.bf16.mxu0 %v1065
    %1742 = vmatpush1.bf16.msra.mxu0 %v1064
    %1743 = vmatprep.subr.bf16.mxu0 %v1067
    %1744 = vmatpush1.bf16.msra.mxu0 %v1066
    %1745 = vmatprep.subr.bf16.mxu0 %v1069
    %1746 = vmatpush1.bf16.msra.mxu0 %v1068
    %1747 = vmatprep.subr.bf16.mxu0 %v1071
    %1748 = vmatpush1.bf16.msra.mxu0 %v1070
    %1749 = vmatprep.subr.bf16.mxu0 %v1073
    %1750 = vmatpush1.bf16.msra.mxu0 %v1072
    %1751 = vmatprep.subr.bf16.mxu0 %v1075
    %1752 = vmatpush1.bf16.msra.mxu0 %v1074
    %1753 = vmatprep.subr.bf16.mxu0 %v1077
    %1754 = vmatpush1.bf16.msra.mxu0 %v1076
    %1755 = vmatprep.subr.bf16.mxu0 %v1079
    %1756 = vmatpush1.bf16.msra.mxu0 %v1078
    %1757 = vmatprep.subr.bf16.mxu0 %v1081
    %1758 = vmatpush1.bf16.msra.mxu0 %v1080
    %1759 = vmatprep.subr.bf16.mxu0 %v1083
    %1760 = vmatpush1.bf16.msra.mxu0 %v1082
    %1761 = vmatprep.subr.bf16.mxu0 %v1085
    %1762 = vmatpush1.bf16.msra.mxu0 %v1084
    %1763 = vmatprep.mubr.bf16.mxu0 %v575
    %1764 = vmatmul.mubr.bf16.gmra.mrb[0].mxu0 %v574
    %v1765 = vpop.f32.mrb[0].mxu0
    %v1766 = vadd.f32 %v1283, %v1765
    %v1767 = vpop.f32.mrb[0].mxu0
    %v1768 = vadd.f32 %v1285, %v1767
    %v1769 = vpop.f32.mrb[0].mxu0
    %v1770 = vadd.f32 %v1287, %v1769
    %v1771 = vpop.f32.mrb[0].mxu0
    %v1772 = vadd.f32 %v1289, %v1771
    %1773 = vmatprep.mubr.bf16.mxu0 %v581
    %1774 = vmatmul.mubr.bf16.gmra.mrb[0].mxu0 %v580
    %v1775 = vpop.f32.mrb[0].mxu0
    %v1776 = vadd.f32 %v1293, %v1775
    %v1777 = vpop.f32.mrb[0].mxu0
    %v1778 = vadd.f32 %v1295, %v1777
    %v1779 = vpop.f32.mrb[0].mxu0
    %v1780 = vadd.f32 %v1297, %v1779
    %v1781 = vpop.f32.mrb[0].mxu0
    %v1782 = vadd.f32 %v1299, %v1781
    %1783 = vmatprep.mubr.bf16.mxu0 %v587
    %1784 = vmatmul.mubr.bf16.gmra.mrb[0].mxu0 %v586
    %v1785 = vpop.f32.mrb[0].mxu0
    %v1786 = vadd.f32 %v1303, %v1785
    %v1787 = vpop.f32.mrb[0].mxu0
    %v1788 = vadd.f32 %v1305, %v1787
    %v1789 = vpop.f32.mrb[0].mxu0
    %v1790 = vadd.f32 %v1307, %v1789
    %v1791 = vpop.f32.mrb[0].mxu0
    %v1792 = vadd.f32 %v1309, %v1791
    %1793 = vmatprep.mubr.bf16.mxu0 %v593
    %1794 = vmatmul.mubr.bf16.gmra.mrb[0].mxu0 %v592
    %v1795 = vpop.f32.mrb[0].mxu0
    %v1796 = vadd.f32 %v1313, %v1795
    %v1797 = vpop.f32.mrb[0].mxu0
    %v1798 = vadd.f32 %v1315, %v1797
    %v1799 = vpop.f32.mrb[0].mxu0
    %v1800 = vadd.f32 %v1317, %v1799
    %v1801 = vpop.f32.mrb[0].mxu0
    %v1802 = vadd.f32 %v1319, %v1801
    %1803 = vmatprep.mubr.bf16.mxu0 %v599
    %1804 = vmatmul.mubr.bf16.gmra.mrb[0].mxu0 %v598
    %v1805 = vpop.f32.mrb[0].mxu0
    %v1806 = vadd.f32 %v1323, %v1805
    %v1807 = vpop.f32.mrb[0].mxu0
    %v1808 = vadd.f32 %v1325, %v1807
    %v1809 = vpop.f32.mrb[0].mxu0
    %v1810 = vadd.f32 %v1327, %v1809
    %v1811 = vpop.f32.mrb[0].mxu0
    %v1812 = vadd.f32 %v1329, %v1811
    %1813 = vmatprep.mubr.bf16.mxu0 %v605
    %1814 = vmatmul.mubr.bf16.gmra.mrb[0].mxu0 %v604
    %v1815 = vpop.f32.mrb[0].mxu0
    %v1816 = vadd.f32 %v1333, %v1815
    %v1817 = vpop.f32.mrb[0].mxu0
    %v1818 = vadd.f32 %v1335, %v1817
    %v1819 = vpop.f32.mrb[0].mxu0
    %v1820 = vadd.f32 %v1337, %v1819
    %v1821 = vpop.f32.mrb[0].mxu0
    %v1822 = vadd.f32 %v1339, %v1821
    %1823 = vmatprep.mubr.bf16.mxu0 %v611
    %1824 = vmatmul.mubr.bf16.gmra.mrb[0].mxu0 %v610
    %v1825 = vpop.f32.mrb[0].mxu0
    %v1826 = vadd.f32 %v1343, %v1825
    %v1827 = vpop.f32.mrb[0].mxu0
    %v1828 = vadd.f32 %v1345, %v1827
    %v1829 = vpop.f32.mrb[0].mxu0
    %v1830 = vadd.f32 %v1347, %v1829
    %v1831 = vpop.f32.mrb[0].mxu0
    %v1832 = vadd.f32 %v1349, %v1831
    %1833 = vmatprep.mubr.bf16.mxu0 %v617
    %1834 = vmatmul.mubr.bf16.gmra.mrb[0].mxu0 %v616
    %v1835 = vpop.f32.mrb[0].mxu0
    %v1836 = vadd.f32 %v1353, %v1835
    %v1837 = vpop.f32.mrb[0].mxu0
    %v1838 = vadd.f32 %v1355, %v1837
    %v1839 = vpop.f32.mrb[0].mxu0
    %v1840 = vadd.f32 %v1357, %v1839
    %v1841 = vpop.f32.mrb[0].mxu0
    %v1842 = vadd.f32 %v1359, %v1841
    %1843 = vmatprep.mubr.bf16.mxu0 %v623
    %1844 = vmatmul.mubr.bf16.gmra.mrb[0].mxu0 %v622
    %v1845 = vpop.f32.mrb[0].mxu0
    %v1846 = vadd.f32 %v1363, %v1845
    %v1847 = vpop.f32.mrb[0].mxu0
    %v1848 = vadd.f32 %v1365, %v1847
    %v1849 = vpop.f32.mrb[0].mxu0
    %v1850 = vadd.f32 %v1367, %v1849
    %v1851 = vpop.f32.mrb[0].mxu0
    %v1852 = vadd.f32 %v1369, %v1851
    %1853 = vmatprep.mubr.bf16.mxu0 %v629
    %1854 = vmatmul.mubr.bf16.gmra.mrb[0].mxu0 %v628
    %v1855 = vpop.f32.mrb[0].mxu0
    %v1856 = vadd.f32 %v1373, %v1855
    %v1857 = vpop.f32.mrb[0].mxu0
    %v1858 = vadd.f32 %v1375, %v1857
    %v1859 = vpop.f32.mrb[0].mxu0
    %v1860 = vadd.f32 %v1377, %v1859
    %v1861 = vpop.f32.mrb[0].mxu0
    %v1862 = vadd.f32 %v1379, %v1861
    %1863 = vmatprep.mubr.bf16.mxu0 %v635
    %1864 = vmatmul.mubr.bf16.gmra.mrb[0].mxu0 %v634
    %v1865 = vpop.f32.mrb[0].mxu0
    %v1866 = vadd.f32 %v1383, %v1865
    %v1867 = vpop.f32.mrb[0].mxu0
    %v1868 = vadd.f32 %v1385, %v1867
    %v1869 = vpop.f32.mrb[0].mxu0
    %v1870 = vadd.f32 %v1387, %v1869
    %v1871 = vpop.f32.mrb[0].mxu0
    %v1872 = vadd.f32 %v1389, %v1871
    %1873 = vmatprep.mubr.bf16.mxu0 %v641
    %1874 = vmatmul.mubr.bf16.gmra.mrb[0].mxu0 %v640
    %v1875 = vpop.f32.mrb[0].mxu0
    %v1876 = vadd.f32 %v1393, %v1875
    %v1877 = vpop.f32.mrb[0].mxu0
    %v1878 = vadd.f32 %v1395, %v1877
    %v1879 = vpop.f32.mrb[0].mxu0
    %v1880 = vadd.f32 %v1397, %v1879
    %v1881 = vpop.f32.mrb[0].mxu0
    %v1882 = vadd.f32 %v1399, %v1881
    %1883 = vmatprep.mubr.bf16.mxu0 %v647
    %1884 = vmatmul.mubr.bf16.gmra.mrb[0].mxu0 %v646
    %v1885 = vpop.f32.mrb[0].mxu0
    %v1886 = vadd.f32 %v1403, %v1885
    %v1887 = vpop.f32.mrb[0].mxu0
    %v1888 = vadd.f32 %v1405, %v1887
    %v1889 = vpop.f32.mrb[0].mxu0
    %v1890 = vadd.f32 %v1407, %v1889
    %v1891 = vpop.f32.mrb[0].mxu0
    %v1892 = vadd.f32 %v1409, %v1891
    %1893 = vmatprep.mubr.bf16.mxu0 %v653
    %1894 = vmatmul.mubr.bf16.gmra.mrb[0].mxu0 %v652
    %v1895 = vpop.f32.mrb[0].mxu0
    %v1896 = vadd.f32 %v1413, %v1895
    %v1897 = vpop.f32.mrb[0].mxu0
    %v1898 = vadd.f32 %v1415, %v1897
    %v1899 = vpop.f32.mrb[0].mxu0
    %v1900 = vadd.f32 %v1417, %v1899
    %v1901 = vpop.f32.mrb[0].mxu0
    %v1902 = vadd.f32 %v1419, %v1901
    %1903 = vmatprep.mubr.bf16.mxu0 %v659
    %1904 = vmatmul.mubr.bf16.gmra.mrb[0].mxu0 %v658
    %v1905 = vpop.f32.mrb[0].mxu0
    %v1906 = vadd.f32 %v1423, %v1905
    %v1907 = vpop.f32.mrb[0].mxu0
    %v1908 = vadd.f32 %v1425, %v1907
    %v1909 = vpop.f32.mrb[0].mxu0
    %v1910 = vadd.f32 %v1427, %v1909
    %v1911 = vpop.f32.mrb[0].mxu0
    %v1912 = vadd.f32 %v1429, %v1911
    %1913 = vmatprep.mubr.bf16.mxu0 %v665
    %1914 = vmatmul.mubr.bf16.gmra.mrb[0].mxu0 %v664
    %v1915 = vpop.f32.mrb[0].mxu0
    %v1916 = vadd.f32 %v1433, %v1915
    %v1917 = vpop.f32.mrb[0].mxu0
    %v1918 = vadd.f32 %v1435, %v1917
    %v1919 = vpop.f32.mrb[0].mxu0
    %v1920 = vadd.f32 %v1437, %v1919
    %v1921 = vpop.f32.mrb[0].mxu0
    %v1922 = vadd.f32 %v1439, %v1921
    %1923 = vmatprep.mubr.bf16.mxu0 %v671
    %1924 = vmatmul.mubr.bf16.gmra.mrb[0].mxu0 %v670
    %v1925 = vpop.f32.mrb[0].mxu0
    %v1926 = vadd.f32 %v1443, %v1925
    %v1927 = vpop.f32.mrb[0].mxu0
    %v1928 = vadd.f32 %v1445, %v1927
    %v1929 = vpop.f32.mrb[0].mxu0
    %v1930 = vadd.f32 %v1447, %v1929
    %v1931 = vpop.f32.mrb[0].mxu0
    %v1932 = vadd.f32 %v1449, %v1931
    %1933 = vmatprep.mubr.bf16.mxu0 %v677
    %1934 = vmatmul.mubr.bf16.gmra.mrb[0].mxu0 %v676
    %v1935 = vpop.f32.mrb[0].mxu0
    %v1936 = vadd.f32 %v1453, %v1935
    %v1937 = vpop.f32.mrb[0].mxu0
    %v1938 = vadd.f32 %v1455, %v1937
    %v1939 = vpop.f32.mrb[0].mxu0
    %v1940 = vadd.f32 %v1457, %v1939
    %v1941 = vpop.f32.mrb[0].mxu0
    %v1942 = vadd.f32 %v1459, %v1941
    %1943 = vmatprep.mubr.bf16.mxu0 %v683
    %1944 = vmatmul.mubr.bf16.gmra.mrb[0].mxu0 %v682
    %v1945 = vpop.f32.mrb[0].mxu0
    %v1946 = vadd.f32 %v1463, %v1945
    %v1947 = vpop.f32.mrb[0].mxu0
    %v1948 = vadd.f32 %v1465, %v1947
    %v1949 = vpop.f32.mrb[0].mxu0
    %v1950 = vadd.f32 %v1467, %v1949
    %v1951 = vpop.f32.mrb[0].mxu0
    %v1952 = vadd.f32 %v1469, %v1951
    %1953 = vmatprep.mubr.bf16.mxu0 %v689
    %1954 = vmatmul.mubr.bf16.gmra.mrb[0].mxu0 %v688
    %v1955 = vpop.f32.mrb[0].mxu0
    %v1956 = vadd.f32 %v1473, %v1955
    %v1957 = vpop.f32.mrb[0].mxu0
    %v1958 = vadd.f32 %v1475, %v1957
    %v1959 = vpop.f32.mrb[0].mxu0
    %v1960 = vadd.f32 %v1477, %v1959
    %v1961 = vpop.f32.mrb[0].mxu0
    %v1962 = vadd.f32 %v1479, %v1961
    %1963 = vmatprep.mubr.bf16.mxu0 %v695
    %1964 = vmatmul.mubr.bf16.gmra.mrb[0].mxu0 %v694
    %v1965 = vpop.f32.mrb[0].mxu0
    %v1966 = vadd.f32 %v1483, %v1965
    %v1967 = vpop.f32.mrb[0].mxu0
    %v1968 = vadd.f32 %v1485, %v1967
    %v1969 = vpop.f32.mrb[0].mxu0
    %v1970 = vadd.f32 %v1487, %v1969
    %v1971 = vpop.f32.mrb[0].mxu0
    %v1972 = vadd.f32 %v1489, %v1971
    %1973 = vmatprep.mubr.bf16.mxu0 %v701
    %1974 = vmatmul.mubr.bf16.gmra.mrb[0].mxu0 %v700
    %v1975 = vpop.f32.mrb[0].mxu0
    %v1976 = vadd.f32 %v1493, %v1975
    %v1977 = vpop.f32.mrb[0].mxu0
    %v1978 = vadd.f32 %v1495, %v1977
    %v1979 = vpop.f32.mrb[0].mxu0
    %v1980 = vadd.f32 %v1497, %v1979
    %v1981 = vpop.f32.mrb[0].mxu0
    %v1982 = vadd.f32 %v1499, %v1981
    %1983 = vmatprep.mubr.bf16.mxu0 %v707
    %1984 = vmatmul.mubr.bf16.gmra.mrb[0].mxu0 %v706
    %v1985 = vpop.f32.mrb[0].mxu0
    %v1986 = vadd.f32 %v1503, %v1985
    %v1987 = vpop.f32.mrb[0].mxu0
    %v1988 = vadd.f32 %v1505, %v1987
    %v1989 = vpop.f32.mrb[0].mxu0
    %v1990 = vadd.f32 %v1507, %v1989
    %v1991 = vpop.f32.mrb[0].mxu0
    %v1992 = vadd.f32 %v1509, %v1991
    %1993 = vmatprep.mubr.bf16.mxu0 %v713
    %1994 = vmatmul.mubr.bf16.gmra.mrb[0].mxu0 %v712
    %v1995 = vpop.f32.mrb[0].mxu0
    %v1996 = vadd.f32 %v1513, %v1995
    %v1997 = vpop.f32.mrb[0].mxu0
    %v1998 = vadd.f32 %v1515, %v1997
    %v1999 = vpop.f32.mrb[0].mxu0
    %v2000 = vadd.f32 %v1517, %v1999
    %v2001 = vpop.f32.mrb[0].mxu0
    %v2002 = vadd.f32 %v1519, %v2001
    %2003 = vmatprep.mubr.bf16.mxu0 %v719
    %2004 = vmatmul.mubr.bf16.gmra.mrb[0].mxu0 %v718
    %v2005 = vpop.f32.mrb[0].mxu0
    %v2006 = vadd.f32 %v1523, %v2005
    %v2007 = vpop.f32.mrb[0].mxu0
    %v2008 = vadd.f32 %v1525, %v2007
    %v2009 = vpop.f32.mrb[0].mxu0
    %v2010 = vadd.f32 %v1527, %v2009
    %v2011 = vpop.f32.mrb[0].mxu0
    %v2012 = vadd.f32 %v1529, %v2011
    %2013 = vmatprep.mubr.bf16.mxu0 %v725
    %2014 = vmatmul.mubr.bf16.gmra.mrb[0].mxu0 %v724
    %v2015 = vpop.f32.mrb[0].mxu0
    %v2016 = vadd.f32 %v1533, %v2015
    %v2017 = vpop.f32.mrb[0].mxu0
    %v2018 = vadd.f32 %v1535, %v2017
    %v2019 = vpop.f32.mrb[0].mxu0
    %v2020 = vadd.f32 %v1537, %v2019
    %v2021 = vpop.f32.mrb[0].mxu0
    %v2022 = vadd.f32 %v1539, %v2021
    %2023 = vmatprep.mubr.bf16.mxu0 %v731
    %2024 = vmatmul.mubr.bf16.gmra.mrb[0].mxu0 %v730
    %v2025 = vpop.f32.mrb[0].mxu0
    %v2026 = vadd.f32 %v1543, %v2025
    %v2027 = vpop.f32.mrb[0].mxu0
    %v2028 = vadd.f32 %v1545, %v2027
    %v2029 = vpop.f32.mrb[0].mxu0
    %v2030 = vadd.f32 %v1547, %v2029
    %v2031 = vpop.f32.mrb[0].mxu0
    %v2032 = vadd.f32 %v1549, %v2031
    %2033 = vmatprep.mubr.bf16.mxu0 %v737
    %2034 = vmatmul.mubr.bf16.gmra.mrb[0].mxu0 %v736
    %v2035 = vpop.f32.mrb[0].mxu0
    %v2036 = vadd.f32 %v1553, %v2035
    %v2037 = vpop.f32.mrb[0].mxu0
    %v2038 = vadd.f32 %v1555, %v2037
    %v2039 = vpop.f32.mrb[0].mxu0
    %v2040 = vadd.f32 %v1557, %v2039
    %v2041 = vpop.f32.mrb[0].mxu0
    %v2042 = vadd.f32 %v1559, %v2041
    %2043 = vmatprep.mubr.bf16.mxu0 %v743
    %2044 = vmatmul.mubr.bf16.gmra.mrb[0].mxu0 %v742
    %v2045 = vpop.f32.mrb[0].mxu0
    %v2046 = vadd.f32 %v1563, %v2045
    %v2047 = vpop.f32.mrb[0].mxu0
    %v2048 = vadd.f32 %v1565, %v2047
    %v2049 = vpop.f32.mrb[0].mxu0
    %v2050 = vadd.f32 %v1567, %v2049
    %v2051 = vpop.f32.mrb[0].mxu0
    %v2052 = vadd.f32 %v1569, %v2051
    %2053 = vmatprep.mubr.bf16.mxu0 %v749
    %2054 = vmatmul.mubr.bf16.gmra.mrb[0].mxu0 %v748
    %v2055 = vpop.f32.mrb[0].mxu0
    %v2056 = vadd.f32 %v1573, %v2055
    %v2057 = vpop.f32.mrb[0].mxu0
    %v2058 = vadd.f32 %v1575, %v2057
    %v2059 = vpop.f32.mrb[0].mxu0
    %v2060 = vadd.f32 %v1577, %v2059
    %v2061 = vpop.f32.mrb[0].mxu0
    %v2062 = vadd.f32 %v1579, %v2061
    %2063 = vmatprep.mubr.bf16.mxu0 %v755
    %2064 = vmatmul.mubr.bf16.gmra.mrb[0].mxu0 %v754
    %v2065 = vpop.f32.mrb[0].mxu0
    %v2066 = vadd.f32 %v1583, %v2065
    %v2067 = vpop.f32.mrb[0].mxu0
    %v2068 = vadd.f32 %v1585, %v2067
    %v2069 = vpop.f32.mrb[0].mxu0
    %v2070 = vadd.f32 %v1587, %v2069
    %v2071 = vpop.f32.mrb[0].mxu0
    %v2072 = vadd.f32 %v1589, %v2071
    %2073 = vmatprep.mubr.bf16.mxu0 %v761
    %2074 = vmatmul.mubr.bf16.gmra.mrb[0].mxu0 %v760
    %v2075 = vpop.f32.mrb[0].mxu0
    %v2076 = vadd.f32 %v1593, %v2075
    %v2077 = vpop.f32.mrb[0].mxu0
    %v2078 = vadd.f32 %v1595, %v2077
    %v2079 = vpop.f32.mrb[0].mxu0
    %v2080 = vadd.f32 %v1597, %v2079
    %v2081 = vpop.f32.mrb[0].mxu0
    %v2082 = vadd.f32 %v1599, %v2081
    %2083 = vmatprep.mubr.bf16.mxu0 %v767
    %2084 = vmatmul.mubr.bf16.gmra.mrb[0].mxu0 %v766
    %v2085 = vpop.f32.mrb[0].mxu0
    %v2086 = vadd.f32 %v1603, %v2085
    %v2087 = vpop.f32.mrb[0].mxu0
    %v2088 = vadd.f32 %v1605, %v2087
    %v2089 = vpop.f32.mrb[0].mxu0
    %v2090 = vadd.f32 %v1607, %v2089
    %v2091 = vpop.f32.mrb[0].mxu0
    %v2092 = vadd.f32 %v1609, %v2091
    %2093 = vmatprep.mubr.bf16.mxu0 %v773
    %2094 = vmatmul.mubr.bf16.gmra.mrb[0].mxu0 %v772
    %v2095 = vpop.f32.mrb[0].mxu0
    %v2096 = vadd.f32 %v1613, %v2095
    %v2097 = vpop.f32.mrb[0].mxu0
    %v2098 = vadd.f32 %v1615, %v2097
    %v2099 = vpop.f32.mrb[0].mxu0
    %v2100 = vadd.f32 %v1617, %v2099
    %v2101 = vpop.f32.mrb[0].mxu0
    %v2102 = vadd.f32 %v1619, %v2101
    %2103 = vmatprep.mubr.bf16.mxu0 %v779
    %2104 = vmatmul.mubr.bf16.gmra.mrb[0].mxu0 %v778
    %v2105 = vpop.f32.mrb[0].mxu0
    %v2106 = vadd.f32 %v1623, %v2105
    %v2107 = vpop.f32.mrb[0].mxu0
    %v2108 = vadd.f32 %v1625, %v2107
    %v2109 = vpop.f32.mrb[0].mxu0
    %v2110 = vadd.f32 %v1627, %v2109
    %v2111 = vpop.f32.mrb[0].mxu0
    %v2112 = vadd.f32 %v1629, %v2111
    %2113 = vmatprep.mubr.bf16.mxu0 %v785
    %2114 = vmatmul.mubr.bf16.gmra.mrb[0].mxu0 %v784
    %v2115 = vpop.f32.mrb[0].mxu0
    %v2116 = vadd.f32 %v1633, %v2115
    %v2117 = vpop.f32.mrb[0].mxu0
    %v2118 = vadd.f32 %v1635, %v2117
    %v2119 = vpop.f32.mrb[0].mxu0
    %v2120 = vadd.f32 %v1637, %v2119
    %v2121 = vpop.f32.mrb[0].mxu0
    %v2122 = vadd.f32 %v1639, %v2121
    %2123 = vmatprep.mubr.bf16.mxu0 %v791
    %2124 = vmatmul.mubr.bf16.gmra.mrb[0].mxu0 %v790
    %v2125 = vpop.f32.mrb[0].mxu0
    %v2126 = vadd.f32 %v1643, %v2125
    %v2127 = vpop.f32.mrb[0].mxu0
    %v2128 = vadd.f32 %v1645, %v2127
    %v2129 = vpop.f32.mrb[0].mxu0
    %v2130 = vadd.f32 %v1647, %v2129
    %v2131 = vpop.f32.mrb[0].mxu0
    %v2132 = vadd.f32 %v1649, %v2131
    %2133 = vmatprep.mubr.bf16.mxu0 %v797
    %2134 = vmatmul.mubr.bf16.gmra.mrb[0].mxu0 %v796
    %v2135 = vpop.f32.mrb[0].mxu0
    %v2136 = vadd.f32 %v1653, %v2135
    %v2137 = vpop.f32.mrb[0].mxu0
    %v2138 = vadd.f32 %v1655, %v2137
    %v2139 = vpop.f32.mrb[0].mxu0
    %v2140 = vadd.f32 %v1657, %v2139
    %v2141 = vpop.f32.mrb[0].mxu0
    %v2142 = vadd.f32 %v1659, %v2141
    %2143 = vmatprep.mubr.bf16.mxu0 %v803
    %2144 = vmatmul.mubr.bf16.gmra.mrb[0].mxu0 %v802
    %v2145 = vpop.f32.mrb[0].mxu0
    %v2146 = vadd.f32 %v1663, %v2145
    %v2147 = vpop.f32.mrb[0].mxu0
    %v2148 = vadd.f32 %v1665, %v2147
    %v2149 = vpop.f32.mrb[0].mxu0
    %v2150 = vadd.f32 %v1667, %v2149
    %v2151 = vpop.f32.mrb[0].mxu0
    %v2152 = vadd.f32 %v1669, %v2151
    %2153 = vmatprep.mubr.bf16.mxu0 %v809
    %2154 = vmatmul.mubr.bf16.gmra.mrb[0].mxu0 %v808
    %v2155 = vpop.f32.mrb[0].mxu0
    %v2156 = vadd.f32 %v1673, %v2155
    %v2157 = vpop.f32.mrb[0].mxu0
    %v2158 = vadd.f32 %v1675, %v2157
    %v2159 = vpop.f32.mrb[0].mxu0
    %v2160 = vadd.f32 %v1677, %v2159
    %v2161 = vpop.f32.mrb[0].mxu0
    %v2162 = vadd.f32 %v1679, %v2161
    %2163 = vmatprep.mubr.bf16.mxu0 %v815
    %2164 = vmatmul.mubr.bf16.gmra.mrb[0].mxu0 %v814
    %v2165 = vpop.f32.mrb[0].mxu0
    %v2166 = vadd.f32 %v1683, %v2165
    %v2167 = vpop.f32.mrb[0].mxu0
    %v2168 = vadd.f32 %v1685, %v2167
    %v2169 = vpop.f32.mrb[0].mxu0
    %v2170 = vadd.f32 %v1687, %v2169
    %v2171 = vpop.f32.mrb[0].mxu0
    %v2172 = vadd.f32 %v1689, %v2171
    %2173 = vmatprep.mubr.bf16.mxu0 %v821
    %2174 = vmatmul.mubr.bf16.gmra.mrb[0].mxu0 %v820
    %v2175 = vpop.f32.mrb[0].mxu0
    %v2176 = vadd.f32 %v1693, %v2175
    %v2177 = vpop.f32.mrb[0].mxu0
    %v2178 = vadd.f32 %v1695, %v2177
    %v2179 = vpop.f32.mrb[0].mxu0
    %v2180 = vadd.f32 %v1697, %v2179
    %v2181 = vpop.f32.mrb[0].mxu0
    %v2182 = vadd.f32 %v1699, %v2181
    %2183 = vmatprep.mubr.bf16.mxu0 %v827
    %2184 = vmatmul.mubr.bf16.gmra.mrb[0].mxu0 %v826
    %v2185 = vpop.f32.mrb[0].mxu0
    %v2186 = vadd.f32 %v1703, %v2185
    %v2187 = vpop.f32.mrb[0].mxu0
    %v2188 = vadd.f32 %v1705, %v2187
    %v2189 = vpop.f32.mrb[0].mxu0
    %v2190 = vadd.f32 %v1707, %v2189
    %v2191 = vpop.f32.mrb[0].mxu0
    %v2192 = vadd.f32 %v1709, %v2191
    %2193 = vmatprep.mubr.bf16.mxu0 %v833
    %2194 = vmatmul.mubr.bf16.gmra.mrb[0].mxu0 %v832
    %v2195 = vpop.f32.mrb[0].mxu0
    %v2196 = vadd.f32 %v1713, %v2195
    %v2197 = vpop.f32.mrb[0].mxu0
    %v2198 = vadd.f32 %v1715, %v2197
    %v2199 = vpop.f32.mrb[0].mxu0
    %v2200 = vadd.f32 %v1717, %v2199
    %v2201 = vpop.f32.mrb[0].mxu0
    %v2202 = vadd.f32 %v1719, %v2201
    %2203 = vmatprep.mubr.bf16.mxu0 %v839
    %2204 = vmatmul.mubr.bf16.gmra.mrb[0].mxu0 %v838
    %v2205 = vpop.f32.mrb[0].mxu0
    %v2206 = vadd.f32 %v1723, %v2205
    %v2207 = vpop.f32.mrb[0].mxu0
    %v2208 = vadd.f32 %v1725, %v2207
    %v2209 = vpop.f32.mrb[0].mxu0
    %v2210 = vadd.f32 %v1727, %v2209
    %v2211 = vpop.f32.mrb[0].mxu0
    %v2212 = vadd.f32 %v1729, %v2211
    %2213 = vdwg.mxu0
    %2214 = vmatprep.subr.bf16.mxu0 %v1087
    %2215 = vmatpush1.bf16.msra.mxu0 %v1086
    %2216 = vmatprep.subr.bf16.mxu0 %v1089
    %2217 = vmatpush1.bf16.msra.mxu0 %v1088
    %2218 = vmatprep.subr.bf16.mxu0 %v1091
    %2219 = vmatpush1.bf16.msra.mxu0 %v1090
    %2220 = vmatprep.subr.bf16.mxu0 %v1093
    %2221 = vmatpush1.bf16.msra.mxu0 %v1092
    %2222 = vmatprep.subr.bf16.mxu0 %v1095
    %2223 = vmatpush1.bf16.msra.mxu0 %v1094
    %2224 = vmatprep.subr.bf16.mxu0 %v1097
    %2225 = vmatpush1.bf16.msra.mxu0 %v1096
    %2226 = vmatprep.subr.bf16.mxu0 %v1099
    %2227 = vmatpush1.bf16.msra.mxu0 %v1098
    %2228 = vmatprep.subr.bf16.mxu0 %v1101
    %2229 = vmatpush1.bf16.msra.mxu0 %v1100
    %2230 = vmatprep.subr.bf16.mxu0 %v1103
    %2231 = vmatpush1.bf16.msra.mxu0 %v1102
    %2232 = vmatprep.subr.bf16.mxu0 %v1105
    %2233 = vmatpush1.bf16.msra.mxu0 %v1104
    %2234 = vmatprep.subr.bf16.mxu0 %v1107
    %2235 = vmatpush1.bf16.msra.mxu0 %v1106
    %2236 = vmatprep.subr.bf16.mxu0 %v1109
    %2237 = vmatpush1.bf16.msra.mxu0 %v1108
    %2238 = vmatprep.subr.bf16.mxu0 %v1111
    %2239 = vmatpush1.bf16.msra.mxu0 %v1110
    %2240 = vmatprep.subr.bf16.mxu0 0
    %2241 = vmatpush1.bf16.msra.mxu0 0
    %2242 = vmatprep.subr.bf16.mxu0 0
    %2243 = vmatpush1.bf16.msra.mxu0 0
    %2244 = vmatprep.subr.bf16.mxu0 0
    %2245 = vmatpush1.bf16.msra.mxu0 0
    %2246 = vmatprep.mubr.bf16.mxu0 %v1114
    %2247 = vmatmul.mubr.bf16.gmra.mrb[0].mxu0 %v576
    %v2248 = vpop.f32.mrb[0].mxu0
    %v2249 = vadd.f32 %v1766, %v2248
    %v2250 = vpop.f32.mrb[0].mxu0
    %v2251 = vadd.f32 %v1768, %v2250
    %v2252 = vpop.f32.mrb[0].mxu0
    %v2253 = vadd.f32 %v1770, %v2252
    %v2254 = vpop.f32.mrb[0].mxu0
    %v2255 = vadd.f32 %v1772, %v2254
    %2256 = vmatprep.mubr.bf16.mxu0 %v1117
    %2257 = vmatmul.mubr.bf16.gmra.mrb[0].mxu0 %v582
    %v2258 = vpop.f32.mrb[0].mxu0
    %v2259 = vadd.f32 %v1776, %v2258
    %v2260 = vpop.f32.mrb[0].mxu0
    %v2261 = vadd.f32 %v1778, %v2260
    %v2262 = vpop.f32.mrb[0].mxu0
    %v2263 = vadd.f32 %v1780, %v2262
    %v2264 = vpop.f32.mrb[0].mxu0
    %v2265 = vadd.f32 %v1782, %v2264
    %2266 = vmatprep.mubr.bf16.mxu0 %v1120
    %2267 = vmatmul.mubr.bf16.gmra.mrb[0].mxu0 %v588
    %v2268 = vpop.f32.mrb[0].mxu0
    %v2269 = vadd.f32 %v1786, %v2268
    %v2270 = vpop.f32.mrb[0].mxu0
    %v2271 = vadd.f32 %v1788, %v2270
    %v2272 = vpop.f32.mrb[0].mxu0
    %v2273 = vadd.f32 %v1790, %v2272
    %v2274 = vpop.f32.mrb[0].mxu0
    %v2275 = vadd.f32 %v1792, %v2274
    %2276 = vmatprep.mubr.bf16.mxu0 %v1123
    %2277 = vmatmul.mubr.bf16.gmra.mrb[0].mxu0 %v594
    %v2278 = vpop.f32.mrb[0].mxu0
    %v2279 = vadd.f32 %v1796, %v2278
    %v2280 = vpop.f32.mrb[0].mxu0
    %v2281 = vadd.f32 %v1798, %v2280
    %v2282 = vpop.f32.mrb[0].mxu0
    %v2283 = vadd.f32 %v1800, %v2282
    %v2284 = vpop.f32.mrb[0].mxu0
    %v2285 = vadd.f32 %v1802, %v2284
    %2286 = vmatprep.mubr.bf16.mxu0 %v1126
    %2287 = vmatmul.mubr.bf16.gmra.mrb[0].mxu0 %v600
    %v2288 = vpop.f32.mrb[0].mxu0
    %v2289 = vadd.f32 %v1806, %v2288
    %v2290 = vpop.f32.mrb[0].mxu0
    %v2291 = vadd.f32 %v1808, %v2290
    %v2292 = vpop.f32.mrb[0].mxu0
    %v2293 = vadd.f32 %v1810, %v2292
    %v2294 = vpop.f32.mrb[0].mxu0
    %v2295 = vadd.f32 %v1812, %v2294
    %2296 = vmatprep.mubr.bf16.mxu0 %v1129
    %2297 = vmatmul.mubr.bf16.gmra.mrb[0].mxu0 %v606
    %v2298 = vpop.f32.mrb[0].mxu0
    %v2299 = vadd.f32 %v1816, %v2298
    %v2300 = vpop.f32.mrb[0].mxu0
    %v2301 = vadd.f32 %v1818, %v2300
    %v2302 = vpop.f32.mrb[0].mxu0
    %v2303 = vadd.f32 %v1820, %v2302
    %v2304 = vpop.f32.mrb[0].mxu0
    %v2305 = vadd.f32 %v1822, %v2304
    %2306 = vmatprep.mubr.bf16.mxu0 %v1132
    %2307 = vmatmul.mubr.bf16.gmra.mrb[0].mxu0 %v612
    %v2308 = vpop.f32.mrb[0].mxu0
    %v2309 = vadd.f32 %v1826, %v2308
    %v2310 = vpop.f32.mrb[0].mxu0
    %v2311 = vadd.f32 %v1828, %v2310
    %v2312 = vpop.f32.mrb[0].mxu0
    %v2313 = vadd.f32 %v1830, %v2312
    %v2314 = vpop.f32.mrb[0].mxu0
    %v2315 = vadd.f32 %v1832, %v2314
    %2316 = vmatprep.mubr.bf16.mxu0 %v1135
    %2317 = vmatmul.mubr.bf16.gmra.mrb[0].mxu0 %v618
    %v2318 = vpop.f32.mrb[0].mxu0
    %v2319 = vadd.f32 %v1836, %v2318
    %v2320 = vpop.f32.mrb[0].mxu0
    %v2321 = vadd.f32 %v1838, %v2320
    %v2322 = vpop.f32.mrb[0].mxu0
    %v2323 = vadd.f32 %v1840, %v2322
    %v2324 = vpop.f32.mrb[0].mxu0
    %v2325 = vadd.f32 %v1842, %v2324
    %2326 = vmatprep.mubr.bf16.mxu0 %v1138
    %2327 = vmatmul.mubr.bf16.gmra.mrb[0].mxu0 %v624
    %v2328 = vpop.f32.mrb[0].mxu0
    %v2329 = vadd.f32 %v1846, %v2328
    %v2330 = vpop.f32.mrb[0].mxu0
    %v2331 = vadd.f32 %v1848, %v2330
    %v2332 = vpop.f32.mrb[0].mxu0
    %v2333 = vadd.f32 %v1850, %v2332
    %v2334 = vpop.f32.mrb[0].mxu0
    %v2335 = vadd.f32 %v1852, %v2334
    %2336 = vmatprep.mubr.bf16.mxu0 %v1141
    %2337 = vmatmul.mubr.bf16.gmra.mrb[0].mxu0 %v630
    %v2338 = vpop.f32.mrb[0].mxu0
    %v2339 = vadd.f32 %v1856, %v2338
    %v2340 = vpop.f32.mrb[0].mxu0
    %v2341 = vadd.f32 %v1858, %v2340
    %v2342 = vpop.f32.mrb[0].mxu0
    %v2343 = vadd.f32 %v1860, %v2342
    %v2344 = vpop.f32.mrb[0].mxu0
    %v2345 = vadd.f32 %v1862, %v2344
    %2346 = vmatprep.mubr.bf16.mxu0 %v1144
    %2347 = vmatmul.mubr.bf16.gmra.mrb[0].mxu0 %v636
    %v2348 = vpop.f32.mrb[0].mxu0
    %v2349 = vadd.f32 %v1866, %v2348
    %v2350 = vpop.f32.mrb[0].mxu0
    %v2351 = vadd.f32 %v1868, %v2350
    %v2352 = vpop.f32.mrb[0].mxu0
    %v2353 = vadd.f32 %v1870, %v2352
    %v2354 = vpop.f32.mrb[0].mxu0
    %v2355 = vadd.f32 %v1872, %v2354
    %2356 = vmatprep.mubr.bf16.mxu0 %v1147
    %2357 = vmatmul.mubr.bf16.gmra.mrb[0].mxu0 %v642
    %v2358 = vpop.f32.mrb[0].mxu0
    %v2359 = vadd.f32 %v1876, %v2358
    %v2360 = vpop.f32.mrb[0].mxu0
    %v2361 = vadd.f32 %v1878, %v2360
    %v2362 = vpop.f32.mrb[0].mxu0
    %v2363 = vadd.f32 %v1880, %v2362
    %v2364 = vpop.f32.mrb[0].mxu0
    %v2365 = vadd.f32 %v1882, %v2364
    %2366 = vmatprep.mubr.bf16.mxu0 %v1150
    %2367 = vmatmul.mubr.bf16.gmra.mrb[0].mxu0 %v648
    %v2368 = vpop.f32.mrb[0].mxu0
    %v2369 = vadd.f32 %v1886, %v2368
    %v2370 = vpop.f32.mrb[0].mxu0
    %v2371 = vadd.f32 %v1888, %v2370
    %v2372 = vpop.f32.mrb[0].mxu0
    %v2373 = vadd.f32 %v1890, %v2372
    %v2374 = vpop.f32.mrb[0].mxu0
    %v2375 = vadd.f32 %v1892, %v2374
    %2376 = vmatprep.mubr.bf16.mxu0 %v1153
    %2377 = vmatmul.mubr.bf16.gmra.mrb[0].mxu0 %v654
    %v2378 = vpop.f32.mrb[0].mxu0
    %v2379 = vadd.f32 %v1896, %v2378
    %v2380 = vpop.f32.mrb[0].mxu0
    %v2381 = vadd.f32 %v1898, %v2380
    %v2382 = vpop.f32.mrb[0].mxu0
    %v2383 = vadd.f32 %v1900, %v2382
    %v2384 = vpop.f32.mrb[0].mxu0
    %v2385 = vadd.f32 %v1902, %v2384
    %2386 = vmatprep.mubr.bf16.mxu0 %v1156
    %2387 = vmatmul.mubr.bf16.gmra.mrb[0].mxu0 %v660
    %v2388 = vpop.f32.mrb[0].mxu0
    %v2389 = vadd.f32 %v1906, %v2388
    %v2390 = vpop.f32.mrb[0].mxu0
    %v2391 = vadd.f32 %v1908, %v2390
    %v2392 = vpop.f32.mrb[0].mxu0
    %v2393 = vadd.f32 %v1910, %v2392
    %v2394 = vpop.f32.mrb[0].mxu0
    %v2395 = vadd.f32 %v1912, %v2394
    %2396 = vmatprep.mubr.bf16.mxu0 %v1159
    %2397 = vmatmul.mubr.bf16.gmra.mrb[0].mxu0 %v666
    %v2398 = vpop.f32.mrb[0].mxu0
    %v2399 = vadd.f32 %v1916, %v2398
    %v2400 = vpop.f32.mrb[0].mxu0
    %v2401 = vadd.f32 %v1918, %v2400
    %v2402 = vpop.f32.mrb[0].mxu0
    %v2403 = vadd.f32 %v1920, %v2402
    %v2404 = vpop.f32.mrb[0].mxu0
    %v2405 = vadd.f32 %v1922, %v2404
    %2406 = vmatprep.mubr.bf16.mxu0 %v1162
    %2407 = vmatmul.mubr.bf16.gmra.mrb[0].mxu0 %v672
    %v2408 = vpop.f32.mrb[0].mxu0
    %v2409 = vadd.f32 %v1926, %v2408
    %v2410 = vpop.f32.mrb[0].mxu0
    %v2411 = vadd.f32 %v1928, %v2410
    %v2412 = vpop.f32.mrb[0].mxu0
    %v2413 = vadd.f32 %v1930, %v2412
    %v2414 = vpop.f32.mrb[0].mxu0
    %v2415 = vadd.f32 %v1932, %v2414
    %2416 = vmatprep.mubr.bf16.mxu0 %v1165
    %2417 = vmatmul.mubr.bf16.gmra.mrb[0].mxu0 %v678
    %v2418 = vpop.f32.mrb[0].mxu0
    %v2419 = vadd.f32 %v1936, %v2418
    %v2420 = vpop.f32.mrb[0].mxu0
    %v2421 = vadd.f32 %v1938, %v2420
    %v2422 = vpop.f32.mrb[0].mxu0
    %v2423 = vadd.f32 %v1940, %v2422
    %v2424 = vpop.f32.mrb[0].mxu0
    %v2425 = vadd.f32 %v1942, %v2424
    %2426 = vmatprep.mubr.bf16.mxu0 %v1168
    %2427 = vmatmul.mubr.bf16.gmra.mrb[0].mxu0 %v684
    %v2428 = vpop.f32.mrb[0].mxu0
    %v2429 = vadd.f32 %v1946, %v2428
    %v2430 = vpop.f32.mrb[0].mxu0
    %v2431 = vadd.f32 %v1948, %v2430
    %v2432 = vpop.f32.mrb[0].mxu0
    %v2433 = vadd.f32 %v1950, %v2432
    %v2434 = vpop.f32.mrb[0].mxu0
    %v2435 = vadd.f32 %v1952, %v2434
    %2436 = vmatprep.mubr.bf16.mxu0 %v1171
    %2437 = vmatmul.mubr.bf16.gmra.mrb[0].mxu0 %v690
    %v2438 = vpop.f32.mrb[0].mxu0
    %v2439 = vadd.f32 %v1956, %v2438
    %v2440 = vpop.f32.mrb[0].mxu0
    %v2441 = vadd.f32 %v1958, %v2440
    %v2442 = vpop.f32.mrb[0].mxu0
    %v2443 = vadd.f32 %v1960, %v2442
    %v2444 = vpop.f32.mrb[0].mxu0
    %v2445 = vadd.f32 %v1962, %v2444
    %2446 = vmatprep.mubr.bf16.mxu0 %v1174
    %2447 = vmatmul.mubr.bf16.gmra.mrb[0].mxu0 %v696
    %v2448 = vpop.f32.mrb[0].mxu0
    %v2449 = vadd.f32 %v1966, %v2448
    %v2450 = vpop.f32.mrb[0].mxu0
    %v2451 = vadd.f32 %v1968, %v2450
    %v2452 = vpop.f32.mrb[0].mxu0
    %v2453 = vadd.f32 %v1970, %v2452
    %v2454 = vpop.f32.mrb[0].mxu0
    %v2455 = vadd.f32 %v1972, %v2454
    %2456 = vmatprep.mubr.bf16.mxu0 %v1177
    %2457 = vmatmul.mubr.bf16.gmra.mrb[0].mxu0 %v702
    %v2458 = vpop.f32.mrb[0].mxu0
    %v2459 = vadd.f32 %v1976, %v2458
    %v2460 = vpop.f32.mrb[0].mxu0
    %v2461 = vadd.f32 %v1978, %v2460
    %v2462 = vpop.f32.mrb[0].mxu0
    %v2463 = vadd.f32 %v1980, %v2462
    %v2464 = vpop.f32.mrb[0].mxu0
    %v2465 = vadd.f32 %v1982, %v2464
    %2466 = vmatprep.mubr.bf16.mxu0 %v1180
    %2467 = vmatmul.mubr.bf16.gmra.mrb[0].mxu0 %v708
    %v2468 = vpop.f32.mrb[0].mxu0
    %v2469 = vadd.f32 %v1986, %v2468
    %v2470 = vpop.f32.mrb[0].mxu0
    %v2471 = vadd.f32 %v1988, %v2470
    %v2472 = vpop.f32.mrb[0].mxu0
    %v2473 = vadd.f32 %v1990, %v2472
    %v2474 = vpop.f32.mrb[0].mxu0
    %v2475 = vadd.f32 %v1992, %v2474
    %2476 = vmatprep.mubr.bf16.mxu0 %v1183
    %2477 = vmatmul.mubr.bf16.gmra.mrb[0].mxu0 %v714
    %v2478 = vpop.f32.mrb[0].mxu0
    %v2479 = vadd.f32 %v1996, %v2478
    %v2480 = vpop.f32.mrb[0].mxu0
    %v2481 = vadd.f32 %v1998, %v2480
    %v2482 = vpop.f32.mrb[0].mxu0
    %v2483 = vadd.f32 %v2000, %v2482
    %v2484 = vpop.f32.mrb[0].mxu0
    %v2485 = vadd.f32 %v2002, %v2484
    %2486 = vmatprep.mubr.bf16.mxu0 %v1186
    %2487 = vmatmul.mubr.bf16.gmra.mrb[0].mxu0 %v720
    %v2488 = vpop.f32.mrb[0].mxu0
    %v2489 = vadd.f32 %v2006, %v2488
    %v2490 = vpop.f32.mrb[0].mxu0
    %v2491 = vadd.f32 %v2008, %v2490
    %v2492 = vpop.f32.mrb[0].mxu0
    %v2493 = vadd.f32 %v2010, %v2492
    %v2494 = vpop.f32.mrb[0].mxu0
    %v2495 = vadd.f32 %v2012, %v2494
    %2496 = vmatprep.mubr.bf16.mxu0 %v1189
    %2497 = vmatmul.mubr.bf16.gmra.mrb[0].mxu0 %v726
    %v2498 = vpop.f32.mrb[0].mxu0
    %v2499 = vadd.f32 %v2016, %v2498
    %v2500 = vpop.f32.mrb[0].mxu0
    %v2501 = vadd.f32 %v2018, %v2500
    %v2502 = vpop.f32.mrb[0].mxu0
    %v2503 = vadd.f32 %v2020, %v2502
    %v2504 = vpop.f32.mrb[0].mxu0
    %v2505 = vadd.f32 %v2022, %v2504
    %2506 = vmatprep.mubr.bf16.mxu0 %v1192
    %2507 = vmatmul.mubr.bf16.gmra.mrb[0].mxu0 %v732
    %v2508 = vpop.f32.mrb[0].mxu0
    %v2509 = vadd.f32 %v2026, %v2508
    %v2510 = vpop.f32.mrb[0].mxu0
    %v2511 = vadd.f32 %v2028, %v2510
    %v2512 = vpop.f32.mrb[0].mxu0
    %v2513 = vadd.f32 %v2030, %v2512
    %v2514 = vpop.f32.mrb[0].mxu0
    %v2515 = vadd.f32 %v2032, %v2514
    %2516 = vmatprep.mubr.bf16.mxu0 %v1195
    %2517 = vmatmul.mubr.bf16.gmra.mrb[0].mxu0 %v738
    %v2518 = vpop.f32.mrb[0].mxu0
    %v2519 = vadd.f32 %v2036, %v2518
    %v2520 = vpop.f32.mrb[0].mxu0
    %v2521 = vadd.f32 %v2038, %v2520
    %v2522 = vpop.f32.mrb[0].mxu0
    %v2523 = vadd.f32 %v2040, %v2522
    %v2524 = vpop.f32.mrb[0].mxu0
    %v2525 = vadd.f32 %v2042, %v2524
    %2526 = vmatprep.mubr.bf16.mxu0 %v1198
    %2527 = vmatmul.mubr.bf16.gmra.mrb[0].mxu0 %v744
    %v2528 = vpop.f32.mrb[0].mxu0
    %v2529 = vadd.f32 %v2046, %v2528
    %v2530 = vpop.f32.mrb[0].mxu0
    %v2531 = vadd.f32 %v2048, %v2530
    %v2532 = vpop.f32.mrb[0].mxu0
    %v2533 = vadd.f32 %v2050, %v2532
    %v2534 = vpop.f32.mrb[0].mxu0
    %v2535 = vadd.f32 %v2052, %v2534
    %2536 = vmatprep.mubr.bf16.mxu0 %v1201
    %2537 = vmatmul.mubr.bf16.gmra.mrb[0].mxu0 %v750
    %v2538 = vpop.f32.mrb[0].mxu0
    %v2539 = vadd.f32 %v2056, %v2538
    %v2540 = vpop.f32.mrb[0].mxu0
    %v2541 = vadd.f32 %v2058, %v2540
    %v2542 = vpop.f32.mrb[0].mxu0
    %v2543 = vadd.f32 %v2060, %v2542
    %v2544 = vpop.f32.mrb[0].mxu0
    %v2545 = vadd.f32 %v2062, %v2544
    %2546 = vmatprep.mubr.bf16.mxu0 %v1204
    %2547 = vmatmul.mubr.bf16.gmra.mrb[0].mxu0 %v756
    %v2548 = vpop.f32.mrb[0].mxu0
    %v2549 = vadd.f32 %v2066, %v2548
    %v2550 = vpop.f32.mrb[0].mxu0
    %v2551 = vadd.f32 %v2068, %v2550
    %v2552 = vpop.f32.mrb[0].mxu0
    %v2553 = vadd.f32 %v2070, %v2552
    %v2554 = vpop.f32.mrb[0].mxu0
    %v2555 = vadd.f32 %v2072, %v2554
    %2556 = vmatprep.mubr.bf16.mxu0 %v1207
    %2557 = vmatmul.mubr.bf16.gmra.mrb[0].mxu0 %v762
    %v2558 = vpop.f32.mrb[0].mxu0
    %v2559 = vadd.f32 %v2076, %v2558
    %v2560 = vpop.f32.mrb[0].mxu0
    %v2561 = vadd.f32 %v2078, %v2560
    %v2562 = vpop.f32.mrb[0].mxu0
    %v2563 = vadd.f32 %v2080, %v2562
    %v2564 = vpop.f32.mrb[0].mxu0
    %v2565 = vadd.f32 %v2082, %v2564
    %2566 = vmatprep.mubr.bf16.mxu0 %v1210
    %2567 = vmatmul.mubr.bf16.gmra.mrb[0].mxu0 %v768
    %v2568 = vpop.f32.mrb[0].mxu0
    %v2569 = vadd.f32 %v2086, %v2568
    %v2570 = vpop.f32.mrb[0].mxu0
    %v2571 = vadd.f32 %v2088, %v2570
    %v2572 = vpop.f32.mrb[0].mxu0
    %v2573 = vadd.f32 %v2090, %v2572
    %v2574 = vpop.f32.mrb[0].mxu0
    %v2575 = vadd.f32 %v2092, %v2574
    %2576 = vmatprep.mubr.bf16.mxu0 %v1213
    %2577 = vmatmul.mubr.bf16.gmra.mrb[0].mxu0 %v774
    %v2578 = vpop.f32.mrb[0].mxu0
    %v2579 = vadd.f32 %v2096, %v2578
    %v2580 = vpop.f32.mrb[0].mxu0
    %v2581 = vadd.f32 %v2098, %v2580
    %v2582 = vpop.f32.mrb[0].mxu0
    %v2583 = vadd.f32 %v2100, %v2582
    %v2584 = vpop.f32.mrb[0].mxu0
    %v2585 = vadd.f32 %v2102, %v2584
    %2586 = vmatprep.mubr.bf16.mxu0 %v1216
    %2587 = vmatmul.mubr.bf16.gmra.mrb[0].mxu0 %v780
    %v2588 = vpop.f32.mrb[0].mxu0
    %v2589 = vadd.f32 %v2106, %v2588
    %v2590 = vpop.f32.mrb[0].mxu0
    %v2591 = vadd.f32 %v2108, %v2590
    %v2592 = vpop.f32.mrb[0].mxu0
    %v2593 = vadd.f32 %v2110, %v2592
    %v2594 = vpop.f32.mrb[0].mxu0
    %v2595 = vadd.f32 %v2112, %v2594
    %2596 = vmatprep.mubr.bf16.mxu0 %v1219
    %2597 = vmatmul.mubr.bf16.gmra.mrb[0].mxu0 %v786
    %v2598 = vpop.f32.mrb[0].mxu0
    %v2599 = vadd.f32 %v2116, %v2598
    %v2600 = vpop.f32.mrb[0].mxu0
    %v2601 = vadd.f32 %v2118, %v2600
    %v2602 = vpop.f32.mrb[0].mxu0
    %v2603 = vadd.f32 %v2120, %v2602
    %v2604 = vpop.f32.mrb[0].mxu0
    %v2605 = vadd.f32 %v2122, %v2604
    %2606 = vmatprep.mubr.bf16.mxu0 %v1222
    %2607 = vmatmul.mubr.bf16.gmra.mrb[0].mxu0 %v792
    %v2608 = vpop.f32.mrb[0].mxu0
    %v2609 = vadd.f32 %v2126, %v2608
    %v2610 = vpop.f32.mrb[0].mxu0
    %v2611 = vadd.f32 %v2128, %v2610
    %v2612 = vpop.f32.mrb[0].mxu0
    %v2613 = vadd.f32 %v2130, %v2612
    %v2614 = vpop.f32.mrb[0].mxu0
    %v2615 = vadd.f32 %v2132, %v2614
    %2616 = vmatprep.mubr.bf16.mxu0 %v1225
    %2617 = vmatmul.mubr.bf16.gmra.mrb[0].mxu0 %v798
    %v2618 = vpop.f32.mrb[0].mxu0
    %v2619 = vadd.f32 %v2136, %v2618
    %v2620 = vpop.f32.mrb[0].mxu0
    %v2621 = vadd.f32 %v2138, %v2620
    %v2622 = vpop.f32.mrb[0].mxu0
    %v2623 = vadd.f32 %v2140, %v2622
    %v2624 = vpop.f32.mrb[0].mxu0
    %v2625 = vadd.f32 %v2142, %v2624
    %2626 = vmatprep.mubr.bf16.mxu0 %v1228
    %2627 = vmatmul.mubr.bf16.gmra.mrb[0].mxu0 %v804
    %v2628 = vpop.f32.mrb[0].mxu0
    %v2629 = vadd.f32 %v2146, %v2628
    %v2630 = vpop.f32.mrb[0].mxu0
    %v2631 = vadd.f32 %v2148, %v2630
    %v2632 = vpop.f32.mrb[0].mxu0
    %v2633 = vadd.f32 %v2150, %v2632
    %v2634 = vpop.f32.mrb[0].mxu0
    %v2635 = vadd.f32 %v2152, %v2634
    %2636 = vmatprep.mubr.bf16.mxu0 %v1231
    %2637 = vmatmul.mubr.bf16.gmra.mrb[0].mxu0 %v810
    %v2638 = vpop.f32.mrb[0].mxu0
    %v2639 = vadd.f32 %v2156, %v2638
    %v2640 = vpop.f32.mrb[0].mxu0
    %v2641 = vadd.f32 %v2158, %v2640
    %v2642 = vpop.f32.mrb[0].mxu0
    %v2643 = vadd.f32 %v2160, %v2642
    %v2644 = vpop.f32.mrb[0].mxu0
    %v2645 = vadd.f32 %v2162, %v2644
    %2646 = vmatprep.mubr.bf16.mxu0 %v1234
    %2647 = vmatmul.mubr.bf16.gmra.mrb[0].mxu0 %v816
    %v2648 = vpop.f32.mrb[0].mxu0
    %v2649 = vadd.f32 %v2166, %v2648
    %v2650 = vpop.f32.mrb[0].mxu0
    %v2651 = vadd.f32 %v2168, %v2650
    %v2652 = vpop.f32.mrb[0].mxu0
    %v2653 = vadd.f32 %v2170, %v2652
    %v2654 = vpop.f32.mrb[0].mxu0
    %v2655 = vadd.f32 %v2172, %v2654
    %2656 = vmatprep.mubr.bf16.mxu0 %v1237
    %2657 = vmatmul.mubr.bf16.gmra.mrb[0].mxu0 %v822
    %v2658 = vpop.f32.mrb[0].mxu0
    %v2659 = vadd.f32 %v2176, %v2658
    %v2660 = vpop.f32.mrb[0].mxu0
    %v2661 = vadd.f32 %v2178, %v2660
    %v2662 = vpop.f32.mrb[0].mxu0
    %v2663 = vadd.f32 %v2180, %v2662
    %v2664 = vpop.f32.mrb[0].mxu0
    %v2665 = vadd.f32 %v2182, %v2664
    %2666 = vmatprep.mubr.bf16.mxu0 %v1240
    %2667 = vmatmul.mubr.bf16.gmra.mrb[0].mxu0 %v828
    %v2668 = vpop.f32.mrb[0].mxu0
    %v2669 = vadd.f32 %v2186, %v2668
    %v2670 = vpop.f32.mrb[0].mxu0
    %v2671 = vadd.f32 %v2188, %v2670
    %v2672 = vpop.f32.mrb[0].mxu0
    %v2673 = vadd.f32 %v2190, %v2672
    %v2674 = vpop.f32.mrb[0].mxu0
    %v2675 = vadd.f32 %v2192, %v2674
    %2676 = vmatprep.mubr.bf16.mxu0 %v1243
    %2677 = vmatmul.mubr.bf16.gmra.mrb[0].mxu0 %v834
    %v2678 = vpop.f32.mrb[0].mxu0
    %v2679 = vadd.f32 %v2196, %v2678
    %v2680 = vpop.f32.mrb[0].mxu0
    %v2681 = vadd.f32 %v2198, %v2680
    %v2682 = vpop.f32.mrb[0].mxu0
    %v2683 = vadd.f32 %v2200, %v2682
    %v2684 = vpop.f32.mrb[0].mxu0
    %v2685 = vadd.f32 %v2202, %v2684
    %2686 = vmatprep.mubr.bf16.mxu0 %v1246
    %2687 = vmatmul.mubr.bf16.gmra.mrb[0].mxu0 %v840
    %v2688 = vpop.f32.mrb[0].mxu0
    %v2689 = vadd.f32 %v2206, %v2688
    %v2690 = vpop.f32.mrb[0].mxu0
    %v2691 = vadd.f32 %v2208, %v2690
    %v2692 = vpop.f32.mrb[0].mxu0
    %v2693 = vadd.f32 %v2210, %v2692
    %v2694 = vpop.f32.mrb[0].mxu0
    %v2695 = vadd.f32 %v2212, %v2694
    %2696 = vdwg.mxu0
    %vm2697 = vcmask 556032
    %v2698 = vsel %vm2697, %v2251, 0.0
    %v2699 = vadd.f32 %v2249, %v2698
    %2700 = vadd.xlane.f32.xlu0 %v2699
    %v2701 = vpop.xlane.xlu0 %2700
    %v2702 = vsel %vm2697, %v2255, 0.0
    %v2703 = vadd.f32 %v2253, %v2702
    %2704 = vadd.xlane.f32.xlu0 %v2703
    %v2705 = vpop.xlane.xlu0 %2704
    %v2706 = vsel %vm2697, %v2261, 0.0
    %v2707 = vadd.f32 %v2259, %v2706
    %2708 = vadd.xlane.f32.xlu0 %v2707
    %v2709 = vpop.xlane.xlu0 %2708
    %v2710 = vsel %vm2697, %v2265, 0.0
    %v2711 = vadd.f32 %v2263, %v2710
    %2712 = vadd.xlane.f32.xlu0 %v2711
    %v2713 = vpop.xlane.xlu0 %2712
    %v2714 = vsel %vm2697, %v2271, 0.0
    %v2715 = vadd.f32 %v2269, %v2714
    %2716 = vadd.xlane.f32.xlu0 %v2715
    %v2717 = vpop.xlane.xlu0 %2716
    %v2718 = vsel %vm2697, %v2275, 0.0
    %v2719 = vadd.f32 %v2273, %v2718
    %2720 = vadd.xlane.f32.xlu0 %v2719
    %v2721 = vpop.xlane.xlu0 %2720
    %v2722 = vsel %vm2697, %v2281, 0.0
    %v2723 = vadd.f32 %v2279, %v2722
    %2724 = vadd.xlane.f32.xlu0 %v2723
    %v2725 = vpop.xlane.xlu0 %2724
    %v2726 = vsel %vm2697, %v2285, 0.0
    %v2727 = vadd.f32 %v2283, %v2726
    %2728 = vadd.xlane.f32.xlu0 %v2727
    %v2729 = vpop.xlane.xlu0 %2728
    %v2730 = vsel %vm2697, %v2291, 0.0
    %v2731 = vadd.f32 %v2289, %v2730
    %2732 = vadd.xlane.f32.xlu0 %v2731
    %v2733 = vpop.xlane.xlu0 %2732
    %v2734 = vsel %vm2697, %v2295, 0.0
    %v2735 = vadd.f32 %v2293, %v2734
    %2736 = vadd.xlane.f32.xlu0 %v2735
    %v2737 = vpop.xlane.xlu0 %2736
    %v2738 = vsel %vm2697, %v2301, 0.0
    %v2739 = vadd.f32 %v2299, %v2738
    %2740 = vadd.xlane.f32.xlu0 %v2739
    %v2741 = vpop.xlane.xlu0 %2740
    %v2742 = vsel %vm2697, %v2305, 0.0
    %v2743 = vadd.f32 %v2303, %v2742
    %2744 = vadd.xlane.f32.xlu0 %v2743
    %v2745 = vpop.xlane.xlu0 %2744
    %v2746 = vsel %vm2697, %v2311, 0.0
    %v2747 = vadd.f32 %v2309, %v2746
    %2748 = vadd.xlane.f32.xlu0 %v2747
    %v2749 = vpop.xlane.xlu0 %2748
    %v2750 = vsel %vm2697, %v2315, 0.0
    %v2751 = vadd.f32 %v2313, %v2750
    %2752 = vadd.xlane.f32.xlu0 %v2751
    %v2753 = vpop.xlane.xlu0 %2752
    %v2754 = vsel %vm2697, %v2321, 0.0
    %v2755 = vadd.f32 %v2319, %v2754
    %2756 = vadd.xlane.f32.xlu0 %v2755
    %v2757 = vpop.xlane.xlu0 %2756
    %v2758 = vsel %vm2697, %v2325, 0.0
    %v2759 = vadd.f32 %v2323, %v2758
    %2760 = vadd.xlane.f32.xlu0 %v2759
    %v2761 = vpop.xlane.xlu0 %2760
    %v2762 = vsel %vm2697, %v2331, 0.0
    %v2763 = vadd.f32 %v2329, %v2762
    %2764 = vadd.xlane.f32.xlu0 %v2763
    %v2765 = vpop.xlane.xlu0 %2764
    %v2766 = vsel %vm2697, %v2335, 0.0
    %v2767 = vadd.f32 %v2333, %v2766
    %2768 = vadd.xlane.f32.xlu0 %v2767
    %v2769 = vpop.xlane.xlu0 %2768
    %v2770 = vsel %vm2697, %v2341, 0.0
    %v2771 = vadd.f32 %v2339, %v2770
    %2772 = vadd.xlane.f32.xlu0 %v2771
    %v2773 = vpop.xlane.xlu0 %2772
    %v2774 = vsel %vm2697, %v2345, 0.0
    %v2775 = vadd.f32 %v2343, %v2774
    %2776 = vadd.xlane.f32.xlu0 %v2775
    %v2777 = vpop.xlane.xlu0 %2776
    %v2778 = vsel %vm2697, %v2351, 0.0
    %v2779 = vadd.f32 %v2349, %v2778
    %2780 = vadd.xlane.f32.xlu0 %v2779
    %v2781 = vpop.xlane.xlu0 %2780
    %v2782 = vsel %vm2697, %v2355, 0.0
    %v2783 = vadd.f32 %v2353, %v2782
    %2784 = vadd.xlane.f32.xlu0 %v2783
    %v2785 = vpop.xlane.xlu0 %2784
    %v2786 = vsel %vm2697, %v2361, 0.0
    %v2787 = vadd.f32 %v2359, %v2786
    %2788 = vadd.xlane.f32.xlu0 %v2787
    %v2789 = vpop.xlane.xlu0 %2788
    %v2790 = vsel %vm2697, %v2365, 0.0
    %v2791 = vadd.f32 %v2363, %v2790
    %2792 = vadd.xlane.f32.xlu0 %v2791
    %v2793 = vpop.xlane.xlu0 %2792
    %v2794 = vsel %vm2697, %v2371, 0.0
    %v2795 = vadd.f32 %v2369, %v2794
    %2796 = vadd.xlane.f32.xlu0 %v2795
    %v2797 = vpop.xlane.xlu0 %2796
    %v2798 = vsel %vm2697, %v2375, 0.0
    %v2799 = vadd.f32 %v2373, %v2798
    %2800 = vadd.xlane.f32.xlu0 %v2799
    %v2801 = vpop.xlane.xlu0 %2800
    %v2802 = vsel %vm2697, %v2381, 0.0
    %v2803 = vadd.f32 %v2379, %v2802
    %2804 = vadd.xlane.f32.xlu0 %v2803
    %v2805 = vpop.xlane.xlu0 %2804
    %v2806 = vsel %vm2697, %v2385, 0.0
    %v2807 = vadd.f32 %v2383, %v2806
    %2808 = vadd.xlane.f32.xlu0 %v2807
    %v2809 = vpop.xlane.xlu0 %2808
    %v2810 = vsel %vm2697, %v2391, 0.0
    %v2811 = vadd.f32 %v2389, %v2810
    %2812 = vadd.xlane.f32.xlu0 %v2811
    %v2813 = vpop.xlane.xlu0 %2812
    %v2814 = vsel %vm2697, %v2395, 0.0
    %v2815 = vadd.f32 %v2393, %v2814
    %2816 = vadd.xlane.f32.xlu0 %v2815
    %v2817 = vpop.xlane.xlu0 %2816
    %v2818 = vsel %vm2697, %v2401, 0.0
    %v2819 = vadd.f32 %v2399, %v2818
    %2820 = vadd.xlane.f32.xlu0 %v2819
    %v2821 = vpop.xlane.xlu0 %2820
    %v2822 = vsel %vm2697, %v2405, 0.0
    %v2823 = vadd.f32 %v2403, %v2822
    %2824 = vadd.xlane.f32.xlu0 %v2823
    %v2825 = vpop.xlane.xlu0 %2824
    %v2826 = vsel %vm2697, %v2411, 0.0
    %v2827 = vadd.f32 %v2409, %v2826
    %2828 = vadd.xlane.f32.xlu0 %v2827
    %v2829 = vpop.xlane.xlu0 %2828
    %v2830 = vsel %vm2697, %v2415, 0.0
    %v2831 = vadd.f32 %v2413, %v2830
    %2832 = vadd.xlane.f32.xlu0 %v2831
    %v2833 = vpop.xlane.xlu0 %2832
    %v2834 = vsel %vm2697, %v2421, 0.0
    %v2835 = vadd.f32 %v2419, %v2834
    %2836 = vadd.xlane.f32.xlu0 %v2835
    %v2837 = vpop.xlane.xlu0 %2836
    %v2838 = vsel %vm2697, %v2425, 0.0
    %v2839 = vadd.f32 %v2423, %v2838
    %2840 = vadd.xlane.f32.xlu0 %v2839
    %v2841 = vpop.xlane.xlu0 %2840
    %v2842 = vsel %vm2697, %v2431, 0.0
    %v2843 = vadd.f32 %v2429, %v2842
    %2844 = vadd.xlane.f32.xlu0 %v2843
    %v2845 = vpop.xlane.xlu0 %2844
    %v2846 = vsel %vm2697, %v2435, 0.0
    %v2847 = vadd.f32 %v2433, %v2846
    %2848 = vadd.xlane.f32.xlu0 %v2847
    %v2849 = vpop.xlane.xlu0 %2848
    %v2850 = vsel %vm2697, %v2441, 0.0
    %v2851 = vadd.f32 %v2439, %v2850
    %2852 = vadd.xlane.f32.xlu0 %v2851
    %v2853 = vpop.xlane.xlu0 %2852
    %v2854 = vsel %vm2697, %v2445, 0.0
    %v2855 = vadd.f32 %v2443, %v2854
    %2856 = vadd.xlane.f32.xlu0 %v2855
    %v2857 = vpop.xlane.xlu0 %2856
    %v2858 = vsel %vm2697, %v2451, 0.0
    %v2859 = vadd.f32 %v2449, %v2858
    %2860 = vadd.xlane.f32.xlu0 %v2859
    %v2861 = vpop.xlane.xlu0 %2860
    %v2862 = vsel %vm2697, %v2455, 0.0
    %v2863 = vadd.f32 %v2453, %v2862
    %2864 = vadd.xlane.f32.xlu0 %v2863
    %v2865 = vpop.xlane.xlu0 %2864
    %v2866 = vsel %vm2697, %v2461, 0.0
    %v2867 = vadd.f32 %v2459, %v2866
    %2868 = vadd.xlane.f32.xlu0 %v2867
    %v2869 = vpop.xlane.xlu0 %2868
    %v2870 = vsel %vm2697, %v2465, 0.0
    %v2871 = vadd.f32 %v2463, %v2870
    %2872 = vadd.xlane.f32.xlu0 %v2871
    %v2873 = vpop.xlane.xlu0 %2872
    %v2874 = vsel %vm2697, %v2471, 0.0
    %v2875 = vadd.f32 %v2469, %v2874
    %2876 = vadd.xlane.f32.xlu0 %v2875
    %v2877 = vpop.xlane.xlu0 %2876
    %v2878 = vsel %vm2697, %v2475, 0.0
    %v2879 = vadd.f32 %v2473, %v2878
    %2880 = vadd.xlane.f32.xlu0 %v2879
    %v2881 = vpop.xlane.xlu0 %2880
    %v2882 = vsel %vm2697, %v2481, 0.0
    %v2883 = vadd.f32 %v2479, %v2882
    %2884 = vadd.xlane.f32.xlu0 %v2883
    %v2885 = vpop.xlane.xlu0 %2884
    %v2886 = vsel %vm2697, %v2485, 0.0
    %v2887 = vadd.f32 %v2483, %v2886
    %2888 = vadd.xlane.f32.xlu0 %v2887
    %v2889 = vpop.xlane.xlu0 %2888
    %v2890 = vsel %vm2697, %v2491, 0.0
    %v2891 = vadd.f32 %v2489, %v2890
    %2892 = vadd.xlane.f32.xlu0 %v2891
    %v2893 = vpop.xlane.xlu0 %2892
    %v2894 = vsel %vm2697, %v2495, 0.0
    %v2895 = vadd.f32 %v2493, %v2894
    %2896 = vadd.xlane.f32.xlu0 %v2895
    %v2897 = vpop.xlane.xlu0 %2896
    %v2898 = vsel %vm2697, %v2501, 0.0
    %v2899 = vadd.f32 %v2499, %v2898
    %2900 = vadd.xlane.f32.xlu0 %v2899
    %v2901 = vpop.xlane.xlu0 %2900
    %v2902 = vsel %vm2697, %v2505, 0.0
    %v2903 = vadd.f32 %v2503, %v2902
    %2904 = vadd.xlane.f32.xlu0 %v2903
    %v2905 = vpop.xlane.xlu0 %2904
    %v2906 = vsel %vm2697, %v2511, 0.0
    %v2907 = vadd.f32 %v2509, %v2906
    %2908 = vadd.xlane.f32.xlu0 %v2907
    %v2909 = vpop.xlane.xlu0 %2908
    %v2910 = vsel %vm2697, %v2515, 0.0
    %v2911 = vadd.f32 %v2513, %v2910
    %2912 = vadd.xlane.f32.xlu0 %v2911
    %v2913 = vpop.xlane.xlu0 %2912
    %v2914 = vsel %vm2697, %v2521, 0.0
    %v2915 = vadd.f32 %v2519, %v2914
    %2916 = vadd.xlane.f32.xlu0 %v2915
    %v2917 = vpop.xlane.xlu0 %2916
    %v2918 = vsel %vm2697, %v2525, 0.0
    %v2919 = vadd.f32 %v2523, %v2918
    %2920 = vadd.xlane.f32.xlu0 %v2919
    %v2921 = vpop.xlane.xlu0 %2920
    %v2922 = vsel %vm2697, %v2531, 0.0
    %v2923 = vadd.f32 %v2529, %v2922
    %2924 = vadd.xlane.f32.xlu0 %v2923
    %v2925 = vpop.xlane.xlu0 %2924
    %v2926 = vsel %vm2697, %v2535, 0.0
    %v2927 = vadd.f32 %v2533, %v2926
    %2928 = vadd.xlane.f32.xlu0 %v2927
    %v2929 = vpop.xlane.xlu0 %2928
    %v2930 = vsel %vm2697, %v2541, 0.0
    %v2931 = vadd.f32 %v2539, %v2930
    %2932 = vadd.xlane.f32.xlu0 %v2931
    %v2933 = vpop.xlane.xlu0 %2932
    %v2934 = vsel %vm2697, %v2545, 0.0
    %v2935 = vadd.f32 %v2543, %v2934
    %2936 = vadd.xlane.f32.xlu0 %v2935
    %v2937 = vpop.xlane.xlu0 %2936
    %v2938 = vsel %vm2697, %v2551, 0.0
    %v2939 = vadd.f32 %v2549, %v2938
    %2940 = vadd.xlane.f32.xlu0 %v2939
    %v2941 = vpop.xlane.xlu0 %2940
    %v2942 = vsel %vm2697, %v2555, 0.0
    %v2943 = vadd.f32 %v2553, %v2942
    %2944 = vadd.xlane.f32.xlu0 %v2943
    %v2945 = vpop.xlane.xlu0 %2944
    %v2946 = vsel %vm2697, %v2561, 0.0
    %v2947 = vadd.f32 %v2559, %v2946
    %2948 = vadd.xlane.f32.xlu0 %v2947
    %v2949 = vpop.xlane.xlu0 %2948
    %v2950 = vsel %vm2697, %v2565, 0.0
    %v2951 = vadd.f32 %v2563, %v2950
    %2952 = vadd.xlane.f32.xlu0 %v2951
    %v2953 = vpop.xlane.xlu0 %2952
    %v2954 = vsel %vm2697, %v2571, 0.0
    %v2955 = vadd.f32 %v2569, %v2954
    %2956 = vadd.xlane.f32.xlu0 %v2955
    %v2957 = vpop.xlane.xlu0 %2956
    %v2958 = vsel %vm2697, %v2575, 0.0
    %v2959 = vadd.f32 %v2573, %v2958
    %2960 = vadd.xlane.f32.xlu0 %v2959
    %v2961 = vpop.xlane.xlu0 %2960
    %v2962 = vsel %vm2697, %v2581, 0.0
    %v2963 = vadd.f32 %v2579, %v2962
    %2964 = vadd.xlane.f32.xlu0 %v2963
    %v2965 = vpop.xlane.xlu0 %2964
    %v2966 = vsel %vm2697, %v2585, 0.0
    %v2967 = vadd.f32 %v2583, %v2966
    %2968 = vadd.xlane.f32.xlu0 %v2967
    %v2969 = vpop.xlane.xlu0 %2968
    %v2970 = vsel %vm2697, %v2591, 0.0
    %v2971 = vadd.f32 %v2589, %v2970
    %2972 = vadd.xlane.f32.xlu0 %v2971
    %v2973 = vpop.xlane.xlu0 %2972
    %v2974 = vsel %vm2697, %v2595, 0.0
    %v2975 = vadd.f32 %v2593, %v2974
    %2976 = vadd.xlane.f32.xlu0 %v2975
    %v2977 = vpop.xlane.xlu0 %2976
    %v2978 = vsel %vm2697, %v2601, 0.0
    %v2979 = vadd.f32 %v2599, %v2978
    %2980 = vadd.xlane.f32.xlu0 %v2979
    %v2981 = vpop.xlane.xlu0 %2980
    %v2982 = vsel %vm2697, %v2605, 0.0
    %v2983 = vadd.f32 %v2603, %v2982
    %2984 = vadd.xlane.f32.xlu0 %v2983
    %v2985 = vpop.xlane.xlu0 %2984
    %v2986 = vsel %vm2697, %v2611, 0.0
    %v2987 = vadd.f32 %v2609, %v2986
    %2988 = vadd.xlane.f32.xlu0 %v2987
    %v2989 = vpop.xlane.xlu0 %2988
    %v2990 = vsel %vm2697, %v2615, 0.0
    %v2991 = vadd.f32 %v2613, %v2990
    %2992 = vadd.xlane.f32.xlu0 %v2991
    %v2993 = vpop.xlane.xlu0 %2992
    %v2994 = vsel %vm2697, %v2621, 0.0
    %v2995 = vadd.f32 %v2619, %v2994
    %2996 = vadd.xlane.f32.xlu0 %v2995
    %v2997 = vpop.xlane.xlu0 %2996
    %v2998 = vsel %vm2697, %v2625, 0.0
    %v2999 = vadd.f32 %v2623, %v2998
    %3000 = vadd.xlane.f32.xlu0 %v2999
    %v3001 = vpop.xlane.xlu0 %3000
    %v3002 = vsel %vm2697, %v2631, 0.0
    %v3003 = vadd.f32 %v2629, %v3002
    %3004 = vadd.xlane.f32.xlu0 %v3003
    %v3005 = vpop.xlane.xlu0 %3004
    %v3006 = vsel %vm2697, %v2635, 0.0
    %v3007 = vadd.f32 %v2633, %v3006
    %3008 = vadd.xlane.f32.xlu0 %v3007
    %v3009 = vpop.xlane.xlu0 %3008
    %v3010 = vsel %vm2697, %v2641, 0.0
    %v3011 = vadd.f32 %v2639, %v3010
    %3012 = vadd.xlane.f32.xlu0 %v3011
    %v3013 = vpop.xlane.xlu0 %3012
    %v3014 = vsel %vm2697, %v2645, 0.0
    %v3015 = vadd.f32 %v2643, %v3014
    %3016 = vadd.xlane.f32.xlu0 %v3015
    %v3017 = vpop.xlane.xlu0 %3016
    %v3018 = vsel %vm2697, %v2651, 0.0
    %v3019 = vadd.f32 %v2649, %v3018
    %3020 = vadd.xlane.f32.xlu0 %v3019
    %v3021 = vpop.xlane.xlu0 %3020
    %v3022 = vsel %vm2697, %v2655, 0.0
    %v3023 = vadd.f32 %v2653, %v3022
    %3024 = vadd.xlane.f32.xlu0 %v3023
    %v3025 = vpop.xlane.xlu0 %3024
    %v3026 = vsel %vm2697, %v2661, 0.0
    %v3027 = vadd.f32 %v2659, %v3026
    %3028 = vadd.xlane.f32.xlu0 %v3027
    %v3029 = vpop.xlane.xlu0 %3028
    %v3030 = vsel %vm2697, %v2665, 0.0
    %v3031 = vadd.f32 %v2663, %v3030
    %3032 = vadd.xlane.f32.xlu0 %v3031
    %v3033 = vpop.xlane.xlu0 %3032
    %v3034 = vsel %vm2697, %v2671, 0.0
    %v3035 = vadd.f32 %v2669, %v3034
    %3036 = vadd.xlane.f32.xlu0 %v3035
    %v3037 = vpop.xlane.xlu0 %3036
    %v3038 = vsel %vm2697, %v2675, 0.0
    %v3039 = vadd.f32 %v2673, %v3038
    %3040 = vadd.xlane.f32.xlu0 %v3039
    %v3041 = vpop.xlane.xlu0 %3040
    %v3042 = vsel %vm2697, %v2681, 0.0
    %v3043 = vadd.f32 %v2679, %v3042
    %3044 = vadd.xlane.f32.xlu0 %v3043
    %v3045 = vpop.xlane.xlu0 %3044
    %v3046 = vsel %vm2697, %v2685, 0.0
    %v3047 = vadd.f32 %v2683, %v3046
    %3048 = vadd.xlane.f32.xlu0 %v3047
    %v3049 = vpop.xlane.xlu0 %3048
    %v3050 = vsel %vm2697, %v2691, 0.0
    %v3051 = vadd.f32 %v2689, %v3050
    %3052 = vadd.xlane.f32.xlu0 %v3051
    %v3053 = vpop.xlane.xlu0 %3052
    %v3054 = vsel %vm2697, %v2695, 0.0
    %v3055 = vadd.f32 %v2693, %v3054
    %3056 = vadd.xlane.f32.xlu0 %v3055
    %v3057 = vpop.xlane.xlu0 %3056
    %v3058 = vmul.f32 %v2249, %v2249
    %v3059 = vmul.f32 %v2251, %v2251
    %v3060 = vmul.f32 %v2253, %v2253
    %v3061 = vmul.f32 %v2255, %v2255
    %v3062 = vmul.f32 %v2259, %v2259
    %v3063 = vmul.f32 %v2261, %v2261
    %v3064 = vmul.f32 %v2263, %v2263
    %v3065 = vmul.f32 %v2265, %v2265
    %v3066 = vmul.f32 %v2269, %v2269
    %v3067 = vmul.f32 %v2271, %v2271
    %v3068 = vmul.f32 %v2273, %v2273
    %v3069 = vmul.f32 %v2275, %v2275
    %v3070 = vmul.f32 %v2279, %v2279
    %v3071 = vmul.f32 %v2281, %v2281
    %v3072 = vmul.f32 %v2283, %v2283
    %v3073 = vmul.f32 %v2285, %v2285
    %v3074 = vmul.f32 %v2289, %v2289
    %v3075 = vmul.f32 %v2291, %v2291
    %v3076 = vmul.f32 %v2293, %v2293
    %v3077 = vmul.f32 %v2295, %v2295
    %v3078 = vmul.f32 %v2299, %v2299
    %v3079 = vmul.f32 %v2301, %v2301
    %v3080 = vmul.f32 %v2303, %v2303
    %v3081 = vmul.f32 %v2305, %v2305
    %v3082 = vmul.f32 %v2309, %v2309
    %v3083 = vmul.f32 %v2311, %v2311
    %v3084 = vmul.f32 %v2313, %v2313
    %v3085 = vmul.f32 %v2315, %v2315
    %v3086 = vmul.f32 %v2319, %v2319
    %v3087 = vmul.f32 %v2321, %v2321
    %v3088 = vmul.f32 %v2323, %v2323
    %v3089 = vmul.f32 %v2325, %v2325
    %v3090 = vmul.f32 %v2329, %v2329
    %v3091 = vmul.f32 %v2331, %v2331
    %v3092 = vmul.f32 %v2333, %v2333
    %v3093 = vmul.f32 %v2335, %v2335
    %v3094 = vmul.f32 %v2339, %v2339
    %v3095 = vmul.f32 %v2341, %v2341
    %v3096 = vmul.f32 %v2343, %v2343
    %v3097 = vmul.f32 %v2345, %v2345
    %v3098 = vmul.f32 %v2349, %v2349
    %v3099 = vmul.f32 %v2351, %v2351
    %v3100 = vmul.f32 %v2353, %v2353
    %v3101 = vmul.f32 %v2355, %v2355
    %v3102 = vmul.f32 %v2359, %v2359
    %v3103 = vmul.f32 %v2361, %v2361
    %v3104 = vmul.f32 %v2363, %v2363
    %v3105 = vmul.f32 %v2365, %v2365
    %v3106 = vmul.f32 %v2369, %v2369
    %v3107 = vmul.f32 %v2371, %v2371
    %v3108 = vmul.f32 %v2373, %v2373
    %v3109 = vmul.f32 %v2375, %v2375
    %v3110 = vmul.f32 %v2379, %v2379
    %v3111 = vmul.f32 %v2381, %v2381
    %v3112 = vmul.f32 %v2383, %v2383
    %v3113 = vmul.f32 %v2385, %v2385
    %v3114 = vmul.f32 %v2389, %v2389
    %v3115 = vmul.f32 %v2391, %v2391
    %v3116 = vmul.f32 %v2393, %v2393
    %v3117 = vmul.f32 %v2395, %v2395
    %v3118 = vmul.f32 %v2399, %v2399
    %v3119 = vmul.f32 %v2401, %v2401
    %v3120 = vmul.f32 %v2403, %v2403
    %v3121 = vmul.f32 %v2405, %v2405
    %v3122 = vmul.f32 %v2409, %v2409
    %v3123 = vmul.f32 %v2411, %v2411
    %v3124 = vmul.f32 %v2413, %v2413
    %v3125 = vmul.f32 %v2415, %v2415
    %v3126 = vmul.f32 %v2419, %v2419
    %v3127 = vmul.f32 %v2421, %v2421
    %v3128 = vmul.f32 %v2423, %v2423
    %v3129 = vmul.f32 %v2425, %v2425
    %v3130 = vmul.f32 %v2429, %v2429
    %v3131 = vmul.f32 %v2431, %v2431
    %v3132 = vmul.f32 %v2433, %v2433
    %v3133 = vmul.f32 %v2435, %v2435
    %v3134 = vmul.f32 %v2439, %v2439
    %v3135 = vmul.f32 %v2441, %v2441
    %v3136 = vmul.f32 %v2443, %v2443
    %v3137 = vmul.f32 %v2445, %v2445
    %v3138 = vmul.f32 %v2449, %v2449
    %v3139 = vmul.f32 %v2451, %v2451
    %v3140 = vmul.f32 %v2453, %v2453
    %v3141 = vmul.f32 %v2455, %v2455
    %v3142 = vmul.f32 %v2459, %v2459
    %v3143 = vmul.f32 %v2461, %v2461
    %v3144 = vmul.f32 %v2463, %v2463
    %v3145 = vmul.f32 %v2465, %v2465
    %v3146 = vmul.f32 %v2469, %v2469
    %v3147 = vmul.f32 %v2471, %v2471
    %v3148 = vmul.f32 %v2473, %v2473
    %v3149 = vmul.f32 %v2475, %v2475
    %v3150 = vmul.f32 %v2479, %v2479
    %v3151 = vmul.f32 %v2481, %v2481
    %v3152 = vmul.f32 %v2483, %v2483
    %v3153 = vmul.f32 %v2485, %v2485
    %v3154 = vmul.f32 %v2489, %v2489
    %v3155 = vmul.f32 %v2491, %v2491
    %v3156 = vmul.f32 %v2493, %v2493
    %v3157 = vmul.f32 %v2495, %v2495
    %v3158 = vmul.f32 %v2499, %v2499
    %v3159 = vmul.f32 %v2501, %v2501
    %v3160 = vmul.f32 %v2503, %v2503
    %v3161 = vmul.f32 %v2505, %v2505
    %v3162 = vmul.f32 %v2509, %v2509
    %v3163 = vmul.f32 %v2511, %v2511
    %v3164 = vmul.f32 %v2513, %v2513
    %v3165 = vmul.f32 %v2515, %v2515
    %v3166 = vmul.f32 %v2519, %v2519
    %v3167 = vmul.f32 %v2521, %v2521
    %v3168 = vmul.f32 %v2523, %v2523
    %v3169 = vmul.f32 %v2525, %v2525
    %v3170 = vmul.f32 %v2529, %v2529
    %v3171 = vmul.f32 %v2531, %v2531
    %v3172 = vmul.f32 %v2533, %v2533
    %v3173 = vmul.f32 %v2535, %v2535
    %v3174 = vmul.f32 %v2539, %v2539
    %v3175 = vmul.f32 %v2541, %v2541
    %v3176 = vmul.f32 %v2543, %v2543
    %v3177 = vmul.f32 %v2545, %v2545
    %v3178 = vmul.f32 %v2549, %v2549
    %v3179 = vmul.f32 %v2551, %v2551
    %v3180 = vmul.f32 %v2553, %v2553
    %v3181 = vmul.f32 %v2555, %v2555
    %v3182 = vmul.f32 %v2559, %v2559
    %v3183 = vmul.f32 %v2561, %v2561
    %v3184 = vmul.f32 %v2563, %v2563
    %v3185 = vmul.f32 %v2565, %v2565
    %v3186 = vmul.f32 %v2569, %v2569
    %v3187 = vmul.f32 %v2571, %v2571
    %v3188 = vmul.f32 %v2573, %v2573
    %v3189 = vmul.f32 %v2575, %v2575
    %v3190 = vmul.f32 %v2579, %v2579
    %v3191 = vmul.f32 %v2581, %v2581
    %v3192 = vmul.f32 %v2583, %v2583
    %v3193 = vmul.f32 %v2585, %v2585
    %v3194 = vmul.f32 %v2589, %v2589
    %v3195 = vmul.f32 %v2591, %v2591
    %v3196 = vmul.f32 %v2593, %v2593
    %v3197 = vmul.f32 %v2595, %v2595
    %v3198 = vmul.f32 %v2599, %v2599
    %v3199 = vmul.f32 %v2601, %v2601
    %v3200 = vmul.f32 %v2603, %v2603
    %v3201 = vmul.f32 %v2605, %v2605
    %v3202 = vmul.f32 %v2609, %v2609
    %v3203 = vmul.f32 %v2611, %v2611
    %v3204 = vmul.f32 %v2613, %v2613
    %v3205 = vmul.f32 %v2615, %v2615
    %v3206 = vmul.f32 %v2619, %v2619
    %v3207 = vmul.f32 %v2621, %v2621
    %v3208 = vmul.f32 %v2623, %v2623
    %v3209 = vmul.f32 %v2625, %v2625
    %v3210 = vmul.f32 %v2629, %v2629
    %v3211 = vmul.f32 %v2631, %v2631
    %v3212 = vmul.f32 %v2633, %v2633
    %v3213 = vmul.f32 %v2635, %v2635
    %v3214 = vmul.f32 %v2639, %v2639
    %v3215 = vmul.f32 %v2641, %v2641
    %v3216 = vmul.f32 %v2643, %v2643
    %v3217 = vmul.f32 %v2645, %v2645
    %v3218 = vmul.f32 %v2649, %v2649
    %v3219 = vmul.f32 %v2651, %v2651
    %v3220 = vmul.f32 %v2653, %v2653
    %v3221 = vmul.f32 %v2655, %v2655
    %v3222 = vmul.f32 %v2659, %v2659
    %v3223 = vmul.f32 %v2661, %v2661
    %v3224 = vmul.f32 %v2663, %v2663
    %v3225 = vmul.f32 %v2665, %v2665
    %v3226 = vmul.f32 %v2669, %v2669
    %v3227 = vmul.f32 %v2671, %v2671
    %v3228 = vmul.f32 %v2673, %v2673
    %v3229 = vmul.f32 %v2675, %v2675
    %v3230 = vmul.f32 %v2679, %v2679
    %v3231 = vmul.f32 %v2681, %v2681
    %v3232 = vmul.f32 %v2683, %v2683
    %v3233 = vmul.f32 %v2685, %v2685
    %v3234 = vmul.f32 %v2689, %v2689
    %v3235 = vmul.f32 %v2691, %v2691
    %v3236 = vmul.f32 %v2693, %v2693
    %v3237 = vmul.f32 %v2695, %v2695
    %v3238 = vsel %vm2697, %v3059, 0.0
    %v3239 = vadd.f32 %v3058, %v3238
    %3240 = vadd.xlane.f32.xlu0 %v3239
    %v3241 = vpop.xlane.xlu0 %3240
    %v3242 = vsel %vm2697, %v3061, 0.0
    %v3243 = vadd.f32 %v3060, %v3242
    %3244 = vadd.xlane.f32.xlu0 %v3243
    %v3245 = vpop.xlane.xlu0 %3244
    %v3246 = vsel %vm2697, %v3063, 0.0
    %v3247 = vadd.f32 %v3062, %v3246
    %3248 = vadd.xlane.f32.xlu0 %v3247
    %v3249 = vpop.xlane.xlu0 %3248
    %v3250 = vsel %vm2697, %v3065, 0.0
    %v3251 = vadd.f32 %v3064, %v3250
    %3252 = vadd.xlane.f32.xlu0 %v3251
    %v3253 = vpop.xlane.xlu0 %3252
    %v3254 = vsel %vm2697, %v3067, 0.0
    %v3255 = vadd.f32 %v3066, %v3254
    %3256 = vadd.xlane.f32.xlu0 %v3255
    %v3257 = vpop.xlane.xlu0 %3256
    %v3258 = vsel %vm2697, %v3069, 0.0
    %v3259 = vadd.f32 %v3068, %v3258
    %3260 = vadd.xlane.f32.xlu0 %v3259
    %v3261 = vpop.xlane.xlu0 %3260
    %v3262 = vsel %vm2697, %v3071, 0.0
    %v3263 = vadd.f32 %v3070, %v3262
    %3264 = vadd.xlane.f32.xlu0 %v3263
    %v3265 = vpop.xlane.xlu0 %3264
    %v3266 = vsel %vm2697, %v3073, 0.0
    %v3267 = vadd.f32 %v3072, %v3266
    %3268 = vadd.xlane.f32.xlu0 %v3267
    %v3269 = vpop.xlane.xlu0 %3268
    %v3270 = vsel %vm2697, %v3075, 0.0
    %v3271 = vadd.f32 %v3074, %v3270
    %3272 = vadd.xlane.f32.xlu0 %v3271
    %v3273 = vpop.xlane.xlu0 %3272
    %v3274 = vsel %vm2697, %v3077, 0.0
    %v3275 = vadd.f32 %v3076, %v3274
    %3276 = vadd.xlane.f32.xlu0 %v3275
    %v3277 = vpop.xlane.xlu0 %3276
    %v3278 = vsel %vm2697, %v3079, 0.0
    %v3279 = vadd.f32 %v3078, %v3278
    %3280 = vadd.xlane.f32.xlu0 %v3279
    %v3281 = vpop.xlane.xlu0 %3280
    %v3282 = vsel %vm2697, %v3081, 0.0
    %v3283 = vadd.f32 %v3080, %v3282
    %3284 = vadd.xlane.f32.xlu0 %v3283
    %v3285 = vpop.xlane.xlu0 %3284
    %v3286 = vsel %vm2697, %v3083, 0.0
    %v3287 = vadd.f32 %v3082, %v3286
    %3288 = vadd.xlane.f32.xlu0 %v3287
    %v3289 = vpop.xlane.xlu0 %3288
    %v3290 = vsel %vm2697, %v3085, 0.0
    %v3291 = vadd.f32 %v3084, %v3290
    %3292 = vadd.xlane.f32.xlu0 %v3291
    %v3293 = vpop.xlane.xlu0 %3292
    %v3294 = vsel %vm2697, %v3087, 0.0
    %v3295 = vadd.f32 %v3086, %v3294
    %3296 = vadd.xlane.f32.xlu0 %v3295
    %v3297 = vpop.xlane.xlu0 %3296
    %v3298 = vsel %vm2697, %v3089, 0.0
    %v3299 = vadd.f32 %v3088, %v3298
    %3300 = vadd.xlane.f32.xlu0 %v3299
    %v3301 = vpop.xlane.xlu0 %3300
    %v3302 = vsel %vm2697, %v3091, 0.0
    %v3303 = vadd.f32 %v3090, %v3302
    %3304 = vadd.xlane.f32.xlu0 %v3303
    %v3305 = vpop.xlane.xlu0 %3304
    %v3306 = vsel %vm2697, %v3093, 0.0
    %v3307 = vadd.f32 %v3092, %v3306
    %3308 = vadd.xlane.f32.xlu0 %v3307
    %v3309 = vpop.xlane.xlu0 %3308
    %v3310 = vsel %vm2697, %v3095, 0.0
    %v3311 = vadd.f32 %v3094, %v3310
    %3312 = vadd.xlane.f32.xlu0 %v3311
    %v3313 = vpop.xlane.xlu0 %3312
    %v3314 = vsel %vm2697, %v3097, 0.0
    %v3315 = vadd.f32 %v3096, %v3314
    %3316 = vadd.xlane.f32.xlu0 %v3315
    %v3317 = vpop.xlane.xlu0 %3316
    %v3318 = vsel %vm2697, %v3099, 0.0
    %v3319 = vadd.f32 %v3098, %v3318
    %3320 = vadd.xlane.f32.xlu0 %v3319
    %v3321 = vpop.xlane.xlu0 %3320
    %v3322 = vsel %vm2697, %v3101, 0.0
    %v3323 = vadd.f32 %v3100, %v3322
    %3324 = vadd.xlane.f32.xlu0 %v3323
    %v3325 = vpop.xlane.xlu0 %3324
    %v3326 = vsel %vm2697, %v3103, 0.0
    %v3327 = vadd.f32 %v3102, %v3326
    %3328 = vadd.xlane.f32.xlu0 %v3327
    %v3329 = vpop.xlane.xlu0 %3328
    %v3330 = vsel %vm2697, %v3105, 0.0
    %v3331 = vadd.f32 %v3104, %v3330
    %3332 = vadd.xlane.f32.xlu0 %v3331
    %v3333 = vpop.xlane.xlu0 %3332
    %v3334 = vsel %vm2697, %v3107, 0.0
    %v3335 = vadd.f32 %v3106, %v3334
    %3336 = vadd.xlane.f32.xlu0 %v3335
    %v3337 = vpop.xlane.xlu0 %3336
    %v3338 = vsel %vm2697, %v3109, 0.0
    %v3339 = vadd.f32 %v3108, %v3338
    %3340 = vadd.xlane.f32.xlu0 %v3339
    %v3341 = vpop.xlane.xlu0 %3340
    %v3342 = vsel %vm2697, %v3111, 0.0
    %v3343 = vadd.f32 %v3110, %v3342
    %3344 = vadd.xlane.f32.xlu0 %v3343
    %v3345 = vpop.xlane.xlu0 %3344
    %v3346 = vsel %vm2697, %v3113, 0.0
    %v3347 = vadd.f32 %v3112, %v3346
    %3348 = vadd.xlane.f32.xlu0 %v3347
    %v3349 = vpop.xlane.xlu0 %3348
    %v3350 = vsel %vm2697, %v3115, 0.0
    %v3351 = vadd.f32 %v3114, %v3350
    %3352 = vadd.xlane.f32.xlu0 %v3351
    %v3353 = vpop.xlane.xlu0 %3352
    %v3354 = vsel %vm2697, %v3117, 0.0
    %v3355 = vadd.f32 %v3116, %v3354
    %3356 = vadd.xlane.f32.xlu0 %v3355
    %v3357 = vpop.xlane.xlu0 %3356
    %v3358 = vsel %vm2697, %v3119, 0.0
    %v3359 = vadd.f32 %v3118, %v3358
    %3360 = vadd.xlane.f32.xlu0 %v3359
    %v3361 = vpop.xlane.xlu0 %3360
    %v3362 = vsel %vm2697, %v3121, 0.0
    %v3363 = vadd.f32 %v3120, %v3362
    %3364 = vadd.xlane.f32.xlu0 %v3363
    %v3365 = vpop.xlane.xlu0 %3364
    %v3366 = vsel %vm2697, %v3123, 0.0
    %v3367 = vadd.f32 %v3122, %v3366
    %3368 = vadd.xlane.f32.xlu0 %v3367
    %v3369 = vpop.xlane.xlu0 %3368
    %v3370 = vsel %vm2697, %v3125, 0.0
    %v3371 = vadd.f32 %v3124, %v3370
    %3372 = vadd.xlane.f32.xlu0 %v3371
    %v3373 = vpop.xlane.xlu0 %3372
    %v3374 = vsel %vm2697, %v3127, 0.0
    %v3375 = vadd.f32 %v3126, %v3374
    %3376 = vadd.xlane.f32.xlu0 %v3375
    %v3377 = vpop.xlane.xlu0 %3376
    %v3378 = vsel %vm2697, %v3129, 0.0
    %v3379 = vadd.f32 %v3128, %v3378
    %3380 = vadd.xlane.f32.xlu0 %v3379
    %v3381 = vpop.xlane.xlu0 %3380
    %v3382 = vsel %vm2697, %v3131, 0.0
    %v3383 = vadd.f32 %v3130, %v3382
    %3384 = vadd.xlane.f32.xlu0 %v3383
    %v3385 = vpop.xlane.xlu0 %3384
    %v3386 = vsel %vm2697, %v3133, 0.0
    %v3387 = vadd.f32 %v3132, %v3386
    %3388 = vadd.xlane.f32.xlu0 %v3387
    %v3389 = vpop.xlane.xlu0 %3388
    %v3390 = vsel %vm2697, %v3135, 0.0
    %v3391 = vadd.f32 %v3134, %v3390
    %3392 = vadd.xlane.f32.xlu0 %v3391
    %v3393 = vpop.xlane.xlu0 %3392
    %v3394 = vsel %vm2697, %v3137, 0.0
    %v3395 = vadd.f32 %v3136, %v3394
    %3396 = vadd.xlane.f32.xlu0 %v3395
    %v3397 = vpop.xlane.xlu0 %3396
    %v3398 = vsel %vm2697, %v3139, 0.0
    %v3399 = vadd.f32 %v3138, %v3398
    %3400 = vadd.xlane.f32.xlu0 %v3399
    %v3401 = vpop.xlane.xlu0 %3400
    %v3402 = vsel %vm2697, %v3141, 0.0
    %v3403 = vadd.f32 %v3140, %v3402
    %3404 = vadd.xlane.f32.xlu0 %v3403
    %v3405 = vpop.xlane.xlu0 %3404
    %v3406 = vsel %vm2697, %v3143, 0.0
    %v3407 = vadd.f32 %v3142, %v3406
    %3408 = vadd.xlane.f32.xlu0 %v3407
    %v3409 = vpop.xlane.xlu0 %3408
    %v3410 = vsel %vm2697, %v3145, 0.0
    %v3411 = vadd.f32 %v3144, %v3410
    %3412 = vadd.xlane.f32.xlu0 %v3411
    %v3413 = vpop.xlane.xlu0 %3412
    %v3414 = vsel %vm2697, %v3147, 0.0
    %v3415 = vadd.f32 %v3146, %v3414
    %3416 = vadd.xlane.f32.xlu0 %v3415
    %v3417 = vpop.xlane.xlu0 %3416
    %v3418 = vsel %vm2697, %v3149, 0.0
    %v3419 = vadd.f32 %v3148, %v3418
    %3420 = vadd.xlane.f32.xlu0 %v3419
    %v3421 = vpop.xlane.xlu0 %3420
    %v3422 = vsel %vm2697, %v3151, 0.0
    %v3423 = vadd.f32 %v3150, %v3422
    %3424 = vadd.xlane.f32.xlu0 %v3423
    %v3425 = vpop.xlane.xlu0 %3424
    %v3426 = vsel %vm2697, %v3153, 0.0
    %v3427 = vadd.f32 %v3152, %v3426
    %3428 = vadd.xlane.f32.xlu0 %v3427
    %v3429 = vpop.xlane.xlu0 %3428
    %v3430 = vsel %vm2697, %v3155, 0.0
    %v3431 = vadd.f32 %v3154, %v3430
    %3432 = vadd.xlane.f32.xlu0 %v3431
    %v3433 = vpop.xlane.xlu0 %3432
    %v3434 = vsel %vm2697, %v3157, 0.0
    %v3435 = vadd.f32 %v3156, %v3434
    %3436 = vadd.xlane.f32.xlu0 %v3435
    %v3437 = vpop.xlane.xlu0 %3436
    %v3438 = vsel %vm2697, %v3159, 0.0
    %v3439 = vadd.f32 %v3158, %v3438
    %3440 = vadd.xlane.f32.xlu0 %v3439
    %v3441 = vpop.xlane.xlu0 %3440
    %v3442 = vsel %vm2697, %v3161, 0.0
    %v3443 = vadd.f32 %v3160, %v3442
    %3444 = vadd.xlane.f32.xlu0 %v3443
    %v3445 = vpop.xlane.xlu0 %3444
    %v3446 = vsel %vm2697, %v3163, 0.0
    %v3447 = vadd.f32 %v3162, %v3446
    %3448 = vadd.xlane.f32.xlu0 %v3447
    %v3449 = vpop.xlane.xlu0 %3448
    %v3450 = vsel %vm2697, %v3165, 0.0
    %v3451 = vadd.f32 %v3164, %v3450
    %3452 = vadd.xlane.f32.xlu0 %v3451
    %v3453 = vpop.xlane.xlu0 %3452
    %v3454 = vsel %vm2697, %v3167, 0.0
    %v3455 = vadd.f32 %v3166, %v3454
    %3456 = vadd.xlane.f32.xlu0 %v3455
    %v3457 = vpop.xlane.xlu0 %3456
    %v3458 = vsel %vm2697, %v3169, 0.0
    %v3459 = vadd.f32 %v3168, %v3458
    %3460 = vadd.xlane.f32.xlu0 %v3459
    %v3461 = vpop.xlane.xlu0 %3460
    %v3462 = vsel %vm2697, %v3171, 0.0
    %v3463 = vadd.f32 %v3170, %v3462
    %3464 = vadd.xlane.f32.xlu0 %v3463
    %v3465 = vpop.xlane.xlu0 %3464
    %v3466 = vsel %vm2697, %v3173, 0.0
    %v3467 = vadd.f32 %v3172, %v3466
    %3468 = vadd.xlane.f32.xlu0 %v3467
    %v3469 = vpop.xlane.xlu0 %3468
    %v3470 = vsel %vm2697, %v3175, 0.0
    %v3471 = vadd.f32 %v3174, %v3470
    %3472 = vadd.xlane.f32.xlu0 %v3471
    %v3473 = vpop.xlane.xlu0 %3472
    %v3474 = vsel %vm2697, %v3177, 0.0
    %v3475 = vadd.f32 %v3176, %v3474
    %3476 = vadd.xlane.f32.xlu0 %v3475
    %v3477 = vpop.xlane.xlu0 %3476
    %v3478 = vsel %vm2697, %v3179, 0.0
    %v3479 = vadd.f32 %v3178, %v3478
    %3480 = vadd.xlane.f32.xlu0 %v3479
    %v3481 = vpop.xlane.xlu0 %3480
    %v3482 = vsel %vm2697, %v3181, 0.0
    %v3483 = vadd.f32 %v3180, %v3482
    %3484 = vadd.xlane.f32.xlu0 %v3483
    %v3485 = vpop.xlane.xlu0 %3484
    %v3486 = vsel %vm2697, %v3183, 0.0
    %v3487 = vadd.f32 %v3182, %v3486
    %3488 = vadd.xlane.f32.xlu0 %v3487
    %v3489 = vpop.xlane.xlu0 %3488
    %v3490 = vsel %vm2697, %v3185, 0.0
    %v3491 = vadd.f32 %v3184, %v3490
    %3492 = vadd.xlane.f32.xlu0 %v3491
    %v3493 = vpop.xlane.xlu0 %3492
    %v3494 = vsel %vm2697, %v3187, 0.0
    %v3495 = vadd.f32 %v3186, %v3494
    %3496 = vadd.xlane.f32.xlu0 %v3495
    %v3497 = vpop.xlane.xlu0 %3496
    %v3498 = vsel %vm2697, %v3189, 0.0
    %v3499 = vadd.f32 %v3188, %v3498
    %3500 = vadd.xlane.f32.xlu0 %v3499
    %v3501 = vpop.xlane.xlu0 %3500
    %v3502 = vsel %vm2697, %v3191, 0.0
    %v3503 = vadd.f32 %v3190, %v3502
    %3504 = vadd.xlane.f32.xlu0 %v3503
    %v3505 = vpop.xlane.xlu0 %3504
    %v3506 = vsel %vm2697, %v3193, 0.0
    %v3507 = vadd.f32 %v3192, %v3506
    %3508 = vadd.xlane.f32.xlu0 %v3507
    %v3509 = vpop.xlane.xlu0 %3508
    %v3510 = vsel %vm2697, %v3195, 0.0
    %v3511 = vadd.f32 %v3194, %v3510
    %3512 = vadd.xlane.f32.xlu0 %v3511
    %v3513 = vpop.xlane.xlu0 %3512
    %v3514 = vsel %vm2697, %v3197, 0.0
    %v3515 = vadd.f32 %v3196, %v3514
    %3516 = vadd.xlane.f32.xlu0 %v3515
    %v3517 = vpop.xlane.xlu0 %3516
    %v3518 = vsel %vm2697, %v3199, 0.0
    %v3519 = vadd.f32 %v3198, %v3518
    %3520 = vadd.xlane.f32.xlu0 %v3519
    %v3521 = vpop.xlane.xlu0 %3520
    %v3522 = vsel %vm2697, %v3201, 0.0
    %v3523 = vadd.f32 %v3200, %v3522
    %3524 = vadd.xlane.f32.xlu0 %v3523
    %v3525 = vpop.xlane.xlu0 %3524
    %v3526 = vsel %vm2697, %v3203, 0.0
    %v3527 = vadd.f32 %v3202, %v3526
    %3528 = vadd.xlane.f32.xlu0 %v3527
    %v3529 = vpop.xlane.xlu0 %3528
    %v3530 = vsel %vm2697, %v3205, 0.0
    %v3531 = vadd.f32 %v3204, %v3530
    %3532 = vadd.xlane.f32.xlu0 %v3531
    %v3533 = vpop.xlane.xlu0 %3532
    %v3534 = vsel %vm2697, %v3207, 0.0
    %v3535 = vadd.f32 %v3206, %v3534
    %3536 = vadd.xlane.f32.xlu0 %v3535
    %v3537 = vpop.xlane.xlu0 %3536
    %v3538 = vsel %vm2697, %v3209, 0.0
    %v3539 = vadd.f32 %v3208, %v3538
    %3540 = vadd.xlane.f32.xlu0 %v3539
    %v3541 = vpop.xlane.xlu0 %3540
    %v3542 = vsel %vm2697, %v3211, 0.0
    %v3543 = vadd.f32 %v3210, %v3542
    %3544 = vadd.xlane.f32.xlu0 %v3543
    %v3545 = vpop.xlane.xlu0 %3544
    %v3546 = vsel %vm2697, %v3213, 0.0
    %v3547 = vadd.f32 %v3212, %v3546
    %3548 = vadd.xlane.f32.xlu0 %v3547
    %v3549 = vpop.xlane.xlu0 %3548
    %v3550 = vsel %vm2697, %v3215, 0.0
    %v3551 = vadd.f32 %v3214, %v3550
    %3552 = vadd.xlane.f32.xlu0 %v3551
    %v3553 = vpop.xlane.xlu0 %3552
    %v3554 = vsel %vm2697, %v3217, 0.0
    %v3555 = vadd.f32 %v3216, %v3554
    %3556 = vadd.xlane.f32.xlu0 %v3555
    %v3557 = vpop.xlane.xlu0 %3556
    %v3558 = vsel %vm2697, %v3219, 0.0
    %v3559 = vadd.f32 %v3218, %v3558
    %3560 = vadd.xlane.f32.xlu0 %v3559
    %v3561 = vpop.xlane.xlu0 %3560
    %v3562 = vsel %vm2697, %v3221, 0.0
    %v3563 = vadd.f32 %v3220, %v3562
    %3564 = vadd.xlane.f32.xlu0 %v3563
    %v3565 = vpop.xlane.xlu0 %3564
    %v3566 = vsel %vm2697, %v3223, 0.0
    %v3567 = vadd.f32 %v3222, %v3566
    %3568 = vadd.xlane.f32.xlu0 %v3567
    %v3569 = vpop.xlane.xlu0 %3568
    %v3570 = vsel %vm2697, %v3225, 0.0
    %v3571 = vadd.f32 %v3224, %v3570
    %3572 = vadd.xlane.f32.xlu0 %v3571
    %v3573 = vpop.xlane.xlu0 %3572
    %v3574 = vsel %vm2697, %v3227, 0.0
    %v3575 = vadd.f32 %v3226, %v3574
    %3576 = vadd.xlane.f32.xlu0 %v3575
    %v3577 = vpop.xlane.xlu0 %3576
    %v3578 = vsel %vm2697, %v3229, 0.0
    %v3579 = vadd.f32 %v3228, %v3578
    %3580 = vadd.xlane.f32.xlu0 %v3579
    %v3581 = vpop.xlane.xlu0 %3580
    %v3582 = vsel %vm2697, %v3231, 0.0
    %v3583 = vadd.f32 %v3230, %v3582
    %3584 = vadd.xlane.f32.xlu0 %v3583
    %v3585 = vpop.xlane.xlu0 %3584
    %v3586 = vsel %vm2697, %v3233, 0.0
    %v3587 = vadd.f32 %v3232, %v3586
    %3588 = vadd.xlane.f32.xlu0 %v3587
    %v3589 = vpop.xlane.xlu0 %3588
    %v3590 = vsel %vm2697, %v3235, 0.0
    %v3591 = vadd.f32 %v3234, %v3590
    %3592 = vadd.xlane.f32.xlu0 %v3591
    %v3593 = vpop.xlane.xlu0 %3592
    %v3594 = vsel %vm2697, %v3237, 0.0
    %v3595 = vadd.f32 %v3236, %v3594
    %3596 = vadd.xlane.f32.xlu0 %v3595
    %v3597 = vpop.xlane.xlu0 %3596
    %v3598 = vmul.f32 %v2701, 0.0051020407
    %v3599 = vmul.f32 %v2705, 0.0051020407
    %v3600 = vmul.f32 %v2709, 0.0051020407
    %v3601 = vmul.f32 %v2713, 0.0051020407
    %v3602 = vmul.f32 %v2717, 0.0051020407
    %v3603 = vmul.f32 %v2721, 0.0051020407
    %v3604 = vmul.f32 %v2725, 0.0051020407
    %v3605 = vmul.f32 %v2729, 0.0051020407
    %v3606 = vmul.f32 %v2733, 0.0051020407
    %v3607 = vmul.f32 %v2737, 0.0051020407
    %v3608 = vmul.f32 %v2741, 0.0051020407
    %v3609 = vmul.f32 %v2745, 0.0051020407
    %v3610 = vmul.f32 %v2749, 0.0051020407
    %v3611 = vmul.f32 %v2753, 0.0051020407
    %v3612 = vmul.f32 %v2757, 0.0051020407
    %v3613 = vmul.f32 %v2761, 0.0051020407
    %v3614 = vmul.f32 %v2765, 0.0051020407
    %v3615 = vmul.f32 %v2769, 0.0051020407
    %v3616 = vmul.f32 %v2773, 0.0051020407
    %v3617 = vmul.f32 %v2777, 0.0051020407
    %v3618 = vmul.f32 %v2781, 0.0051020407
    %v3619 = vmul.f32 %v2785, 0.0051020407
    %v3620 = vmul.f32 %v2789, 0.0051020407
    %v3621 = vmul.f32 %v2793, 0.0051020407
    %v3622 = vmul.f32 %v2797, 0.0051020407
    %v3623 = vmul.f32 %v2801, 0.0051020407
    %v3624 = vmul.f32 %v2805, 0.0051020407
    %v3625 = vmul.f32 %v2809, 0.0051020407
    %v3626 = vmul.f32 %v2813, 0.0051020407
    %v3627 = vmul.f32 %v2817, 0.0051020407
    %v3628 = vmul.f32 %v2821, 0.0051020407
    %v3629 = vmul.f32 %v2825, 0.0051020407
    %v3630 = vmul.f32 %v2829, 0.0051020407
    %v3631 = vmul.f32 %v2833, 0.0051020407
    %v3632 = vmul.f32 %v2837, 0.0051020407
    %v3633 = vmul.f32 %v2841, 0.0051020407
    %v3634 = vmul.f32 %v2845, 0.0051020407
    %v3635 = vmul.f32 %v2849, 0.0051020407
    %v3636 = vmul.f32 %v2853, 0.0051020407
    %v3637 = vmul.f32 %v2857, 0.0051020407
    %v3638 = vmul.f32 %v2861, 0.0051020407
    %v3639 = vmul.f32 %v2865, 0.0051020407
    %v3640 = vmul.f32 %v2869, 0.0051020407
    %v3641 = vmul.f32 %v2873, 0.0051020407
    %v3642 = vmul.f32 %v2877, 0.0051020407
    %v3643 = vmul.f32 %v2881, 0.0051020407
    %v3644 = vmul.f32 %v2885, 0.0051020407
    %v3645 = vmul.f32 %v2889, 0.0051020407
    %v3646 = vmul.f32 %v2893, 0.0051020407
    %v3647 = vmul.f32 %v2897, 0.0051020407
    %v3648 = vmul.f32 %v2901, 0.0051020407
    %v3649 = vmul.f32 %v2905, 0.0051020407
    %v3650 = vmul.f32 %v2909, 0.0051020407
    %v3651 = vmul.f32 %v2913, 0.0051020407
    %v3652 = vmul.f32 %v2917, 0.0051020407
    %v3653 = vmul.f32 %v2921, 0.0051020407
    %v3654 = vmul.f32 %v2925, 0.0051020407
    %v3655 = vmul.f32 %v2929, 0.0051020407
    %v3656 = vmul.f32 %v2933, 0.0051020407
    %v3657 = vmul.f32 %v2937, 0.0051020407
    %v3658 = vmul.f32 %v2941, 0.0051020407
    %v3659 = vmul.f32 %v2945, 0.0051020407
    %v3660 = vmul.f32 %v2949, 0.0051020407
    %v3661 = vmul.f32 %v2953, 0.0051020407
    %v3662 = vmul.f32 %v2957, 0.0051020407
    %v3663 = vmul.f32 %v2961, 0.0051020407
    %v3664 = vmul.f32 %v2965, 0.0051020407
    %v3665 = vmul.f32 %v2969, 0.0051020407
    %v3666 = vmul.f32 %v2973, 0.0051020407
    %v3667 = vmul.f32 %v2977, 0.0051020407
    %v3668 = vmul.f32 %v2981, 0.0051020407
    %v3669 = vmul.f32 %v2985, 0.0051020407
    %v3670 = vmul.f32 %v2989, 0.0051020407
    %v3671 = vmul.f32 %v2993, 0.0051020407
    %v3672 = vmul.f32 %v2997, 0.0051020407
    %v3673 = vmul.f32 %v3001, 0.0051020407
    %v3674 = vmul.f32 %v3005, 0.0051020407
    %v3675 = vmul.f32 %v3009, 0.0051020407
    %v3676 = vmul.f32 %v3013, 0.0051020407
    %v3677 = vmul.f32 %v3017, 0.0051020407
    %v3678 = vmul.f32 %v3021, 0.0051020407
    %v3679 = vmul.f32 %v3025, 0.0051020407
    %v3680 = vmul.f32 %v3029, 0.0051020407
    %v3681 = vmul.f32 %v3033, 0.0051020407
    %v3682 = vmul.f32 %v3037, 0.0051020407
    %v3683 = vmul.f32 %v3041, 0.0051020407
    %v3684 = vmul.f32 %v3045, 0.0051020407
    %v3685 = vmul.f32 %v3049, 0.0051020407
    %v3686 = vmul.f32 %v3053, 0.0051020407
    %v3687 = vmul.f32 %v3057, 0.0051020407
    %v3688 = vmul.f32 %v3241, 0.0051020407
    %v3689 = vmul.f32 %v3245, 0.0051020407
    %v3690 = vmul.f32 %v3249, 0.0051020407
    %v3691 = vmul.f32 %v3253, 0.0051020407
    %v3692 = vmul.f32 %v3257, 0.0051020407
    %v3693 = vmul.f32 %v3261, 0.0051020407
    %v3694 = vmul.f32 %v3265, 0.0051020407
    %v3695 = vmul.f32 %v3269, 0.0051020407
    %v3696 = vmul.f32 %v3273, 0.0051020407
    %v3697 = vmul.f32 %v3277, 0.0051020407
    %v3698 = vmul.f32 %v3281, 0.0051020407
    %v3699 = vmul.f32 %v3285, 0.0051020407
    %v3700 = vmul.f32 %v3289, 0.0051020407
    %v3701 = vmul.f32 %v3293, 0.0051020407
    %v3702 = vmul.f32 %v3297, 0.0051020407
    %v3703 = vmul.f32 %v3301, 0.0051020407
    %v3704 = vmul.f32 %v3305, 0.0051020407
    %v3705 = vmul.f32 %v3309, 0.0051020407
    %v3706 = vmul.f32 %v3313, 0.0051020407
    %v3707 = vmul.f32 %v3317, 0.0051020407
    %v3708 = vmul.f32 %v3321, 0.0051020407
    %v3709 = vmul.f32 %v3325, 0.0051020407
    %v3710 = vmul.f32 %v3329, 0.0051020407
    %v3711 = vmul.f32 %v3333, 0.0051020407
    %v3712 = vmul.f32 %v3337, 0.0051020407
    %v3713 = vmul.f32 %v3341, 0.0051020407
    %v3714 = vmul.f32 %v3345, 0.0051020407
    %v3715 = vmul.f32 %v3349, 0.0051020407
    %v3716 = vmul.f32 %v3353, 0.0051020407
    %v3717 = vmul.f32 %v3357, 0.0051020407
    %v3718 = vmul.f32 %v3361, 0.0051020407
    %v3719 = vmul.f32 %v3365, 0.0051020407
    %v3720 = vmul.f32 %v3369, 0.0051020407
    %v3721 = vmul.f32 %v3373, 0.0051020407
    %v3722 = vmul.f32 %v3377, 0.0051020407
    %v3723 = vmul.f32 %v3381, 0.0051020407
    %v3724 = vmul.f32 %v3385, 0.0051020407
    %v3725 = vmul.f32 %v3389, 0.0051020407
    %v3726 = vmul.f32 %v3393, 0.0051020407
    %v3727 = vmul.f32 %v3397, 0.0051020407
    %v3728 = vmul.f32 %v3401, 0.0051020407
    %v3729 = vmul.f32 %v3405, 0.0051020407
    %v3730 = vmul.f32 %v3409, 0.0051020407
    %v3731 = vmul.f32 %v3413, 0.0051020407
    %v3732 = vmul.f32 %v3417, 0.0051020407
    %v3733 = vmul.f32 %v3421, 0.0051020407
    %v3734 = vmul.f32 %v3425, 0.0051020407
    %v3735 = vmul.f32 %v3429, 0.0051020407
    %v3736 = vmul.f32 %v3433, 0.0051020407
    %v3737 = vmul.f32 %v3437, 0.0051020407
    %v3738 = vmul.f32 %v3441, 0.0051020407
    %v3739 = vmul.f32 %v3445, 0.0051020407
    %v3740 = vmul.f32 %v3449, 0.0051020407
    %v3741 = vmul.f32 %v3453, 0.0051020407
    %v3742 = vmul.f32 %v3457, 0.0051020407
    %v3743 = vmul.f32 %v3461, 0.0051020407
    %v3744 = vmul.f32 %v3465, 0.0051020407
    %v3745 = vmul.f32 %v3469, 0.0051020407
    %v3746 = vmul.f32 %v3473, 0.0051020407
    %v3747 = vmul.f32 %v3477, 0.0051020407
    %v3748 = vmul.f32 %v3481, 0.0051020407
    %v3749 = vmul.f32 %v3485, 0.0051020407
    %v3750 = vmul.f32 %v3489, 0.0051020407
    %v3751 = vmul.f32 %v3493, 0.0051020407
    %v3752 = vmul.f32 %v3497, 0.0051020407
    %v3753 = vmul.f32 %v3501, 0.0051020407
    %v3754 = vmul.f32 %v3505, 0.0051020407
    %v3755 = vmul.f32 %v3509, 0.0051020407
    %v3756 = vmul.f32 %v3513, 0.0051020407
    %v3757 = vmul.f32 %v3517, 0.0051020407
    %v3758 = vmul.f32 %v3521, 0.0051020407
    %v3759 = vmul.f32 %v3525, 0.0051020407
    %v3760 = vmul.f32 %v3529, 0.0051020407
    %v3761 = vmul.f32 %v3533, 0.0051020407
    %v3762 = vmul.f32 %v3537, 0.0051020407
    %v3763 = vmul.f32 %v3541, 0.0051020407
    %v3764 = vmul.f32 %v3545, 0.0051020407
    %v3765 = vmul.f32 %v3549, 0.0051020407
    %v3766 = vmul.f32 %v3553, 0.0051020407
    %v3767 = vmul.f32 %v3557, 0.0051020407
    %v3768 = vmul.f32 %v3561, 0.0051020407
    %v3769 = vmul.f32 %v3565, 0.0051020407
    %v3770 = vmul.f32 %v3569, 0.0051020407
    %v3771 = vmul.f32 %v3573, 0.0051020407
    %v3772 = vmul.f32 %v3577, 0.0051020407
    %v3773 = vmul.f32 %v3581, 0.0051020407
    %v3774 = vmul.f32 %v3585, 0.0051020407
    %v3775 = vmul.f32 %v3589, 0.0051020407
    %v3776 = vmul.f32 %v3593, 0.0051020407
    %v3777 = vmul.f32 %v3597, 0.0051020407
    %v3778 = vmul.f32 %v3598, %v3598
    %v3779 = vmul.f32 %v3599, %v3599
    %v3780 = vmul.f32 %v3600, %v3600
    %v3781 = vmul.f32 %v3601, %v3601
    %v3782 = vmul.f32 %v3602, %v3602
    %v3783 = vmul.f32 %v3603, %v3603
    %v3784 = vmul.f32 %v3604, %v3604
    %v3785 = vmul.f32 %v3605, %v3605
    %v3786 = vmul.f32 %v3606, %v3606
    %v3787 = vmul.f32 %v3607, %v3607
    %v3788 = vmul.f32 %v3608, %v3608
    %v3789 = vmul.f32 %v3609, %v3609
    %v3790 = vmul.f32 %v3610, %v3610
    %v3791 = vmul.f32 %v3611, %v3611
    %v3792 = vmul.f32 %v3612, %v3612
    %v3793 = vmul.f32 %v3613, %v3613
    %v3794 = vmul.f32 %v3614, %v3614
    %v3795 = vmul.f32 %v3615, %v3615
    %v3796 = vmul.f32 %v3616, %v3616
    %v3797 = vmul.f32 %v3617, %v3617
    %v3798 = vmul.f32 %v3618, %v3618
    %v3799 = vmul.f32 %v3619, %v3619
    %v3800 = vmul.f32 %v3620, %v3620
    %v3801 = vmul.f32 %v3621, %v3621
    %v3802 = vmul.f32 %v3622, %v3622
    %v3803 = vmul.f32 %v3623, %v3623
    %v3804 = vmul.f32 %v3624, %v3624
    %v3805 = vmul.f32 %v3625, %v3625
    %v3806 = vmul.f32 %v3626, %v3626
    %v3807 = vmul.f32 %v3627, %v3627
    %v3808 = vmul.f32 %v3628, %v3628
    %v3809 = vmul.f32 %v3629, %v3629
    %v3810 = vmul.f32 %v3630, %v3630
    %v3811 = vmul.f32 %v3631, %v3631
    %v3812 = vmul.f32 %v3632, %v3632
    %v3813 = vmul.f32 %v3633, %v3633
    %v3814 = vmul.f32 %v3634, %v3634
    %v3815 = vmul.f32 %v3635, %v3635
    %v3816 = vmul.f32 %v3636, %v3636
    %v3817 = vmul.f32 %v3637, %v3637
    %v3818 = vmul.f32 %v3638, %v3638
    %v3819 = vmul.f32 %v3639, %v3639
    %v3820 = vmul.f32 %v3640, %v3640
    %v3821 = vmul.f32 %v3641, %v3641
    %v3822 = vmul.f32 %v3642, %v3642
    %v3823 = vmul.f32 %v3643, %v3643
    %v3824 = vmul.f32 %v3644, %v3644
    %v3825 = vmul.f32 %v3645, %v3645
    %v3826 = vmul.f32 %v3646, %v3646
    %v3827 = vmul.f32 %v3647, %v3647
    %v3828 = vmul.f32 %v3648, %v3648
    %v3829 = vmul.f32 %v3649, %v3649
    %v3830 = vmul.f32 %v3650, %v3650
    %v3831 = vmul.f32 %v3651, %v3651
    %v3832 = vmul.f32 %v3652, %v3652
    %v3833 = vmul.f32 %v3653, %v3653
    %v3834 = vmul.f32 %v3654, %v3654
    %v3835 = vmul.f32 %v3655, %v3655
    %v3836 = vmul.f32 %v3656, %v3656
    %v3837 = vmul.f32 %v3657, %v3657
    %v3838 = vmul.f32 %v3658, %v3658
    %v3839 = vmul.f32 %v3659, %v3659
    %v3840 = vmul.f32 %v3660, %v3660
    %v3841 = vmul.f32 %v3661, %v3661
    %v3842 = vmul.f32 %v3662, %v3662
    %v3843 = vmul.f32 %v3663, %v3663
    %v3844 = vmul.f32 %v3664, %v3664
    %v3845 = vmul.f32 %v3665, %v3665
    %v3846 = vmul.f32 %v3666, %v3666
    %v3847 = vmul.f32 %v3667, %v3667
    %v3848 = vmul.f32 %v3668, %v3668
    %v3849 = vmul.f32 %v3669, %v3669
    %v3850 = vmul.f32 %v3670, %v3670
    %v3851 = vmul.f32 %v3671, %v3671
    %v3852 = vmul.f32 %v3672, %v3672
    %v3853 = vmul.f32 %v3673, %v3673
    %v3854 = vmul.f32 %v3674, %v3674
    %v3855 = vmul.f32 %v3675, %v3675
    %v3856 = vmul.f32 %v3676, %v3676
    %v3857 = vmul.f32 %v3677, %v3677
    %v3858 = vmul.f32 %v3678, %v3678
    %v3859 = vmul.f32 %v3679, %v3679
    %v3860 = vmul.f32 %v3680, %v3680
    %v3861 = vmul.f32 %v3681, %v3681
    %v3862 = vmul.f32 %v3682, %v3682
    %v3863 = vmul.f32 %v3683, %v3683
    %v3864 = vmul.f32 %v3684, %v3684
    %v3865 = vmul.f32 %v3685, %v3685
    %v3866 = vmul.f32 %v3686, %v3686
    %v3867 = vmul.f32 %v3687, %v3687
    %v3868 = vsub.f32 %v3688, %v3778
    %v3869 = vsub.f32 %v3689, %v3779
    %v3870 = vsub.f32 %v3690, %v3780
    %v3871 = vsub.f32 %v3691, %v3781
    %v3872 = vsub.f32 %v3692, %v3782
    %v3873 = vsub.f32 %v3693, %v3783
    %v3874 = vsub.f32 %v3694, %v3784
    %v3875 = vsub.f32 %v3695, %v3785
    %v3876 = vsub.f32 %v3696, %v3786
    %v3877 = vsub.f32 %v3697, %v3787
    %v3878 = vsub.f32 %v3698, %v3788
    %v3879 = vsub.f32 %v3699, %v3789
    %v3880 = vsub.f32 %v3700, %v3790
    %v3881 = vsub.f32 %v3701, %v3791
    %v3882 = vsub.f32 %v3702, %v3792
    %v3883 = vsub.f32 %v3703, %v3793
    %v3884 = vsub.f32 %v3704, %v3794
    %v3885 = vsub.f32 %v3705, %v3795
    %v3886 = vsub.f32 %v3706, %v3796
    %v3887 = vsub.f32 %v3707, %v3797
    %v3888 = vsub.f32 %v3708, %v3798
    %v3889 = vsub.f32 %v3709, %v3799
    %v3890 = vsub.f32 %v3710, %v3800
    %v3891 = vsub.f32 %v3711, %v3801
    %v3892 = vsub.f32 %v3712, %v3802
    %v3893 = vsub.f32 %v3713, %v3803
    %v3894 = vsub.f32 %v3714, %v3804
    %v3895 = vsub.f32 %v3715, %v3805
    %v3896 = vsub.f32 %v3716, %v3806
    %v3897 = vsub.f32 %v3717, %v3807
    %v3898 = vsub.f32 %v3718, %v3808
    %v3899 = vsub.f32 %v3719, %v3809
    %v3900 = vsub.f32 %v3720, %v3810
    %v3901 = vsub.f32 %v3721, %v3811
    %v3902 = vsub.f32 %v3722, %v3812
    %v3903 = vsub.f32 %v3723, %v3813
    %v3904 = vsub.f32 %v3724, %v3814
    %v3905 = vsub.f32 %v3725, %v3815
    %v3906 = vsub.f32 %v3726, %v3816
    %v3907 = vsub.f32 %v3727, %v3817
    %v3908 = vsub.f32 %v3728, %v3818
    %v3909 = vsub.f32 %v3729, %v3819
    %v3910 = vsub.f32 %v3730, %v3820
    %v3911 = vsub.f32 %v3731, %v3821
    %v3912 = vsub.f32 %v3732, %v3822
    %v3913 = vsub.f32 %v3733, %v3823
    %v3914 = vsub.f32 %v3734, %v3824
    %v3915 = vsub.f32 %v3735, %v3825
    %v3916 = vsub.f32 %v3736, %v3826
    %v3917 = vsub.f32 %v3737, %v3827
    %v3918 = vsub.f32 %v3738, %v3828
    %v3919 = vsub.f32 %v3739, %v3829
    %v3920 = vsub.f32 %v3740, %v3830
    %v3921 = vsub.f32 %v3741, %v3831
    %v3922 = vsub.f32 %v3742, %v3832
    %v3923 = vsub.f32 %v3743, %v3833
    %v3924 = vsub.f32 %v3744, %v3834
    %v3925 = vsub.f32 %v3745, %v3835
    %v3926 = vsub.f32 %v3746, %v3836
    %v3927 = vsub.f32 %v3747, %v3837
    %v3928 = vsub.f32 %v3748, %v3838
    %v3929 = vsub.f32 %v3749, %v3839
    %v3930 = vsub.f32 %v3750, %v3840
    %v3931 = vsub.f32 %v3751, %v3841
    %v3932 = vsub.f32 %v3752, %v3842
    %v3933 = vsub.f32 %v3753, %v3843
    %v3934 = vsub.f32 %v3754, %v3844
    %v3935 = vsub.f32 %v3755, %v3845
    %v3936 = vsub.f32 %v3756, %v3846
    %v3937 = vsub.f32 %v3757, %v3847
    %v3938 = vsub.f32 %v3758, %v3848
    %v3939 = vsub.f32 %v3759, %v3849
    %v3940 = vsub.f32 %v3760, %v3850
    %v3941 = vsub.f32 %v3761, %v3851
    %v3942 = vsub.f32 %v3762, %v3852
    %v3943 = vsub.f32 %v3763, %v3853
    %v3944 = vsub.f32 %v3764, %v3854
    %v3945 = vsub.f32 %v3765, %v3855
    %v3946 = vsub.f32 %v3766, %v3856
    %v3947 = vsub.f32 %v3767, %v3857
    %v3948 = vsub.f32 %v3768, %v3858
    %v3949 = vsub.f32 %v3769, %v3859
    %v3950 = vsub.f32 %v3770, %v3860
    %v3951 = vsub.f32 %v3771, %v3861
    %v3952 = vsub.f32 %v3772, %v3862
    %v3953 = vsub.f32 %v3773, %v3863
    %v3954 = vsub.f32 %v3774, %v3864
    %v3955 = vsub.f32 %v3775, %v3865
    %v3956 = vsub.f32 %v3776, %v3866
    %v3957 = vsub.f32 %v3777, %v3867
    %v3958 = vadd.f32 %v3868, 1e-05
    %v3959 = vadd.f32 %v3869, 1e-05
    %v3960 = vadd.f32 %v3870, 1e-05
    %v3961 = vadd.f32 %v3871, 1e-05
    %v3962 = vadd.f32 %v3872, 1e-05
    %v3963 = vadd.f32 %v3873, 1e-05
    %v3964 = vadd.f32 %v3874, 1e-05
    %v3965 = vadd.f32 %v3875, 1e-05
    %v3966 = vadd.f32 %v3876, 1e-05
    %v3967 = vadd.f32 %v3877, 1e-05
    %v3968 = vadd.f32 %v3878, 1e-05
    %v3969 = vadd.f32 %v3879, 1e-05
    %v3970 = vadd.f32 %v3880, 1e-05
    %v3971 = vadd.f32 %v3881, 1e-05
    %v3972 = vadd.f32 %v3882, 1e-05
    %v3973 = vadd.f32 %v3883, 1e-05
    %v3974 = vadd.f32 %v3884, 1e-05
    %v3975 = vadd.f32 %v3885, 1e-05
    %v3976 = vadd.f32 %v3886, 1e-05
    %v3977 = vadd.f32 %v3887, 1e-05
    %v3978 = vadd.f32 %v3888, 1e-05
    %v3979 = vadd.f32 %v3889, 1e-05
    %v3980 = vadd.f32 %v3890, 1e-05
    %v3981 = vadd.f32 %v3891, 1e-05
    %v3982 = vadd.f32 %v3892, 1e-05
    %v3983 = vadd.f32 %v3893, 1e-05
    %v3984 = vadd.f32 %v3894, 1e-05
    %v3985 = vadd.f32 %v3895, 1e-05
    %v3986 = vadd.f32 %v3896, 1e-05
    %v3987 = vadd.f32 %v3897, 1e-05
    %v3988 = vadd.f32 %v3898, 1e-05
    %v3989 = vadd.f32 %v3899, 1e-05
    %v3990 = vadd.f32 %v3900, 1e-05
    %v3991 = vadd.f32 %v3901, 1e-05
    %v3992 = vadd.f32 %v3902, 1e-05
    %v3993 = vadd.f32 %v3903, 1e-05
    %v3994 = vadd.f32 %v3904, 1e-05
    %v3995 = vadd.f32 %v3905, 1e-05
    %v3996 = vadd.f32 %v3906, 1e-05
    %v3997 = vadd.f32 %v3907, 1e-05
    %v3998 = vadd.f32 %v3908, 1e-05
    %v3999 = vadd.f32 %v3909, 1e-05
    %v4000 = vadd.f32 %v3910, 1e-05
    %v4001 = vadd.f32 %v3911, 1e-05
    %v4002 = vadd.f32 %v3912, 1e-05
    %v4003 = vadd.f32 %v3913, 1e-05
    %v4004 = vadd.f32 %v3914, 1e-05
    %v4005 = vadd.f32 %v3915, 1e-05
    %v4006 = vadd.f32 %v3916, 1e-05
    %v4007 = vadd.f32 %v3917, 1e-05
    %v4008 = vadd.f32 %v3918, 1e-05
    %v4009 = vadd.f32 %v3919, 1e-05
    %v4010 = vadd.f32 %v3920, 1e-05
    %v4011 = vadd.f32 %v3921, 1e-05
    %v4012 = vadd.f32 %v3922, 1e-05
    %v4013 = vadd.f32 %v3923, 1e-05
    %v4014 = vadd.f32 %v3924, 1e-05
    %v4015 = vadd.f32 %v3925, 1e-05
    %v4016 = vadd.f32 %v3926, 1e-05
    %v4017 = vadd.f32 %v3927, 1e-05
    %v4018 = vadd.f32 %v3928, 1e-05
    %v4019 = vadd.f32 %v3929, 1e-05
    %v4020 = vadd.f32 %v3930, 1e-05
    %v4021 = vadd.f32 %v3931, 1e-05
    %v4022 = vadd.f32 %v3932, 1e-05
    %v4023 = vadd.f32 %v3933, 1e-05
    %v4024 = vadd.f32 %v3934, 1e-05
    %v4025 = vadd.f32 %v3935, 1e-05
    %v4026 = vadd.f32 %v3936, 1e-05
    %v4027 = vadd.f32 %v3937, 1e-05
    %v4028 = vadd.f32 %v3938, 1e-05
    %v4029 = vadd.f32 %v3939, 1e-05
    %v4030 = vadd.f32 %v3940, 1e-05
    %v4031 = vadd.f32 %v3941, 1e-05
    %v4032 = vadd.f32 %v3942, 1e-05
    %v4033 = vadd.f32 %v3943, 1e-05
    %v4034 = vadd.f32 %v3944, 1e-05
    %v4035 = vadd.f32 %v3945, 1e-05
    %v4036 = vadd.f32 %v3946, 1e-05
    %v4037 = vadd.f32 %v3947, 1e-05
    %v4038 = vadd.f32 %v3948, 1e-05
    %v4039 = vadd.f32 %v3949, 1e-05
    %v4040 = vadd.f32 %v3950, 1e-05
    %v4041 = vadd.f32 %v3951, 1e-05
    %v4042 = vadd.f32 %v3952, 1e-05
    %v4043 = vadd.f32 %v3953, 1e-05
    %v4044 = vadd.f32 %v3954, 1e-05
    %v4045 = vadd.f32 %v3955, 1e-05
    %v4046 = vadd.f32 %v3956, 1e-05
    %v4047 = vadd.f32 %v3957, 1e-05
    %v4048 = vrsqrt.pop %v3958
    %v4049 = vrsqrt.pop %v3959
    %v4050 = vrsqrt.pop %v3960
    %v4051 = vrsqrt.pop %v3961
    %v4052 = vrsqrt.pop %v3962
    %v4053 = vrsqrt.pop %v3963
    %v4054 = vrsqrt.pop %v3964
    %v4055 = vrsqrt.pop %v3965
    %v4056 = vrsqrt.pop %v3966
    %v4057 = vrsqrt.pop %v3967
    %v4058 = vrsqrt.pop %v3968
    %v4059 = vrsqrt.pop %v3969
    %v4060 = vrsqrt.pop %v3970
    %v4061 = vrsqrt.pop %v3971
    %v4062 = vrsqrt.pop %v3972
    %v4063 = vrsqrt.pop %v3973
    %v4064 = vrsqrt.pop %v3974
    %v4065 = vrsqrt.pop %v3975
    %v4066 = vrsqrt.pop %v3976
    %v4067 = vrsqrt.pop %v3977
    %v4068 = vrsqrt.pop %v3978
    %v4069 = vrsqrt.pop %v3979
    %v4070 = vrsqrt.pop %v3980
    %v4071 = vrsqrt.pop %v3981
    %v4072 = vrsqrt.pop %v3982
    %v4073 = vrsqrt.pop %v3983
    %v4074 = vrsqrt.pop %v3984
    %v4075 = vrsqrt.pop %v3985
    %v4076 = vrsqrt.pop %v3986
    %v4077 = vrsqrt.pop %v3987
    %v4078 = vrsqrt.pop %v3988
    %v4079 = vrsqrt.pop %v3989
    %v4080 = vrsqrt.pop %v3990
    %v4081 = vrsqrt.pop %v3991
    %v4082 = vrsqrt.pop %v3992
    %v4083 = vrsqrt.pop %v3993
    %v4084 = vrsqrt.pop %v3994
    %v4085 = vrsqrt.pop %v3995
    %v4086 = vrsqrt.pop %v3996
    %v4087 = vrsqrt.pop %v3997
    %v4088 = vrsqrt.pop %v3998
    %v4089 = vrsqrt.pop %v3999
    %v4090 = vrsqrt.pop %v4000
    %v4091 = vrsqrt.pop %v4001
    %v4092 = vrsqrt.pop %v4002
    %v4093 = vrsqrt.pop %v4003
    %v4094 = vrsqrt.pop %v4004
    %v4095 = vrsqrt.pop %v4005
    %v4096 = vrsqrt.pop %v4006
    %v4097 = vrsqrt.pop %v4007
    %v4098 = vrsqrt.pop %v4008
    %v4099 = vrsqrt.pop %v4009
    %v4100 = vrsqrt.pop %v4010
    %v4101 = vrsqrt.pop %v4011
    %v4102 = vrsqrt.pop %v4012
    %v4103 = vrsqrt.pop %v4013
    %v4104 = vrsqrt.pop %v4014
    %v4105 = vrsqrt.pop %v4015
    %v4106 = vrsqrt.pop %v4016
    %v4107 = vrsqrt.pop %v4017
    %v4108 = vrsqrt.pop %v4018
    %v4109 = vrsqrt.pop %v4019
    %v4110 = vrsqrt.pop %v4020
    %v4111 = vrsqrt.pop %v4021
    %v4112 = vrsqrt.pop %v4022
    %v4113 = vrsqrt.pop %v4023
    %v4114 = vrsqrt.pop %v4024
    %v4115 = vrsqrt.pop %v4025
    %v4116 = vrsqrt.pop %v4026
    %v4117 = vrsqrt.pop %v4027
    %v4118 = vrsqrt.pop %v4028
    %v4119 = vrsqrt.pop %v4029
    %v4120 = vrsqrt.pop %v4030
    %v4121 = vrsqrt.pop %v4031
    %v4122 = vrsqrt.pop %v4032
    %v4123 = vrsqrt.pop %v4033
    %v4124 = vrsqrt.pop %v4034
    %v4125 = vrsqrt.pop %v4035
    %v4126 = vrsqrt.pop %v4036
    %v4127 = vrsqrt.pop %v4037
    %v4128 = vrsqrt.pop %v4038
    %v4129 = vrsqrt.pop %v4039
    %v4130 = vrsqrt.pop %v4040
    %v4131 = vrsqrt.pop %v4041
    %v4132 = vrsqrt.pop %v4042
    %v4133 = vrsqrt.pop %v4043
    %v4134 = vrsqrt.pop %v4044
    %v4135 = vrsqrt.pop %v4045
    %v4136 = vrsqrt.pop %v4046
    %v4137 = vrsqrt.pop %v4047
    %v4138 = vld [vmem:[%s2] sm:$0xff]
    %v4139 = vld [vmem:[%s2 + $0x8] sm:$0xff]
    %v4140 = vld [vmem:[%s2 + $0x10] sm:$0xff]
    %v4141 = vld [vmem:[%s2 + $0x18] sm:$0xff]
    %v4142 = vld [vmem:[%s2 + $0x20] sm:$0xff]
    %v4143 = vld [vmem:[%s2 + $0x28] sm:$0xff]
    %v4144 = vld [vmem:[%s2 + $0x30] sm:$0xff]
    %v4145 = vld [vmem:[%s2 + $0x38] sm:$0xff]
    %v4146 = vld [vmem:[%s2 + $0x40] sm:$0xff]
    %v4147 = vld [vmem:[%s2 + $0x48] sm:$0xff]
    %v4148 = vld [vmem:[%s2 + $0x50] sm:$0xff]
    %v4149 = vld [vmem:[%s2 + $0x58] sm:$0xff]
    %v4150 = vld [vmem:[%s2 + $0x60] sm:$0xff]
    %v4151 = vld [vmem:[%s2 + $0x68] sm:$0xff]
    %v4152 = vld [vmem:[%s2 + $0x70] sm:$0xff]
    %v4153 = vld [vmem:[%s2 + $0x78] sm:$0xff]
    %v4154 = vld [vmem:[%s2 + $0x80] sm:$0xff]
    %v4155 = vld [vmem:[%s2 + $0x88] sm:$0xff]
    %v4156 = vld [vmem:[%s2 + $0x90] sm:$0xff]
    %v4157 = vld [vmem:[%s2 + $0x98] sm:$0xff]
    %v4158 = vld [vmem:[%s2 + $0xa0] sm:$0xff]
    %v4159 = vld [vmem:[%s2 + $0xa8] sm:$0xff]
    %v4160 = vld [vmem:[%s2 + $0xb0] sm:$0xff]
    %v4161 = vld [vmem:[%s2 + $0xb8] sm:$0xff]
    %v4162 = vld [vmem:[%s2 + $0xc0] sm:$0xff]
    %v4163 = vld [vmem:[%s2 + $0xc8] sm:$0xff]
    %v4164 = vld [vmem:[%s2 + $0xd0] sm:$0xff]
    %v4165 = vld [vmem:[%s2 + $0xd8] sm:$0xff]
    %v4166 = vld [vmem:[%s2 + $0xe0] sm:$0xff]
    %v4167 = vld [vmem:[%s2 + $0xe8] sm:$0xff]
    %v4168 = vld [vmem:[%s2 + $0xf0] sm:$0xff]
    %v4169 = vld [vmem:[%s2 + $0xf8] sm:$0xff]
    %v4170 = vld [vmem:[%s2 + $0x100] sm:$0xff]
    %v4171 = vld [vmem:[%s2 + $0x108] sm:$0xff]
    %v4172 = vld [vmem:[%s2 + $0x110] sm:$0xff]
    %v4173 = vld [vmem:[%s2 + $0x118] sm:$0xff]
    %v4174 = vld [vmem:[%s2 + $0x120] sm:$0xff]
    %v4175 = vld [vmem:[%s2 + $0x128] sm:$0xff]
    %v4176 = vld [vmem:[%s2 + $0x130] sm:$0xff]
    %v4177 = vld [vmem:[%s2 + $0x138] sm:$0xff]
    %v4178 = vld [vmem:[%s2 + $0x140] sm:$0xff]
    %v4179 = vld [vmem:[%s2 + $0x148] sm:$0xff]
    %v4180 = vld [vmem:[%s2 + $0x150] sm:$0xff]
    %v4181 = vld [vmem:[%s2 + $0x158] sm:$0xff]
    %v4182 = vld [vmem:[%s2 + $0x160] sm:$0xff]
    %v4183 = vld [vmem:[%s2 + $0x168] sm:$0xff]
    %v4184 = vld [vmem:[%s2 + $0x170] sm:$0xff]
    %v4185 = vld [vmem:[%s2 + $0x178] sm:$0xff]
    %v4186 = vld [vmem:[%s2 + $0x180] sm:$0xff]
    %v4187 = vld [vmem:[%s2 + $0x188] sm:$0xff]
    %v4188 = vld [vmem:[%s2 + $0x190] sm:$0xff]
    %v4189 = vld [vmem:[%s2 + $0x198] sm:$0xff]
    %v4190 = vld [vmem:[%s2 + $0x1a0] sm:$0xff]
    %v4191 = vld [vmem:[%s2 + $0x1a8] sm:$0xff]
    %v4192 = vld [vmem:[%s2 + $0x1b0] sm:$0xff]
    %v4193 = vld [vmem:[%s2 + $0x1b8] sm:$0xff]
    %v4194 = vld [vmem:[%s2 + $0x1c0] sm:$0xff]
    %v4195 = vld [vmem:[%s2 + $0x1c8] sm:$0xff]
    %v4196 = vld [vmem:[%s2 + $0x1d0] sm:$0xff]
    %v4197 = vld [vmem:[%s2 + $0x1d8] sm:$0xff]
    %v4198 = vld [vmem:[%s2 + $0x1e0] sm:$0xff]
    %v4199 = vld [vmem:[%s2 + $0x1e8] sm:$0xff]
    %v4200 = vld [vmem:[%s2 + $0x1f0] sm:$0xff]
    %v4201 = vld [vmem:[%s2 + $0x1f8] sm:$0xff]
    %v4202 = vld [vmem:[%s2 + $0x200] sm:$0xff]
    %v4203 = vld [vmem:[%s2 + $0x208] sm:$0xff]
    %v4204 = vld [vmem:[%s2 + $0x210] sm:$0xff]
    %v4205 = vld [vmem:[%s2 + $0x218] sm:$0xff]
    %v4206 = vld [vmem:[%s2 + $0x220] sm:$0xff]
    %v4207 = vld [vmem:[%s2 + $0x228] sm:$0xff]
    %v4208 = vld [vmem:[%s2 + $0x230] sm:$0xff]
    %v4209 = vld [vmem:[%s2 + $0x238] sm:$0xff]
    %v4210 = vld [vmem:[%s2 + $0x240] sm:$0xff]
    %v4211 = vld [vmem:[%s2 + $0x248] sm:$0xff]
    %v4212 = vld [vmem:[%s2 + $0x250] sm:$0xff]
    %v4213 = vld [vmem:[%s2 + $0x258] sm:$0xff]
    %v4214 = vld [vmem:[%s2 + $0x260] sm:$0xff]
    %v4215 = vld [vmem:[%s2 + $0x268] sm:$0xff]
    %v4216 = vld [vmem:[%s2 + $0x270] sm:$0xff]
    %v4217 = vld [vmem:[%s2 + $0x278] sm:$0xff]
    %v4218 = vld [vmem:[%s2 + $0x280] sm:$0xff]
    %v4219 = vld [vmem:[%s2 + $0x288] sm:$0xff]
    %v4220 = vld [vmem:[%s2 + $0x290] sm:$0xff]
    %v4221 = vld [vmem:[%s2 + $0x298] sm:$0xff]
    %v4222 = vld [vmem:[%s2 + $0x2a0] sm:$0xff]
    %v4223 = vld [vmem:[%s2 + $0x2a8] sm:$0xff]
    %v4224 = vld [vmem:[%s2 + $0x2b0] sm:$0xff]
    %v4225 = vld [vmem:[%s2 + $0x2b8] sm:$0xff]
    %v4226 = vld [vmem:[%s2 + $0x2c0] sm:$0xff]
    %v4227 = vld [vmem:[%s2 + $0x2c8] sm:$0xff]
    %v4228 = vmul.f32 %v4048, %v4138
    %v4229 = vmul.f32 %v4049, %v4139
    %v4230 = vmul.f32 %v4050, %v4140
    %v4231 = vmul.f32 %v4051, %v4141
    %v4232 = vmul.f32 %v4052, %v4142
    %v4233 = vmul.f32 %v4053, %v4143
    %v4234 = vmul.f32 %v4054, %v4144
    %v4235 = vmul.f32 %v4055, %v4145
    %v4236 = vmul.f32 %v4056, %v4146
    %v4237 = vmul.f32 %v4057, %v4147
    %v4238 = vmul.f32 %v4058, %v4148
    %v4239 = vmul.f32 %v4059, %v4149
    %v4240 = vmul.f32 %v4060, %v4150
    %v4241 = vmul.f32 %v4061, %v4151
    %v4242 = vmul.f32 %v4062, %v4152
    %v4243 = vmul.f32 %v4063, %v4153
    %v4244 = vmul.f32 %v4064, %v4154
    %v4245 = vmul.f32 %v4065, %v4155
    %v4246 = vmul.f32 %v4066, %v4156
    %v4247 = vmul.f32 %v4067, %v4157
    %v4248 = vmul.f32 %v4068, %v4158
    %v4249 = vmul.f32 %v4069, %v4159
    %v4250 = vmul.f32 %v4070, %v4160
    %v4251 = vmul.f32 %v4071, %v4161
    %v4252 = vmul.f32 %v4072, %v4162
    %v4253 = vmul.f32 %v4073, %v4163
    %v4254 = vmul.f32 %v4074, %v4164
    %v4255 = vmul.f32 %v4075, %v4165
    %v4256 = vmul.f32 %v4076, %v4166
    %v4257 = vmul.f32 %v4077, %v4167
    %v4258 = vmul.f32 %v4078, %v4168
    %v4259 = vmul.f32 %v4079, %v4169
    %v4260 = vmul.f32 %v4080, %v4170
    %v4261 = vmul.f32 %v4081, %v4171
    %v4262 = vmul.f32 %v4082, %v4172
    %v4263 = vmul.f32 %v4083, %v4173
    %v4264 = vmul.f32 %v4084, %v4174
    %v4265 = vmul.f32 %v4085, %v4175
    %v4266 = vmul.f32 %v4086, %v4176
    %v4267 = vmul.f32 %v4087, %v4177
    %v4268 = vmul.f32 %v4088, %v4178
    %v4269 = vmul.f32 %v4089, %v4179
    %v4270 = vmul.f32 %v4090, %v4180
    %v4271 = vmul.f32 %v4091, %v4181
    %v4272 = vmul.f32 %v4092, %v4182
    %v4273 = vmul.f32 %v4093, %v4183
    %v4274 = vmul.f32 %v4094, %v4184
    %v4275 = vmul.f32 %v4095, %v4185
    %v4276 = vmul.f32 %v4096, %v4186
    %v4277 = vmul.f32 %v4097, %v4187
    %v4278 = vmul.f32 %v4098, %v4188
    %v4279 = vmul.f32 %v4099, %v4189
    %v4280 = vmul.f32 %v4100, %v4190
    %v4281 = vmul.f32 %v4101, %v4191
    %v4282 = vmul.f32 %v4102, %v4192
    %v4283 = vmul.f32 %v4103, %v4193
    %v4284 = vmul.f32 %v4104, %v4194
    %v4285 = vmul.f32 %v4105, %v4195
    %v4286 = vmul.f32 %v4106, %v4196
    %v4287 = vmul.f32 %v4107, %v4197
    %v4288 = vmul.f32 %v4108, %v4198
    %v4289 = vmul.f32 %v4109, %v4199
    %v4290 = vmul.f32 %v4110, %v4200
    %v4291 = vmul.f32 %v4111, %v4201
    %v4292 = vmul.f32 %v4112, %v4202
    %v4293 = vmul.f32 %v4113, %v4203
    %v4294 = vmul.f32 %v4114, %v4204
    %v4295 = vmul.f32 %v4115, %v4205
    %v4296 = vmul.f32 %v4116, %v4206
    %v4297 = vmul.f32 %v4117, %v4207
    %v4298 = vmul.f32 %v4118, %v4208
    %v4299 = vmul.f32 %v4119, %v4209
    %v4300 = vmul.f32 %v4120, %v4210
    %v4301 = vmul.f32 %v4121, %v4211
    %v4302 = vmul.f32 %v4122, %v4212
    %v4303 = vmul.f32 %v4123, %v4213
    %v4304 = vmul.f32 %v4124, %v4214
    %v4305 = vmul.f32 %v4125, %v4215
    %v4306 = vmul.f32 %v4126, %v4216
    %v4307 = vmul.f32 %v4127, %v4217
    %v4308 = vmul.f32 %v4128, %v4218
    %v4309 = vmul.f32 %v4129, %v4219
    %v4310 = vmul.f32 %v4130, %v4220
    %v4311 = vmul.f32 %v4131, %v4221
    %v4312 = vmul.f32 %v4132, %v4222
    %v4313 = vmul.f32 %v4133, %v4223
    %v4314 = vmul.f32 %v4134, %v4224
    %v4315 = vmul.f32 %v4135, %v4225
    %v4316 = vmul.f32 %v4136, %v4226
    %v4317 = vmul.f32 %v4137, %v4227
    %v4318 = vld [vmem:[%s3] sm:$0xff]
    %v4319 = vld [vmem:[%s3 + $0x8] sm:$0xff]
    %v4320 = vld [vmem:[%s3 + $0x10] sm:$0xff]
    %v4321 = vld [vmem:[%s3 + $0x18] sm:$0xff]
    %v4322 = vld [vmem:[%s3 + $0x20] sm:$0xff]
    %v4323 = vld [vmem:[%s3 + $0x28] sm:$0xff]
    %v4324 = vld [vmem:[%s3 + $0x30] sm:$0xff]
    %v4325 = vld [vmem:[%s3 + $0x38] sm:$0xff]
    %v4326 = vld [vmem:[%s3 + $0x40] sm:$0xff]
    %v4327 = vld [vmem:[%s3 + $0x48] sm:$0xff]
    %v4328 = vld [vmem:[%s3 + $0x50] sm:$0xff]
    %v4329 = vld [vmem:[%s3 + $0x58] sm:$0xff]
    %v4330 = vld [vmem:[%s3 + $0x60] sm:$0xff]
    %v4331 = vld [vmem:[%s3 + $0x68] sm:$0xff]
    %v4332 = vld [vmem:[%s3 + $0x70] sm:$0xff]
    %v4333 = vld [vmem:[%s3 + $0x78] sm:$0xff]
    %v4334 = vld [vmem:[%s3 + $0x80] sm:$0xff]
    %v4335 = vld [vmem:[%s3 + $0x88] sm:$0xff]
    %v4336 = vld [vmem:[%s3 + $0x90] sm:$0xff]
    %v4337 = vld [vmem:[%s3 + $0x98] sm:$0xff]
    %v4338 = vld [vmem:[%s3 + $0xa0] sm:$0xff]
    %v4339 = vld [vmem:[%s3 + $0xa8] sm:$0xff]
    %v4340 = vld [vmem:[%s3 + $0xb0] sm:$0xff]
    %v4341 = vld [vmem:[%s3 + $0xb8] sm:$0xff]
    %v4342 = vld [vmem:[%s3 + $0xc0] sm:$0xff]
    %v4343 = vld [vmem:[%s3 + $0xc8] sm:$0xff]
    %v4344 = vld [vmem:[%s3 + $0xd0] sm:$0xff]
    %v4345 = vld [vmem:[%s3 + $0xd8] sm:$0xff]
    %v4346 = vld [vmem:[%s3 + $0xe0] sm:$0xff]
    %v4347 = vld [vmem:[%s3 + $0xe8] sm:$0xff]
    %v4348 = vld [vmem:[%s3 + $0xf0] sm:$0xff]
    %v4349 = vld [vmem:[%s3 + $0xf8] sm:$0xff]
    %v4350 = vld [vmem:[%s3 + $0x100] sm:$0xff]
    %v4351 = vld [vmem:[%s3 + $0x108] sm:$0xff]
    %v4352 = vld [vmem:[%s3 + $0x110] sm:$0xff]
    %v4353 = vld [vmem:[%s3 + $0x118] sm:$0xff]
    %v4354 = vld [vmem:[%s3 + $0x120] sm:$0xff]
    %v4355 = vld [vmem:[%s3 + $0x128] sm:$0xff]
    %v4356 = vld [vmem:[%s3 + $0x130] sm:$0xff]
    %v4357 = vld [vmem:[%s3 + $0x138] sm:$0xff]
    %v4358 = vld [vmem:[%s3 + $0x140] sm:$0xff]
    %v4359 = vld [vmem:[%s3 + $0x148] sm:$0xff]
    %v4360 = vld [vmem:[%s3 + $0x150] sm:$0xff]
    %v4361 = vld [vmem:[%s3 + $0x158] sm:$0xff]
    %v4362 = vld [vmem:[%s3 + $0x160] sm:$0xff]
    %v4363 = vld [vmem:[%s3 + $0x168] sm:$0xff]
    %v4364 = vld [vmem:[%s3 + $0x170] sm:$0xff]
    %v4365 = vld [vmem:[%s3 + $0x178] sm:$0xff]
    %v4366 = vld [vmem:[%s3 + $0x180] sm:$0xff]
    %v4367 = vld [vmem:[%s3 + $0x188] sm:$0xff]
    %v4368 = vld [vmem:[%s3 + $0x190] sm:$0xff]
    %v4369 = vld [vmem:[%s3 + $0x198] sm:$0xff]
    %v4370 = vld [vmem:[%s3 + $0x1a0] sm:$0xff]
    %v4371 = vld [vmem:[%s3 + $0x1a8] sm:$0xff]
    %v4372 = vld [vmem:[%s3 + $0x1b0] sm:$0xff]
    %v4373 = vld [vmem:[%s3 + $0x1b8] sm:$0xff]
    %v4374 = vld [vmem:[%s3 + $0x1c0] sm:$0xff]
    %v4375 = vld [vmem:[%s3 + $0x1c8] sm:$0xff]
    %v4376 = vld [vmem:[%s3 + $0x1d0] sm:$0xff]
    %v4377 = vld [vmem:[%s3 + $0x1d8] sm:$0xff]
    %v4378 = vld [vmem:[%s3 + $0x1e0] sm:$0xff]
    %v4379 = vld [vmem:[%s3 + $0x1e8] sm:$0xff]
    %v4380 = vld [vmem:[%s3 + $0x1f0] sm:$0xff]
    %v4381 = vld [vmem:[%s3 + $0x1f8] sm:$0xff]
    %v4382 = vld [vmem:[%s3 + $0x200] sm:$0xff]
    %v4383 = vld [vmem:[%s3 + $0x208] sm:$0xff]
    %v4384 = vld [vmem:[%s3 + $0x210] sm:$0xff]
    %v4385 = vld [vmem:[%s3 + $0x218] sm:$0xff]
    %v4386 = vld [vmem:[%s3 + $0x220] sm:$0xff]
    %v4387 = vld [vmem:[%s3 + $0x228] sm:$0xff]
    %v4388 = vld [vmem:[%s3 + $0x230] sm:$0xff]
    %v4389 = vld [vmem:[%s3 + $0x238] sm:$0xff]
    %v4390 = vld [vmem:[%s3 + $0x240] sm:$0xff]
    %v4391 = vld [vmem:[%s3 + $0x248] sm:$0xff]
    %v4392 = vld [vmem:[%s3 + $0x250] sm:$0xff]
    %v4393 = vld [vmem:[%s3 + $0x258] sm:$0xff]
    %v4394 = vld [vmem:[%s3 + $0x260] sm:$0xff]
    %v4395 = vld [vmem:[%s3 + $0x268] sm:$0xff]
    %v4396 = vld [vmem:[%s3 + $0x270] sm:$0xff]
    %v4397 = vld [vmem:[%s3 + $0x278] sm:$0xff]
    %v4398 = vld [vmem:[%s3 + $0x280] sm:$0xff]
    %v4399 = vld [vmem:[%s3 + $0x288] sm:$0xff]
    %v4400 = vld [vmem:[%s3 + $0x290] sm:$0xff]
    %v4401 = vld [vmem:[%s3 + $0x298] sm:$0xff]
    %v4402 = vld [vmem:[%s3 + $0x2a0] sm:$0xff]
    %v4403 = vld [vmem:[%s3 + $0x2a8] sm:$0xff]
    %v4404 = vld [vmem:[%s3 + $0x2b0] sm:$0xff]
    %v4405 = vld [vmem:[%s3 + $0x2b8] sm:$0xff]
    %v4406 = vld [vmem:[%s3 + $0x2c0] sm:$0xff]
    %v4407 = vld [vmem:[%s3 + $0x2c8] sm:$0xff]
    %v4408 = vmul.f32 %v3598, %v4228
    %v4409 = vmul.f32 %v3599, %v4229
    %v4410 = vmul.f32 %v3600, %v4230
    %v4411 = vmul.f32 %v3601, %v4231
    %v4412 = vmul.f32 %v3602, %v4232
    %v4413 = vmul.f32 %v3603, %v4233
    %v4414 = vmul.f32 %v3604, %v4234
    %v4415 = vmul.f32 %v3605, %v4235
    %v4416 = vmul.f32 %v3606, %v4236
    %v4417 = vmul.f32 %v3607, %v4237
    %v4418 = vmul.f32 %v3608, %v4238
    %v4419 = vmul.f32 %v3609, %v4239
    %v4420 = vmul.f32 %v3610, %v4240
    %v4421 = vmul.f32 %v3611, %v4241
    %v4422 = vmul.f32 %v3612, %v4242
    %v4423 = vmul.f32 %v3613, %v4243
    %v4424 = vmul.f32 %v3614, %v4244
    %v4425 = vmul.f32 %v3615, %v4245
    %v4426 = vmul.f32 %v3616, %v4246
    %v4427 = vmul.f32 %v3617, %v4247
    %v4428 = vmul.f32 %v3618, %v4248
    %v4429 = vmul.f32 %v3619, %v4249
    %v4430 = vmul.f32 %v3620, %v4250
    %v4431 = vmul.f32 %v3621, %v4251
    %v4432 = vmul.f32 %v3622, %v4252
    %v4433 = vmul.f32 %v3623, %v4253
    %v4434 = vmul.f32 %v3624, %v4254
    %v4435 = vmul.f32 %v3625, %v4255
    %v4436 = vmul.f32 %v3626, %v4256
    %v4437 = vmul.f32 %v3627, %v4257
    %v4438 = vmul.f32 %v3628, %v4258
    %v4439 = vmul.f32 %v3629, %v4259
    %v4440 = vmul.f32 %v3630, %v4260
    %v4441 = vmul.f32 %v3631, %v4261
    %v4442 = vmul.f32 %v3632, %v4262
    %v4443 = vmul.f32 %v3633, %v4263
    %v4444 = vmul.f32 %v3634, %v4264
    %v4445 = vmul.f32 %v3635, %v4265
    %v4446 = vmul.f32 %v3636, %v4266
    %v4447 = vmul.f32 %v3637, %v4267
    %v4448 = vmul.f32 %v3638, %v4268
    %v4449 = vmul.f32 %v3639, %v4269
    %v4450 = vmul.f32 %v3640, %v4270
    %v4451 = vmul.f32 %v3641, %v4271
    %v4452 = vmul.f32 %v3642, %v4272
    %v4453 = vmul.f32 %v3643, %v4273
    %v4454 = vmul.f32 %v3644, %v4274
    %v4455 = vmul.f32 %v3645, %v4275
    %v4456 = vmul.f32 %v3646, %v4276
    %v4457 = vmul.f32 %v3647, %v4277
    %v4458 = vmul.f32 %v3648, %v4278
    %v4459 = vmul.f32 %v3649, %v4279
    %v4460 = vmul.f32 %v3650, %v4280
    %v4461 = vmul.f32 %v3651, %v4281
    %v4462 = vmul.f32 %v3652, %v4282
    %v4463 = vmul.f32 %v3653, %v4283
    %v4464 = vmul.f32 %v3654, %v4284
    %v4465 = vmul.f32 %v3655, %v4285
    %v4466 = vmul.f32 %v3656, %v4286
    %v4467 = vmul.f32 %v3657, %v4287
    %v4468 = vmul.f32 %v3658, %v4288
    %v4469 = vmul.f32 %v3659, %v4289
    %v4470 = vmul.f32 %v3660, %v4290
    %v4471 = vmul.f32 %v3661, %v4291
    %v4472 = vmul.f32 %v3662, %v4292
    %v4473 = vmul.f32 %v3663, %v4293
    %v4474 = vmul.f32 %v3664, %v4294
    %v4475 = vmul.f32 %v3665, %v4295
    %v4476 = vmul.f32 %v3666, %v4296
    %v4477 = vmul.f32 %v3667, %v4297
    %v4478 = vmul.f32 %v3668, %v4298
    %v4479 = vmul.f32 %v3669, %v4299
    %v4480 = vmul.f32 %v3670, %v4300
    %v4481 = vmul.f32 %v3671, %v4301
    %v4482 = vmul.f32 %v3672, %v4302
    %v4483 = vmul.f32 %v3673, %v4303
    %v4484 = vmul.f32 %v3674, %v4304
    %v4485 = vmul.f32 %v3675, %v4305
    %v4486 = vmul.f32 %v3676, %v4306
    %v4487 = vmul.f32 %v3677, %v4307
    %v4488 = vmul.f32 %v3678, %v4308
    %v4489 = vmul.f32 %v3679, %v4309
    %v4490 = vmul.f32 %v3680, %v4310
    %v4491 = vmul.f32 %v3681, %v4311
    %v4492 = vmul.f32 %v3682, %v4312
    %v4493 = vmul.f32 %v3683, %v4313
    %v4494 = vmul.f32 %v3684, %v4314
    %v4495 = vmul.f32 %v3685, %v4315
    %v4496 = vmul.f32 %v3686, %v4316
    %v4497 = vmul.f32 %v3687, %v4317
    %v4498 = vsub.f32 %v4318, %v4408
    %v4499 = vsub.f32 %v4319, %v4409
    %v4500 = vsub.f32 %v4320, %v4410
    %v4501 = vsub.f32 %v4321, %v4411
    %v4502 = vsub.f32 %v4322, %v4412
    %v4503 = vsub.f32 %v4323, %v4413
    %v4504 = vsub.f32 %v4324, %v4414
    %v4505 = vsub.f32 %v4325, %v4415
    %v4506 = vsub.f32 %v4326, %v4416
    %v4507 = vsub.f32 %v4327, %v4417
    %v4508 = vsub.f32 %v4328, %v4418
    %v4509 = vsub.f32 %v4329, %v4419
    %v4510 = vsub.f32 %v4330, %v4420
    %v4511 = vsub.f32 %v4331, %v4421
    %v4512 = vsub.f32 %v4332, %v4422
    %v4513 = vsub.f32 %v4333, %v4423
    %v4514 = vsub.f32 %v4334, %v4424
    %v4515 = vsub.f32 %v4335, %v4425
    %v4516 = vsub.f32 %v4336, %v4426
    %v4517 = vsub.f32 %v4337, %v4427
    %v4518 = vsub.f32 %v4338, %v4428
    %v4519 = vsub.f32 %v4339, %v4429
    %v4520 = vsub.f32 %v4340, %v4430
    %v4521 = vsub.f32 %v4341, %v4431
    %v4522 = vsub.f32 %v4342, %v4432
    %v4523 = vsub.f32 %v4343, %v4433
    %v4524 = vsub.f32 %v4344, %v4434
    %v4525 = vsub.f32 %v4345, %v4435
    %v4526 = vsub.f32 %v4346, %v4436
    %v4527 = vsub.f32 %v4347, %v4437
    %v4528 = vsub.f32 %v4348, %v4438
    %v4529 = vsub.f32 %v4349, %v4439
    %v4530 = vsub.f32 %v4350, %v4440
    %v4531 = vsub.f32 %v4351, %v4441
    %v4532 = vsub.f32 %v4352, %v4442
    %v4533 = vsub.f32 %v4353, %v4443
    %v4534 = vsub.f32 %v4354, %v4444
    %v4535 = vsub.f32 %v4355, %v4445
    %v4536 = vsub.f32 %v4356, %v4446
    %v4537 = vsub.f32 %v4357, %v4447
    %v4538 = vsub.f32 %v4358, %v4448
    %v4539 = vsub.f32 %v4359, %v4449
    %v4540 = vsub.f32 %v4360, %v4450
    %v4541 = vsub.f32 %v4361, %v4451
    %v4542 = vsub.f32 %v4362, %v4452
    %v4543 = vsub.f32 %v4363, %v4453
    %v4544 = vsub.f32 %v4364, %v4454
    %v4545 = vsub.f32 %v4365, %v4455
    %v4546 = vsub.f32 %v4366, %v4456
    %v4547 = vsub.f32 %v4367, %v4457
    %v4548 = vsub.f32 %v4368, %v4458
    %v4549 = vsub.f32 %v4369, %v4459
    %v4550 = vsub.f32 %v4370, %v4460
    %v4551 = vsub.f32 %v4371, %v4461
    %v4552 = vsub.f32 %v4372, %v4462
    %v4553 = vsub.f32 %v4373, %v4463
    %v4554 = vsub.f32 %v4374, %v4464
    %v4555 = vsub.f32 %v4375, %v4465
    %v4556 = vsub.f32 %v4376, %v4466
    %v4557 = vsub.f32 %v4377, %v4467
    %v4558 = vsub.f32 %v4378, %v4468
    %v4559 = vsub.f32 %v4379, %v4469
    %v4560 = vsub.f32 %v4380, %v4470
    %v4561 = vsub.f32 %v4381, %v4471
    %v4562 = vsub.f32 %v4382, %v4472
    %v4563 = vsub.f32 %v4383, %v4473
    %v4564 = vsub.f32 %v4384, %v4474
    %v4565 = vsub.f32 %v4385, %v4475
    %v4566 = vsub.f32 %v4386, %v4476
    %v4567 = vsub.f32 %v4387, %v4477
    %v4568 = vsub.f32 %v4388, %v4478
    %v4569 = vsub.f32 %v4389, %v4479
    %v4570 = vsub.f32 %v4390, %v4480
    %v4571 = vsub.f32 %v4391, %v4481
    %v4572 = vsub.f32 %v4392, %v4482
    %v4573 = vsub.f32 %v4393, %v4483
    %v4574 = vsub.f32 %v4394, %v4484
    %v4575 = vsub.f32 %v4395, %v4485
    %v4576 = vsub.f32 %v4396, %v4486
    %v4577 = vsub.f32 %v4397, %v4487
    %v4578 = vsub.f32 %v4398, %v4488
    %v4579 = vsub.f32 %v4399, %v4489
    %v4580 = vsub.f32 %v4400, %v4490
    %v4581 = vsub.f32 %v4401, %v4491
    %v4582 = vsub.f32 %v4402, %v4492
    %v4583 = vsub.f32 %v4403, %v4493
    %v4584 = vsub.f32 %v4404, %v4494
    %v4585 = vsub.f32 %v4405, %v4495
    %v4586 = vsub.f32 %v4406, %v4496
    %v4587 = vsub.f32 %v4407, %v4497
    %4589 = vset.pattern.permute.xlu0 0
    %4590 = vperm.xlu0 %4589, %v4228
    %v4591 = vpop.permute.xlu0 %4590
    %4594 = vset.pattern.permute.xlu0 0
    %4595 = vperm.xlu0 %4594, %v4229
    %v4596 = vpop.permute.xlu0 %4595
    %4599 = vset.pattern.permute.xlu0 0
    %4600 = vperm.xlu0 %4599, %v4230
    %v4601 = vpop.permute.xlu0 %4600
    %4604 = vset.pattern.permute.xlu0 0
    %4605 = vperm.xlu0 %4604, %v4231
    %v4606 = vpop.permute.xlu0 %4605
    %4609 = vset.pattern.permute.xlu0 0
    %4610 = vperm.xlu0 %4609, %v4232
    %v4611 = vpop.permute.xlu0 %4610
    %4614 = vset.pattern.permute.xlu0 0
    %4615 = vperm.xlu0 %4614, %v4233
    %v4616 = vpop.permute.xlu0 %4615
    %4619 = vset.pattern.permute.xlu0 0
    %4620 = vperm.xlu0 %4619, %v4234
    %v4621 = vpop.permute.xlu0 %4620
    %4624 = vset.pattern.permute.xlu0 0
    %4625 = vperm.xlu0 %4624, %v4235
    %v4626 = vpop.permute.xlu0 %4625
    %4629 = vset.pattern.permute.xlu0 0
    %4630 = vperm.xlu0 %4629, %v4236
    %v4631 = vpop.permute.xlu0 %4630
    %4634 = vset.pattern.permute.xlu0 0
    %4635 = vperm.xlu0 %4634, %v4237
    %v4636 = vpop.permute.xlu0 %4635
    %4639 = vset.pattern.permute.xlu0 0
    %4640 = vperm.xlu0 %4639, %v4238
    %v4641 = vpop.permute.xlu0 %4640
    %4644 = vset.pattern.permute.xlu0 0
    %4645 = vperm.xlu0 %4644, %v4239
    %v4646 = vpop.permute.xlu0 %4645
    %4649 = vset.pattern.permute.xlu0 0
    %4650 = vperm.xlu0 %4649, %v4240
    %v4651 = vpop.permute.xlu0 %4650
    %4654 = vset.pattern.permute.xlu0 0
    %4655 = vperm.xlu0 %4654, %v4241
    %v4656 = vpop.permute.xlu0 %4655
    %4659 = vset.pattern.permute.xlu0 0
    %4660 = vperm.xlu0 %4659, %v4242
    %v4661 = vpop.permute.xlu0 %4660
    %4664 = vset.pattern.permute.xlu0 0
    %4665 = vperm.xlu0 %4664, %v4243
    %v4666 = vpop.permute.xlu0 %4665
    %4669 = vset.pattern.permute.xlu0 0
    %4670 = vperm.xlu0 %4669, %v4244
    %v4671 = vpop.permute.xlu0 %4670
    %4674 = vset.pattern.permute.xlu0 0
    %4675 = vperm.xlu0 %4674, %v4245
    %v4676 = vpop.permute.xlu0 %4675
    %4679 = vset.pattern.permute.xlu0 0
    %4680 = vperm.xlu0 %4679, %v4246
    %v4681 = vpop.permute.xlu0 %4680
    %4684 = vset.pattern.permute.xlu0 0
    %4685 = vperm.xlu0 %4684, %v4247
    %v4686 = vpop.permute.xlu0 %4685
    %4689 = vset.pattern.permute.xlu0 0
    %4690 = vperm.xlu0 %4689, %v4248
    %v4691 = vpop.permute.xlu0 %4690
    %4694 = vset.pattern.permute.xlu0 0
    %4695 = vperm.xlu0 %4694, %v4249
    %v4696 = vpop.permute.xlu0 %4695
    %4699 = vset.pattern.permute.xlu0 0
    %4700 = vperm.xlu0 %4699, %v4250
    %v4701 = vpop.permute.xlu0 %4700
    %4704 = vset.pattern.permute.xlu0 0
    %4705 = vperm.xlu0 %4704, %v4251
    %v4706 = vpop.permute.xlu0 %4705
    %4709 = vset.pattern.permute.xlu0 0
    %4710 = vperm.xlu0 %4709, %v4252
    %v4711 = vpop.permute.xlu0 %4710
    %4714 = vset.pattern.permute.xlu0 0
    %4715 = vperm.xlu0 %4714, %v4253
    %v4716 = vpop.permute.xlu0 %4715
    %4719 = vset.pattern.permute.xlu0 0
    %4720 = vperm.xlu0 %4719, %v4254
    %v4721 = vpop.permute.xlu0 %4720
    %4724 = vset.pattern.permute.xlu0 0
    %4725 = vperm.xlu0 %4724, %v4255
    %v4726 = vpop.permute.xlu0 %4725
    %4729 = vset.pattern.permute.xlu0 0
    %4730 = vperm.xlu0 %4729, %v4256
    %v4731 = vpop.permute.xlu0 %4730
    %4734 = vset.pattern.permute.xlu0 0
    %4735 = vperm.xlu0 %4734, %v4257
    %v4736 = vpop.permute.xlu0 %4735
    %4739 = vset.pattern.permute.xlu0 0
    %4740 = vperm.xlu0 %4739, %v4258
    %v4741 = vpop.permute.xlu0 %4740
    %4744 = vset.pattern.permute.xlu0 0
    %4745 = vperm.xlu0 %4744, %v4259
    %v4746 = vpop.permute.xlu0 %4745
    %4749 = vset.pattern.permute.xlu0 0
    %4750 = vperm.xlu0 %4749, %v4260
    %v4751 = vpop.permute.xlu0 %4750
    %4754 = vset.pattern.permute.xlu0 0
    %4755 = vperm.xlu0 %4754, %v4261
    %v4756 = vpop.permute.xlu0 %4755
    %4759 = vset.pattern.permute.xlu0 0
    %4760 = vperm.xlu0 %4759, %v4262
    %v4761 = vpop.permute.xlu0 %4760
    %4764 = vset.pattern.permute.xlu0 0
    %4765 = vperm.xlu0 %4764, %v4263
    %v4766 = vpop.permute.xlu0 %4765
    %4769 = vset.pattern.permute.xlu0 0
    %4770 = vperm.xlu0 %4769, %v4264
    %v4771 = vpop.permute.xlu0 %4770
    %4774 = vset.pattern.permute.xlu0 0
    %4775 = vperm.xlu0 %4774, %v4265
    %v4776 = vpop.permute.xlu0 %4775
    %4779 = vset.pattern.permute.xlu0 0
    %4780 = vperm.xlu0 %4779, %v4266
    %v4781 = vpop.permute.xlu0 %4780
    %4784 = vset.pattern.permute.xlu0 0
    %4785 = vperm.xlu0 %4784, %v4267
    %v4786 = vpop.permute.xlu0 %4785
    %4789 = vset.pattern.permute.xlu0 0
    %4790 = vperm.xlu0 %4789, %v4268
    %v4791 = vpop.permute.xlu0 %4790
    %4794 = vset.pattern.permute.xlu0 0
    %4795 = vperm.xlu0 %4794, %v4269
    %v4796 = vpop.permute.xlu0 %4795
    %4799 = vset.pattern.permute.xlu0 0
    %4800 = vperm.xlu0 %4799, %v4270
    %v4801 = vpop.permute.xlu0 %4800
    %4804 = vset.pattern.permute.xlu0 0
    %4805 = vperm.xlu0 %4804, %v4271
    %v4806 = vpop.permute.xlu0 %4805
    %4809 = vset.pattern.permute.xlu0 0
    %4810 = vperm.xlu0 %4809, %v4272
    %v4811 = vpop.permute.xlu0 %4810
    %4814 = vset.pattern.permute.xlu0 0
    %4815 = vperm.xlu0 %4814, %v4273
    %v4816 = vpop.permute.xlu0 %4815
    %4819 = vset.pattern.permute.xlu0 0
    %4820 = vperm.xlu0 %4819, %v4274
    %v4821 = vpop.permute.xlu0 %4820
    %4824 = vset.pattern.permute.xlu0 0
    %4825 = vperm.xlu0 %4824, %v4275
    %v4826 = vpop.permute.xlu0 %4825
    %4829 = vset.pattern.permute.xlu0 0
    %4830 = vperm.xlu0 %4829, %v4276
    %v4831 = vpop.permute.xlu0 %4830
    %4834 = vset.pattern.permute.xlu0 0
    %4835 = vperm.xlu0 %4834, %v4277
    %v4836 = vpop.permute.xlu0 %4835
    %4839 = vset.pattern.permute.xlu0 0
    %4840 = vperm.xlu0 %4839, %v4278
    %v4841 = vpop.permute.xlu0 %4840
    %4844 = vset.pattern.permute.xlu0 0
    %4845 = vperm.xlu0 %4844, %v4279
    %v4846 = vpop.permute.xlu0 %4845
    %4849 = vset.pattern.permute.xlu0 0
    %4850 = vperm.xlu0 %4849, %v4280
    %v4851 = vpop.permute.xlu0 %4850
    %4854 = vset.pattern.permute.xlu0 0
    %4855 = vperm.xlu0 %4854, %v4281
    %v4856 = vpop.permute.xlu0 %4855
    %4859 = vset.pattern.permute.xlu0 0
    %4860 = vperm.xlu0 %4859, %v4282
    %v4861 = vpop.permute.xlu0 %4860
    %4864 = vset.pattern.permute.xlu0 0
    %4865 = vperm.xlu0 %4864, %v4283
    %v4866 = vpop.permute.xlu0 %4865
    %4869 = vset.pattern.permute.xlu0 0
    %4870 = vperm.xlu0 %4869, %v4284
    %v4871 = vpop.permute.xlu0 %4870
    %4874 = vset.pattern.permute.xlu0 0
    %4875 = vperm.xlu0 %4874, %v4285
    %v4876 = vpop.permute.xlu0 %4875
    %4879 = vset.pattern.permute.xlu0 0
    %4880 = vperm.xlu0 %4879, %v4286
    %v4881 = vpop.permute.xlu0 %4880
    %4884 = vset.pattern.permute.xlu0 0
    %4885 = vperm.xlu0 %4884, %v4287
    %v4886 = vpop.permute.xlu0 %4885
    %4889 = vset.pattern.permute.xlu0 0
    %4890 = vperm.xlu0 %4889, %v4288
    %v4891 = vpop.permute.xlu0 %4890
    %4894 = vset.pattern.permute.xlu0 0
    %4895 = vperm.xlu0 %4894, %v4289
    %v4896 = vpop.permute.xlu0 %4895
    %4899 = vset.pattern.permute.xlu0 0
    %4900 = vperm.xlu0 %4899, %v4290
    %v4901 = vpop.permute.xlu0 %4900
    %4904 = vset.pattern.permute.xlu0 0
    %4905 = vperm.xlu0 %4904, %v4291
    %v4906 = vpop.permute.xlu0 %4905
    %4909 = vset.pattern.permute.xlu0 0
    %4910 = vperm.xlu0 %4909, %v4292
    %v4911 = vpop.permute.xlu0 %4910
    %4914 = vset.pattern.permute.xlu0 0
    %4915 = vperm.xlu0 %4914, %v4293
    %v4916 = vpop.permute.xlu0 %4915
    %4919 = vset.pattern.permute.xlu0 0
    %4920 = vperm.xlu0 %4919, %v4294
    %v4921 = vpop.permute.xlu0 %4920
    %4924 = vset.pattern.permute.xlu0 0
    %4925 = vperm.xlu0 %4924, %v4295
    %v4926 = vpop.permute.xlu0 %4925
    %4929 = vset.pattern.permute.xlu0 0
    %4930 = vperm.xlu0 %4929, %v4296
    %v4931 = vpop.permute.xlu0 %4930
    %4934 = vset.pattern.permute.xlu0 0
    %4935 = vperm.xlu0 %4934, %v4297
    %v4936 = vpop.permute.xlu0 %4935
    %4939 = vset.pattern.permute.xlu0 0
    %4940 = vperm.xlu0 %4939, %v4298
    %v4941 = vpop.permute.xlu0 %4940
    %4944 = vset.pattern.permute.xlu0 0
    %4945 = vperm.xlu0 %4944, %v4299
    %v4946 = vpop.permute.xlu0 %4945
    %4949 = vset.pattern.permute.xlu0 0
    %4950 = vperm.xlu0 %4949, %v4300
    %v4951 = vpop.permute.xlu0 %4950
    %4954 = vset.pattern.permute.xlu0 0
    %4955 = vperm.xlu0 %4954, %v4301
    %v4956 = vpop.permute.xlu0 %4955
    %4959 = vset.pattern.permute.xlu0 0
    %4960 = vperm.xlu0 %4959, %v4302
    %v4961 = vpop.permute.xlu0 %4960
    %4964 = vset.pattern.permute.xlu0 0
    %4965 = vperm.xlu0 %4964, %v4303
    %v4966 = vpop.permute.xlu0 %4965
    %4969 = vset.pattern.permute.xlu0 0
    %4970 = vperm.xlu0 %4969, %v4304
    %v4971 = vpop.permute.xlu0 %4970
    %4974 = vset.pattern.permute.xlu0 0
    %4975 = vperm.xlu0 %4974, %v4305
    %v4976 = vpop.permute.xlu0 %4975
    %4979 = vset.pattern.permute.xlu0 0
    %4980 = vperm.xlu0 %4979, %v4306
    %v4981 = vpop.permute.xlu0 %4980
    %4984 = vset.pattern.permute.xlu0 0
    %4985 = vperm.xlu0 %4984, %v4307
    %v4986 = vpop.permute.xlu0 %4985
    %4989 = vset.pattern.permute.xlu0 0
    %4990 = vperm.xlu0 %4989, %v4308
    %v4991 = vpop.permute.xlu0 %4990
    %4994 = vset.pattern.permute.xlu0 0
    %4995 = vperm.xlu0 %4994, %v4309
    %v4996 = vpop.permute.xlu0 %4995
    %4999 = vset.pattern.permute.xlu0 0
    %5000 = vperm.xlu0 %4999, %v4310
    %v5001 = vpop.permute.xlu0 %5000
    %5004 = vset.pattern.permute.xlu0 0
    %5005 = vperm.xlu0 %5004, %v4311
    %v5006 = vpop.permute.xlu0 %5005
    %5009 = vset.pattern.permute.xlu0 0
    %5010 = vperm.xlu0 %5009, %v4312
    %v5011 = vpop.permute.xlu0 %5010
    %5014 = vset.pattern.permute.xlu0 0
    %5015 = vperm.xlu0 %5014, %v4313
    %v5016 = vpop.permute.xlu0 %5015
    %5019 = vset.pattern.permute.xlu0 0
    %5020 = vperm.xlu0 %5019, %v4314
    %v5021 = vpop.permute.xlu0 %5020
    %5024 = vset.pattern.permute.xlu0 0
    %5025 = vperm.xlu0 %5024, %v4315
    %v5026 = vpop.permute.xlu0 %5025
    %5029 = vset.pattern.permute.xlu0 0
    %5030 = vperm.xlu0 %5029, %v4316
    %v5031 = vpop.permute.xlu0 %5030
    %5034 = vset.pattern.permute.xlu0 0
    %5035 = vperm.xlu0 %5034, %v4317
    %v5036 = vpop.permute.xlu0 %5035
    %v5038 = vmul.f32 %v2249, %v4591
    %v5039 = vmul.f32 %v2251, %v4591
    %v5040 = vmul.f32 %v2253, %v4596
    %v5041 = vmul.f32 %v2255, %v4596
    %v5042 = vmul.f32 %v2259, %v4601
    %v5043 = vmul.f32 %v2261, %v4601
    %v5044 = vmul.f32 %v2263, %v4606
    %v5045 = vmul.f32 %v2265, %v4606
    %v5046 = vmul.f32 %v2269, %v4611
    %v5047 = vmul.f32 %v2271, %v4611
    %v5048 = vmul.f32 %v2273, %v4616
    %v5049 = vmul.f32 %v2275, %v4616
    %v5050 = vmul.f32 %v2279, %v4621
    %v5051 = vmul.f32 %v2281, %v4621
    %v5052 = vmul.f32 %v2283, %v4626
    %v5053 = vmul.f32 %v2285, %v4626
    %v5054 = vmul.f32 %v2289, %v4631
    %v5055 = vmul.f32 %v2291, %v4631
    %v5056 = vmul.f32 %v2293, %v4636
    %v5057 = vmul.f32 %v2295, %v4636
    %v5058 = vmul.f32 %v2299, %v4641
    %v5059 = vmul.f32 %v2301, %v4641
    %v5060 = vmul.f32 %v2303, %v4646
    %v5061 = vmul.f32 %v2305, %v4646
    %v5062 = vmul.f32 %v2309, %v4651
    %v5063 = vmul.f32 %v2311, %v4651
    %v5064 = vmul.f32 %v2313, %v4656
    %v5065 = vmul.f32 %v2315, %v4656
    %v5066 = vmul.f32 %v2319, %v4661
    %v5067 = vmul.f32 %v2321, %v4661
    %v5068 = vmul.f32 %v2323, %v4666
    %v5069 = vmul.f32 %v2325, %v4666
    %v5070 = vmul.f32 %v2329, %v4671
    %v5071 = vmul.f32 %v2331, %v4671
    %v5072 = vmul.f32 %v2333, %v4676
    %v5073 = vmul.f32 %v2335, %v4676
    %v5074 = vmul.f32 %v2339, %v4681
    %v5075 = vmul.f32 %v2341, %v4681
    %v5076 = vmul.f32 %v2343, %v4686
    %v5077 = vmul.f32 %v2345, %v4686
    %v5078 = vmul.f32 %v2349, %v4691
    %v5079 = vmul.f32 %v2351, %v4691
    %v5080 = vmul.f32 %v2353, %v4696
    %v5081 = vmul.f32 %v2355, %v4696
    %v5082 = vmul.f32 %v2359, %v4701
    %v5083 = vmul.f32 %v2361, %v4701
    %v5084 = vmul.f32 %v2363, %v4706
    %v5085 = vmul.f32 %v2365, %v4706
    %v5086 = vmul.f32 %v2369, %v4711
    %v5087 = vmul.f32 %v2371, %v4711
    %v5088 = vmul.f32 %v2373, %v4716
    %v5089 = vmul.f32 %v2375, %v4716
    %v5090 = vmul.f32 %v2379, %v4721
    %v5091 = vmul.f32 %v2381, %v4721
    %v5092 = vmul.f32 %v2383, %v4726
    %v5093 = vmul.f32 %v2385, %v4726
    %v5094 = vmul.f32 %v2389, %v4731
    %v5095 = vmul.f32 %v2391, %v4731
    %v5096 = vmul.f32 %v2393, %v4736
    %v5097 = vmul.f32 %v2395, %v4736
    %v5098 = vmul.f32 %v2399, %v4741
    %v5099 = vmul.f32 %v2401, %v4741
    %v5100 = vmul.f32 %v2403, %v4746
    %v5101 = vmul.f32 %v2405, %v4746
    %v5102 = vmul.f32 %v2409, %v4751
    %v5103 = vmul.f32 %v2411, %v4751
    %v5104 = vmul.f32 %v2413, %v4756
    %v5105 = vmul.f32 %v2415, %v4756
    %v5106 = vmul.f32 %v2419, %v4761
    %v5107 = vmul.f32 %v2421, %v4761
    %v5108 = vmul.f32 %v2423, %v4766
    %v5109 = vmul.f32 %v2425, %v4766
    %v5110 = vmul.f32 %v2429, %v4771
    %v5111 = vmul.f32 %v2431, %v4771
    %v5112 = vmul.f32 %v2433, %v4776
    %v5113 = vmul.f32 %v2435, %v4776
    %v5114 = vmul.f32 %v2439, %v4781
    %v5115 = vmul.f32 %v2441, %v4781
    %v5116 = vmul.f32 %v2443, %v4786
    %v5117 = vmul.f32 %v2445, %v4786
    %v5118 = vmul.f32 %v2449, %v4791
    %v5119 = vmul.f32 %v2451, %v4791
    %v5120 = vmul.f32 %v2453, %v4796
    %v5121 = vmul.f32 %v2455, %v4796
    %v5122 = vmul.f32 %v2459, %v4801
    %v5123 = vmul.f32 %v2461, %v4801
    %v5124 = vmul.f32 %v2463, %v4806
    %v5125 = vmul.f32 %v2465, %v4806
    %v5126 = vmul.f32 %v2469, %v4811
    %v5127 = vmul.f32 %v2471, %v4811
    %v5128 = vmul.f32 %v2473, %v4816
    %v5129 = vmul.f32 %v2475, %v4816
    %v5130 = vmul.f32 %v2479, %v4821
    %v5131 = vmul.f32 %v2481, %v4821
    %v5132 = vmul.f32 %v2483, %v4826
    %v5133 = vmul.f32 %v2485, %v4826
    %v5134 = vmul.f32 %v2489, %v4831
    %v5135 = vmul.f32 %v2491, %v4831
    %v5136 = vmul.f32 %v2493, %v4836
    %v5137 = vmul.f32 %v2495, %v4836
    %v5138 = vmul.f32 %v2499, %v4841
    %v5139 = vmul.f32 %v2501, %v4841
    %v5140 = vmul.f32 %v2503, %v4846
    %v5141 = vmul.f32 %v2505, %v4846
    %v5142 = vmul.f32 %v2509, %v4851
    %v5143 = vmul.f32 %v2511, %v4851
    %v5144 = vmul.f32 %v2513, %v4856
    %v5145 = vmul.f32 %v2515, %v4856
    %v5146 = vmul.f32 %v2519, %v4861
    %v5147 = vmul.f32 %v2521, %v4861
    %v5148 = vmul.f32 %v2523, %v4866
    %v5149 = vmul.f32 %v2525, %v4866
    %v5150 = vmul.f32 %v2529, %v4871
    %v5151 = vmul.f32 %v2531, %v4871
    %v5152 = vmul.f32 %v2533, %v4876
    %v5153 = vmul.f32 %v2535, %v4876
    %v5154 = vmul.f32 %v2539, %v4881
    %v5155 = vmul.f32 %v2541, %v4881
    %v5156 = vmul.f32 %v2543, %v4886
    %v5157 = vmul.f32 %v2545, %v4886
    %v5158 = vmul.f32 %v2549, %v4891
    %v5159 = vmul.f32 %v2551, %v4891
    %v5160 = vmul.f32 %v2553, %v4896
    %v5161 = vmul.f32 %v2555, %v4896
    %v5162 = vmul.f32 %v2559, %v4901
    %v5163 = vmul.f32 %v2561, %v4901
    %v5164 = vmul.f32 %v2563, %v4906
    %v5165 = vmul.f32 %v2565, %v4906
    %v5166 = vmul.f32 %v2569, %v4911
    %v5167 = vmul.f32 %v2571, %v4911
    %v5168 = vmul.f32 %v2573, %v4916
    %v5169 = vmul.f32 %v2575, %v4916
    %v5170 = vmul.f32 %v2579, %v4921
    %v5171 = vmul.f32 %v2581, %v4921
    %v5172 = vmul.f32 %v2583, %v4926
    %v5173 = vmul.f32 %v2585, %v4926
    %v5174 = vmul.f32 %v2589, %v4931
    %v5175 = vmul.f32 %v2591, %v4931
    %v5176 = vmul.f32 %v2593, %v4936
    %v5177 = vmul.f32 %v2595, %v4936
    %v5178 = vmul.f32 %v2599, %v4941
    %v5179 = vmul.f32 %v2601, %v4941
    %v5180 = vmul.f32 %v2603, %v4946
    %v5181 = vmul.f32 %v2605, %v4946
    %v5182 = vmul.f32 %v2609, %v4951
    %v5183 = vmul.f32 %v2611, %v4951
    %v5184 = vmul.f32 %v2613, %v4956
    %v5185 = vmul.f32 %v2615, %v4956
    %v5186 = vmul.f32 %v2619, %v4961
    %v5187 = vmul.f32 %v2621, %v4961
    %v5188 = vmul.f32 %v2623, %v4966
    %v5189 = vmul.f32 %v2625, %v4966
    %v5190 = vmul.f32 %v2629, %v4971
    %v5191 = vmul.f32 %v2631, %v4971
    %v5192 = vmul.f32 %v2633, %v4976
    %v5193 = vmul.f32 %v2635, %v4976
    %v5194 = vmul.f32 %v2639, %v4981
    %v5195 = vmul.f32 %v2641, %v4981
    %v5196 = vmul.f32 %v2643, %v4986
    %v5197 = vmul.f32 %v2645, %v4986
    %v5198 = vmul.f32 %v2649, %v4991
    %v5199 = vmul.f32 %v2651, %v4991
    %v5200 = vmul.f32 %v2653, %v4996
    %v5201 = vmul.f32 %v2655, %v4996
    %v5202 = vmul.f32 %v2659, %v5001
    %v5203 = vmul.f32 %v2661, %v5001
    %v5204 = vmul.f32 %v2663, %v5006
    %v5205 = vmul.f32 %v2665, %v5006
    %v5206 = vmul.f32 %v2669, %v5011
    %v5207 = vmul.f32 %v2671, %v5011
    %v5208 = vmul.f32 %v2673, %v5016
    %v5209 = vmul.f32 %v2675, %v5016
    %v5210 = vmul.f32 %v2679, %v5021
    %v5211 = vmul.f32 %v2681, %v5021
    %v5212 = vmul.f32 %v2683, %v5026
    %v5213 = vmul.f32 %v2685, %v5026
    %v5214 = vmul.f32 %v2689, %v5031
    %v5215 = vmul.f32 %v2691, %v5031
    %v5216 = vmul.f32 %v2693, %v5036
    %v5217 = vmul.f32 %v2695, %v5036
    %5219 = vset.pattern.permute.xlu0 0
    %5220 = vperm.xlu0 %5219, %v4498
    %v5221 = vpop.permute.xlu0 %5220
    %5224 = vset.pattern.permute.xlu0 0
    %5225 = vperm.xlu0 %5224, %v4499
    %v5226 = vpop.permute.xlu0 %5225
    %5229 = vset.pattern.permute.xlu0 0
    %5230 = vperm.xlu0 %5229, %v4500
    %v5231 = vpop.permute.xlu0 %5230
    %5234 = vset.pattern.permute.xlu0 0
    %5235 = vperm.xlu0 %5234, %v4501
    %v5236 = vpop.permute.xlu0 %5235
    %5239 = vset.pattern.permute.xlu0 0
    %5240 = vperm.xlu0 %5239, %v4502
    %v5241 = vpop.permute.xlu0 %5240
    %5244 = vset.pattern.permute.xlu0 0
    %5245 = vperm.xlu0 %5244, %v4503
    %v5246 = vpop.permute.xlu0 %5245
    %5249 = vset.pattern.permute.xlu0 0
    %5250 = vperm.xlu0 %5249, %v4504
    %v5251 = vpop.permute.xlu0 %5250
    %5254 = vset.pattern.permute.xlu0 0
    %5255 = vperm.xlu0 %5254, %v4505
    %v5256 = vpop.permute.xlu0 %5255
    %5259 = vset.pattern.permute.xlu0 0
    %5260 = vperm.xlu0 %5259, %v4506
    %v5261 = vpop.permute.xlu0 %5260
    %5264 = vset.pattern.permute.xlu0 0
    %5265 = vperm.xlu0 %5264, %v4507
    %v5266 = vpop.permute.xlu0 %5265
    %5269 = vset.pattern.permute.xlu0 0
    %5270 = vperm.xlu0 %5269, %v4508
    %v5271 = vpop.permute.xlu0 %5270
    %5274 = vset.pattern.permute.xlu0 0
    %5275 = vperm.xlu0 %5274, %v4509
    %v5276 = vpop.permute.xlu0 %5275
    %5279 = vset.pattern.permute.xlu0 0
    %5280 = vperm.xlu0 %5279, %v4510
    %v5281 = vpop.permute.xlu0 %5280
    %5284 = vset.pattern.permute.xlu0 0
    %5285 = vperm.xlu0 %5284, %v4511
    %v5286 = vpop.permute.xlu0 %5285
    %5289 = vset.pattern.permute.xlu0 0
    %5290 = vperm.xlu0 %5289, %v4512
    %v5291 = vpop.permute.xlu0 %5290
    %5294 = vset.pattern.permute.xlu0 0
    %5295 = vperm.xlu0 %5294, %v4513
    %v5296 = vpop.permute.xlu0 %5295
    %5299 = vset.pattern.permute.xlu0 0
    %5300 = vperm.xlu0 %5299, %v4514
    %v5301 = vpop.permute.xlu0 %5300
    %5304 = vset.pattern.permute.xlu0 0
    %5305 = vperm.xlu0 %5304, %v4515
    %v5306 = vpop.permute.xlu0 %5305
    %5309 = vset.pattern.permute.xlu0 0
    %5310 = vperm.xlu0 %5309, %v4516
    %v5311 = vpop.permute.xlu0 %5310
    %5314 = vset.pattern.permute.xlu0 0
    %5315 = vperm.xlu0 %5314, %v4517
    %v5316 = vpop.permute.xlu0 %5315
    %5319 = vset.pattern.permute.xlu0 0
    %5320 = vperm.xlu0 %5319, %v4518
    %v5321 = vpop.permute.xlu0 %5320
    %5324 = vset.pattern.permute.xlu0 0
    %5325 = vperm.xlu0 %5324, %v4519
    %v5326 = vpop.permute.xlu0 %5325
    %5329 = vset.pattern.permute.xlu0 0
    %5330 = vperm.xlu0 %5329, %v4520
    %v5331 = vpop.permute.xlu0 %5330
    %5334 = vset.pattern.permute.xlu0 0
    %5335 = vperm.xlu0 %5334, %v4521
    %v5336 = vpop.permute.xlu0 %5335
    %5339 = vset.pattern.permute.xlu0 0
    %5340 = vperm.xlu0 %5339, %v4522
    %v5341 = vpop.permute.xlu0 %5340
    %5344 = vset.pattern.permute.xlu0 0
    %5345 = vperm.xlu0 %5344, %v4523
    %v5346 = vpop.permute.xlu0 %5345
    %5349 = vset.pattern.permute.xlu0 0
    %5350 = vperm.xlu0 %5349, %v4524
    %v5351 = vpop.permute.xlu0 %5350
    %5354 = vset.pattern.permute.xlu0 0
    %5355 = vperm.xlu0 %5354, %v4525
    %v5356 = vpop.permute.xlu0 %5355
    %5359 = vset.pattern.permute.xlu0 0
    %5360 = vperm.xlu0 %5359, %v4526
    %v5361 = vpop.permute.xlu0 %5360
    %5364 = vset.pattern.permute.xlu0 0
    %5365 = vperm.xlu0 %5364, %v4527
    %v5366 = vpop.permute.xlu0 %5365
    %5369 = vset.pattern.permute.xlu0 0
    %5370 = vperm.xlu0 %5369, %v4528
    %v5371 = vpop.permute.xlu0 %5370
    %5374 = vset.pattern.permute.xlu0 0
    %5375 = vperm.xlu0 %5374, %v4529
    %v5376 = vpop.permute.xlu0 %5375
    %5379 = vset.pattern.permute.xlu0 0
    %5380 = vperm.xlu0 %5379, %v4530
    %v5381 = vpop.permute.xlu0 %5380
    %5384 = vset.pattern.permute.xlu0 0
    %5385 = vperm.xlu0 %5384, %v4531
    %v5386 = vpop.permute.xlu0 %5385
    %5389 = vset.pattern.permute.xlu0 0
    %5390 = vperm.xlu0 %5389, %v4532
    %v5391 = vpop.permute.xlu0 %5390
    %5394 = vset.pattern.permute.xlu0 0
    %5395 = vperm.xlu0 %5394, %v4533
    %v5396 = vpop.permute.xlu0 %5395
    %5399 = vset.pattern.permute.xlu0 0
    %5400 = vperm.xlu0 %5399, %v4534
    %v5401 = vpop.permute.xlu0 %5400
    %5404 = vset.pattern.permute.xlu0 0
    %5405 = vperm.xlu0 %5404, %v4535
    %v5406 = vpop.permute.xlu0 %5405
    %5409 = vset.pattern.permute.xlu0 0
    %5410 = vperm.xlu0 %5409, %v4536
    %v5411 = vpop.permute.xlu0 %5410
    %5414 = vset.pattern.permute.xlu0 0
    %5415 = vperm.xlu0 %5414, %v4537
    %v5416 = vpop.permute.xlu0 %5415
    %5419 = vset.pattern.permute.xlu0 0
    %5420 = vperm.xlu0 %5419, %v4538
    %v5421 = vpop.permute.xlu0 %5420
    %5424 = vset.pattern.permute.xlu0 0
    %5425 = vperm.xlu0 %5424, %v4539
    %v5426 = vpop.permute.xlu0 %5425
    %5429 = vset.pattern.permute.xlu0 0
    %5430 = vperm.xlu0 %5429, %v4540
    %v5431 = vpop.permute.xlu0 %5430
    %5434 = vset.pattern.permute.xlu0 0
    %5435 = vperm.xlu0 %5434, %v4541
    %v5436 = vpop.permute.xlu0 %5435
    %5439 = vset.pattern.permute.xlu0 0
    %5440 = vperm.xlu0 %5439, %v4542
    %v5441 = vpop.permute.xlu0 %5440
    %5444 = vset.pattern.permute.xlu0 0
    %5445 = vperm.xlu0 %5444, %v4543
    %v5446 = vpop.permute.xlu0 %5445
    %5449 = vset.pattern.permute.xlu0 0
    %5450 = vperm.xlu0 %5449, %v4544
    %v5451 = vpop.permute.xlu0 %5450
    %5454 = vset.pattern.permute.xlu0 0
    %5455 = vperm.xlu0 %5454, %v4545
    %v5456 = vpop.permute.xlu0 %5455
    %5459 = vset.pattern.permute.xlu0 0
    %5460 = vperm.xlu0 %5459, %v4546
    %v5461 = vpop.permute.xlu0 %5460
    %5464 = vset.pattern.permute.xlu0 0
    %5465 = vperm.xlu0 %5464, %v4547
    %v5466 = vpop.permute.xlu0 %5465
    %5469 = vset.pattern.permute.xlu0 0
    %5470 = vperm.xlu0 %5469, %v4548
    %v5471 = vpop.permute.xlu0 %5470
    %5474 = vset.pattern.permute.xlu0 0
    %5475 = vperm.xlu0 %5474, %v4549
    %v5476 = vpop.permute.xlu0 %5475
    %5479 = vset.pattern.permute.xlu0 0
    %5480 = vperm.xlu0 %5479, %v4550
    %v5481 = vpop.permute.xlu0 %5480
    %5484 = vset.pattern.permute.xlu0 0
    %5485 = vperm.xlu0 %5484, %v4551
    %v5486 = vpop.permute.xlu0 %5485
    %5489 = vset.pattern.permute.xlu0 0
    %5490 = vperm.xlu0 %5489, %v4552
    %v5491 = vpop.permute.xlu0 %5490
    %5494 = vset.pattern.permute.xlu0 0
    %5495 = vperm.xlu0 %5494, %v4553
    %v5496 = vpop.permute.xlu0 %5495
    %5499 = vset.pattern.permute.xlu0 0
    %5500 = vperm.xlu0 %5499, %v4554
    %v5501 = vpop.permute.xlu0 %5500
    %5504 = vset.pattern.permute.xlu0 0
    %5505 = vperm.xlu0 %5504, %v4555
    %v5506 = vpop.permute.xlu0 %5505
    %5509 = vset.pattern.permute.xlu0 0
    %5510 = vperm.xlu0 %5509, %v4556
    %v5511 = vpop.permute.xlu0 %5510
    %5514 = vset.pattern.permute.xlu0 0
    %5515 = vperm.xlu0 %5514, %v4557
    %v5516 = vpop.permute.xlu0 %5515
    %5519 = vset.pattern.permute.xlu0 0
    %5520 = vperm.xlu0 %5519, %v4558
    %v5521 = vpop.permute.xlu0 %5520
    %5524 = vset.pattern.permute.xlu0 0
    %5525 = vperm.xlu0 %5524, %v4559
    %v5526 = vpop.permute.xlu0 %5525
    %5529 = vset.pattern.permute.xlu0 0
    %5530 = vperm.xlu0 %5529, %v4560
    %v5531 = vpop.permute.xlu0 %5530
    %5534 = vset.pattern.permute.xlu0 0
    %5535 = vperm.xlu0 %5534, %v4561
    %v5536 = vpop.permute.xlu0 %5535
    %5539 = vset.pattern.permute.xlu0 0
    %5540 = vperm.xlu0 %5539, %v4562
    %v5541 = vpop.permute.xlu0 %5540
    %5544 = vset.pattern.permute.xlu0 0
    %5545 = vperm.xlu0 %5544, %v4563
    %v5546 = vpop.permute.xlu0 %5545
    %5549 = vset.pattern.permute.xlu0 0
    %5550 = vperm.xlu0 %5549, %v4564
    %v5551 = vpop.permute.xlu0 %5550
    %5554 = vset.pattern.permute.xlu0 0
    %5555 = vperm.xlu0 %5554, %v4565
    %v5556 = vpop.permute.xlu0 %5555
    %5559 = vset.pattern.permute.xlu0 0
    %5560 = vperm.xlu0 %5559, %v4566
    %v5561 = vpop.permute.xlu0 %5560
    %5564 = vset.pattern.permute.xlu0 0
    %5565 = vperm.xlu0 %5564, %v4567
    %v5566 = vpop.permute.xlu0 %5565
    %5569 = vset.pattern.permute.xlu0 0
    %5570 = vperm.xlu0 %5569, %v4568
    %v5571 = vpop.permute.xlu0 %5570
    %5574 = vset.pattern.permute.xlu0 0
    %5575 = vperm.xlu0 %5574, %v4569
    %v5576 = vpop.permute.xlu0 %5575
    %5579 = vset.pattern.permute.xlu0 0
    %5580 = vperm.xlu0 %5579, %v4570
    %v5581 = vpop.permute.xlu0 %5580
    %5584 = vset.pattern.permute.xlu0 0
    %5585 = vperm.xlu0 %5584, %v4571
    %v5586 = vpop.permute.xlu0 %5585
    %5589 = vset.pattern.permute.xlu0 0
    %5590 = vperm.xlu0 %5589, %v4572
    %v5591 = vpop.permute.xlu0 %5590
    %5594 = vset.pattern.permute.xlu0 0
    %5595 = vperm.xlu0 %5594, %v4573
    %v5596 = vpop.permute.xlu0 %5595
    %5599 = vset.pattern.permute.xlu0 0
    %5600 = vperm.xlu0 %5599, %v4574
    %v5601 = vpop.permute.xlu0 %5600
    %5604 = vset.pattern.permute.xlu0 0
    %5605 = vperm.xlu0 %5604, %v4575
    %v5606 = vpop.permute.xlu0 %5605
    %5609 = vset.pattern.permute.xlu0 0
    %5610 = vperm.xlu0 %5609, %v4576
    %v5611 = vpop.permute.xlu0 %5610
    %5614 = vset.pattern.permute.xlu0 0
    %5615 = vperm.xlu0 %5614, %v4577
    %v5616 = vpop.permute.xlu0 %5615
    %5619 = vset.pattern.permute.xlu0 0
    %5620 = vperm.xlu0 %5619, %v4578
    %v5621 = vpop.permute.xlu0 %5620
    %5624 = vset.pattern.permute.xlu0 0
    %5625 = vperm.xlu0 %5624, %v4579
    %v5626 = vpop.permute.xlu0 %5625
    %5629 = vset.pattern.permute.xlu0 0
    %5630 = vperm.xlu0 %5629, %v4580
    %v5631 = vpop.permute.xlu0 %5630
    %5634 = vset.pattern.permute.xlu0 0
    %5635 = vperm.xlu0 %5634, %v4581
    %v5636 = vpop.permute.xlu0 %5635
    %5639 = vset.pattern.permute.xlu0 0
    %5640 = vperm.xlu0 %5639, %v4582
    %v5641 = vpop.permute.xlu0 %5640
    %5644 = vset.pattern.permute.xlu0 0
    %5645 = vperm.xlu0 %5644, %v4583
    %v5646 = vpop.permute.xlu0 %5645
    %5649 = vset.pattern.permute.xlu0 0
    %5650 = vperm.xlu0 %5649, %v4584
    %v5651 = vpop.permute.xlu0 %5650
    %5654 = vset.pattern.permute.xlu0 0
    %5655 = vperm.xlu0 %5654, %v4585
    %v5656 = vpop.permute.xlu0 %5655
    %5659 = vset.pattern.permute.xlu0 0
    %5660 = vperm.xlu0 %5659, %v4586
    %v5661 = vpop.permute.xlu0 %5660
    %5664 = vset.pattern.permute.xlu0 0
    %5665 = vperm.xlu0 %5664, %v4587
    %v5666 = vpop.permute.xlu0 %5665
    %v5668 = vadd.f32 %v5038, %v5221
    %v5669 = vadd.f32 %v5039, %v5221
    %v5670 = vadd.f32 %v5040, %v5226
    %v5671 = vadd.f32 %v5041, %v5226
    %v5672 = vadd.f32 %v5042, %v5231
    %v5673 = vadd.f32 %v5043, %v5231
    %v5674 = vadd.f32 %v5044, %v5236
    %v5675 = vadd.f32 %v5045, %v5236
    %v5676 = vadd.f32 %v5046, %v5241
    %v5677 = vadd.f32 %v5047, %v5241
    %v5678 = vadd.f32 %v5048, %v5246
    %v5679 = vadd.f32 %v5049, %v5246
    %v5680 = vadd.f32 %v5050, %v5251
    %v5681 = vadd.f32 %v5051, %v5251
    %v5682 = vadd.f32 %v5052, %v5256
    %v5683 = vadd.f32 %v5053, %v5256
    %v5684 = vadd.f32 %v5054, %v5261
    %v5685 = vadd.f32 %v5055, %v5261
    %v5686 = vadd.f32 %v5056, %v5266
    %v5687 = vadd.f32 %v5057, %v5266
    %v5688 = vadd.f32 %v5058, %v5271
    %v5689 = vadd.f32 %v5059, %v5271
    %v5690 = vadd.f32 %v5060, %v5276
    %v5691 = vadd.f32 %v5061, %v5276
    %v5692 = vadd.f32 %v5062, %v5281
    %v5693 = vadd.f32 %v5063, %v5281
    %v5694 = vadd.f32 %v5064, %v5286
    %v5695 = vadd.f32 %v5065, %v5286
    %v5696 = vadd.f32 %v5066, %v5291
    %v5697 = vadd.f32 %v5067, %v5291
    %v5698 = vadd.f32 %v5068, %v5296
    %v5699 = vadd.f32 %v5069, %v5296
    %v5700 = vadd.f32 %v5070, %v5301
    %v5701 = vadd.f32 %v5071, %v5301
    %v5702 = vadd.f32 %v5072, %v5306
    %v5703 = vadd.f32 %v5073, %v5306
    %v5704 = vadd.f32 %v5074, %v5311
    %v5705 = vadd.f32 %v5075, %v5311
    %v5706 = vadd.f32 %v5076, %v5316
    %v5707 = vadd.f32 %v5077, %v5316
    %v5708 = vadd.f32 %v5078, %v5321
    %v5709 = vadd.f32 %v5079, %v5321
    %v5710 = vadd.f32 %v5080, %v5326
    %v5711 = vadd.f32 %v5081, %v5326
    %v5712 = vadd.f32 %v5082, %v5331
    %v5713 = vadd.f32 %v5083, %v5331
    %v5714 = vadd.f32 %v5084, %v5336
    %v5715 = vadd.f32 %v5085, %v5336
    %v5716 = vadd.f32 %v5086, %v5341
    %v5717 = vadd.f32 %v5087, %v5341
    %v5718 = vadd.f32 %v5088, %v5346
    %v5719 = vadd.f32 %v5089, %v5346
    %v5720 = vadd.f32 %v5090, %v5351
    %v5721 = vadd.f32 %v5091, %v5351
    %v5722 = vadd.f32 %v5092, %v5356
    %v5723 = vadd.f32 %v5093, %v5356
    %v5724 = vadd.f32 %v5094, %v5361
    %v5725 = vadd.f32 %v5095, %v5361
    %v5726 = vadd.f32 %v5096, %v5366
    %v5727 = vadd.f32 %v5097, %v5366
    %v5728 = vadd.f32 %v5098, %v5371
    %v5729 = vadd.f32 %v5099, %v5371
    %v5730 = vadd.f32 %v5100, %v5376
    %v5731 = vadd.f32 %v5101, %v5376
    %v5732 = vadd.f32 %v5102, %v5381
    %v5733 = vadd.f32 %v5103, %v5381
    %v5734 = vadd.f32 %v5104, %v5386
    %v5735 = vadd.f32 %v5105, %v5386
    %v5736 = vadd.f32 %v5106, %v5391
    %v5737 = vadd.f32 %v5107, %v5391
    %v5738 = vadd.f32 %v5108, %v5396
    %v5739 = vadd.f32 %v5109, %v5396
    %v5740 = vadd.f32 %v5110, %v5401
    %v5741 = vadd.f32 %v5111, %v5401
    %v5742 = vadd.f32 %v5112, %v5406
    %v5743 = vadd.f32 %v5113, %v5406
    %v5744 = vadd.f32 %v5114, %v5411
    %v5745 = vadd.f32 %v5115, %v5411
    %v5746 = vadd.f32 %v5116, %v5416
    %v5747 = vadd.f32 %v5117, %v5416
    %v5748 = vadd.f32 %v5118, %v5421
    %v5749 = vadd.f32 %v5119, %v5421
    %v5750 = vadd.f32 %v5120, %v5426
    %v5751 = vadd.f32 %v5121, %v5426
    %v5752 = vadd.f32 %v5122, %v5431
    %v5753 = vadd.f32 %v5123, %v5431
    %v5754 = vadd.f32 %v5124, %v5436
    %v5755 = vadd.f32 %v5125, %v5436
    %v5756 = vadd.f32 %v5126, %v5441
    %v5757 = vadd.f32 %v5127, %v5441
    %v5758 = vadd.f32 %v5128, %v5446
    %v5759 = vadd.f32 %v5129, %v5446
    %v5760 = vadd.f32 %v5130, %v5451
    %v5761 = vadd.f32 %v5131, %v5451
    %v5762 = vadd.f32 %v5132, %v5456
    %v5763 = vadd.f32 %v5133, %v5456
    %v5764 = vadd.f32 %v5134, %v5461
    %v5765 = vadd.f32 %v5135, %v5461
    %v5766 = vadd.f32 %v5136, %v5466
    %v5767 = vadd.f32 %v5137, %v5466
    %v5768 = vadd.f32 %v5138, %v5471
    %v5769 = vadd.f32 %v5139, %v5471
    %v5770 = vadd.f32 %v5140, %v5476
    %v5771 = vadd.f32 %v5141, %v5476
    %v5772 = vadd.f32 %v5142, %v5481
    %v5773 = vadd.f32 %v5143, %v5481
    %v5774 = vadd.f32 %v5144, %v5486
    %v5775 = vadd.f32 %v5145, %v5486
    %v5776 = vadd.f32 %v5146, %v5491
    %v5777 = vadd.f32 %v5147, %v5491
    %v5778 = vadd.f32 %v5148, %v5496
    %v5779 = vadd.f32 %v5149, %v5496
    %v5780 = vadd.f32 %v5150, %v5501
    %v5781 = vadd.f32 %v5151, %v5501
    %v5782 = vadd.f32 %v5152, %v5506
    %v5783 = vadd.f32 %v5153, %v5506
    %v5784 = vadd.f32 %v5154, %v5511
    %v5785 = vadd.f32 %v5155, %v5511
    %v5786 = vadd.f32 %v5156, %v5516
    %v5787 = vadd.f32 %v5157, %v5516
    %v5788 = vadd.f32 %v5158, %v5521
    %v5789 = vadd.f32 %v5159, %v5521
    %v5790 = vadd.f32 %v5160, %v5526
    %v5791 = vadd.f32 %v5161, %v5526
    %v5792 = vadd.f32 %v5162, %v5531
    %v5793 = vadd.f32 %v5163, %v5531
    %v5794 = vadd.f32 %v5164, %v5536
    %v5795 = vadd.f32 %v5165, %v5536
    %v5796 = vadd.f32 %v5166, %v5541
    %v5797 = vadd.f32 %v5167, %v5541
    %v5798 = vadd.f32 %v5168, %v5546
    %v5799 = vadd.f32 %v5169, %v5546
    %v5800 = vadd.f32 %v5170, %v5551
    %v5801 = vadd.f32 %v5171, %v5551
    %v5802 = vadd.f32 %v5172, %v5556
    %v5803 = vadd.f32 %v5173, %v5556
    %v5804 = vadd.f32 %v5174, %v5561
    %v5805 = vadd.f32 %v5175, %v5561
    %v5806 = vadd.f32 %v5176, %v5566
    %v5807 = vadd.f32 %v5177, %v5566
    %v5808 = vadd.f32 %v5178, %v5571
    %v5809 = vadd.f32 %v5179, %v5571
    %v5810 = vadd.f32 %v5180, %v5576
    %v5811 = vadd.f32 %v5181, %v5576
    %v5812 = vadd.f32 %v5182, %v5581
    %v5813 = vadd.f32 %v5183, %v5581
    %v5814 = vadd.f32 %v5184, %v5586
    %v5815 = vadd.f32 %v5185, %v5586
    %v5816 = vadd.f32 %v5186, %v5591
    %v5817 = vadd.f32 %v5187, %v5591
    %v5818 = vadd.f32 %v5188, %v5596
    %v5819 = vadd.f32 %v5189, %v5596
    %v5820 = vadd.f32 %v5190, %v5601
    %v5821 = vadd.f32 %v5191, %v5601
    %v5822 = vadd.f32 %v5192, %v5606
    %v5823 = vadd.f32 %v5193, %v5606
    %v5824 = vadd.f32 %v5194, %v5611
    %v5825 = vadd.f32 %v5195, %v5611
    %v5826 = vadd.f32 %v5196, %v5616
    %v5827 = vadd.f32 %v5197, %v5616
    %v5828 = vadd.f32 %v5198, %v5621
    %v5829 = vadd.f32 %v5199, %v5621
    %v5830 = vadd.f32 %v5200, %v5626
    %v5831 = vadd.f32 %v5201, %v5626
    %v5832 = vadd.f32 %v5202, %v5631
    %v5833 = vadd.f32 %v5203, %v5631
    %v5834 = vadd.f32 %v5204, %v5636
    %v5835 = vadd.f32 %v5205, %v5636
    %v5836 = vadd.f32 %v5206, %v5641
    %v5837 = vadd.f32 %v5207, %v5641
    %v5838 = vadd.f32 %v5208, %v5646
    %v5839 = vadd.f32 %v5209, %v5646
    %v5840 = vadd.f32 %v5210, %v5651
    %v5841 = vadd.f32 %v5211, %v5651
    %v5842 = vadd.f32 %v5212, %v5656
    %v5843 = vadd.f32 %v5213, %v5656
    %v5844 = vadd.f32 %v5214, %v5661
    %v5845 = vadd.f32 %v5215, %v5661
    %v5846 = vadd.f32 %v5216, %v5666
    %v5847 = vadd.f32 %v5217, %v5666
    %5848 = vst [vmem:[%s4] sm:$0xff] %v5668
    %5849 = vst.msk [vmem:[%s4 + $0x8] sm:$0xff] %vm2697, %v5669
    %5850 = vst [vmem:[%s4 + $0x10] sm:$0xff] %v5670
    %5851 = vst.msk [vmem:[%s4 + $0x18] sm:$0xff] %vm2697, %v5671
    %5852 = vst [vmem:[%s4 + $0x20] sm:$0xff] %v5672
    %5853 = vst.msk [vmem:[%s4 + $0x28] sm:$0xff] %vm2697, %v5673
    %5854 = vst [vmem:[%s4 + $0x30] sm:$0xff] %v5674
    %5855 = vst.msk [vmem:[%s4 + $0x38] sm:$0xff] %vm2697, %v5675
    %5856 = vst [vmem:[%s4 + $0x40] sm:$0xff] %v5676
    %5857 = vst.msk [vmem:[%s4 + $0x48] sm:$0xff] %vm2697, %v5677
    %5858 = vst [vmem:[%s4 + $0x50] sm:$0xff] %v5678
    %5859 = vst.msk [vmem:[%s4 + $0x58] sm:$0xff] %vm2697, %v5679
    %5860 = vst [vmem:[%s4 + $0x60] sm:$0xff] %v5680
    %5861 = vst.msk [vmem:[%s4 + $0x68] sm:$0xff] %vm2697, %v5681
    %5862 = vst [vmem:[%s4 + $0x70] sm:$0xff] %v5682
    %5863 = vst.msk [vmem:[%s4 + $0x78] sm:$0xff] %vm2697, %v5683
    %5864 = vst [vmem:[%s4 + $0x80] sm:$0xff] %v5684
    %5865 = vst.msk [vmem:[%s4 + $0x88] sm:$0xff] %vm2697, %v5685
    %5866 = vst [vmem:[%s4 + $0x90] sm:$0xff] %v5686
    %5867 = vst.msk [vmem:[%s4 + $0x98] sm:$0xff] %vm2697, %v5687
    %5868 = vst [vmem:[%s4 + $0xa0] sm:$0xff] %v5688
    %5869 = vst.msk [vmem:[%s4 + $0xa8] sm:$0xff] %vm2697, %v5689
    %5870 = vst [vmem:[%s4 + $0xb0] sm:$0xff] %v5690
    %5871 = vst.msk [vmem:[%s4 + $0xb8] sm:$0xff] %vm2697, %v5691
    %5872 = vst [vmem:[%s4 + $0xc0] sm:$0xff] %v5692
    %5873 = vst.msk [vmem:[%s4 + $0xc8] sm:$0xff] %vm2697, %v5693
    %5874 = vst [vmem:[%s4 + $0xd0] sm:$0xff] %v5694
    %5875 = vst.msk [vmem:[%s4 + $0xd8] sm:$0xff] %vm2697, %v5695
    %5876 = vst [vmem:[%s4 + $0xe0] sm:$0xff] %v5696
    %5877 = vst.msk [vmem:[%s4 + $0xe8] sm:$0xff] %vm2697, %v5697
    %5878 = vst [vmem:[%s4 + $0xf0] sm:$0xff] %v5698
    %5879 = vst.msk [vmem:[%s4 + $0xf8] sm:$0xff] %vm2697, %v5699
    %5880 = vst [vmem:[%s4 + $0x100] sm:$0xff] %v5700
    %5881 = vst.msk [vmem:[%s4 + $0x108] sm:$0xff] %vm2697, %v5701
    %5882 = vst [vmem:[%s4 + $0x110] sm:$0xff] %v5702
    %5883 = vst.msk [vmem:[%s4 + $0x118] sm:$0xff] %vm2697, %v5703
    %5884 = vst [vmem:[%s4 + $0x120] sm:$0xff] %v5704
    %5885 = vst.msk [vmem:[%s4 + $0x128] sm:$0xff] %vm2697, %v5705
    %5886 = vst [vmem:[%s4 + $0x130] sm:$0xff] %v5706
    %5887 = vst.msk [vmem:[%s4 + $0x138] sm:$0xff] %vm2697, %v5707
    %5888 = vst [vmem:[%s4 + $0x140] sm:$0xff] %v5708
    %5889 = vst.msk [vmem:[%s4 + $0x148] sm:$0xff] %vm2697, %v5709
    %5890 = vst [vmem:[%s4 + $0x150] sm:$0xff] %v5710
    %5891 = vst.msk [vmem:[%s4 + $0x158] sm:$0xff] %vm2697, %v5711
    %5892 = vst [vmem:[%s4 + $0x160] sm:$0xff] %v5712
    %5893 = vst.msk [vmem:[%s4 + $0x168] sm:$0xff] %vm2697, %v5713
    %5894 = vst [vmem:[%s4 + $0x170] sm:$0xff] %v5714
    %5895 = vst.msk [vmem:[%s4 + $0x178] sm:$0xff] %vm2697, %v5715
    %5896 = vst [vmem:[%s4 + $0x180] sm:$0xff] %v5716
    %5897 = vst.msk [vmem:[%s4 + $0x188] sm:$0xff] %vm2697, %v5717
    %5898 = vst [vmem:[%s4 + $0x190] sm:$0xff] %v5718
    %5899 = vst.msk [vmem:[%s4 + $0x198] sm:$0xff] %vm2697, %v5719
    %5900 = vst [vmem:[%s4 + $0x1a0] sm:$0xff] %v5720
    %5901 = vst.msk [vmem:[%s4 + $0x1a8] sm:$0xff] %vm2697, %v5721
    %5902 = vst [vmem:[%s4 + $0x1b0] sm:$0xff] %v5722
    %5903 = vst.msk [vmem:[%s4 + $0x1b8] sm:$0xff] %vm2697, %v5723
    %5904 = vst [vmem:[%s4 + $0x1c0] sm:$0xff] %v5724
    %5905 = vst.msk [vmem:[%s4 + $0x1c8] sm:$0xff] %vm2697, %v5725
    %5906 = vst [vmem:[%s4 + $0x1d0] sm:$0xff] %v5726
    %5907 = vst.msk [vmem:[%s4 + $0x1d8] sm:$0xff] %vm2697, %v5727
    %5908 = vst [vmem:[%s4 + $0x1e0] sm:$0xff] %v5728
    %5909 = vst.msk [vmem:[%s4 + $0x1e8] sm:$0xff] %vm2697, %v5729
    %5910 = vst [vmem:[%s4 + $0x1f0] sm:$0xff] %v5730
    %5911 = vst.msk [vmem:[%s4 + $0x1f8] sm:$0xff] %vm2697, %v5731
    %5912 = vst [vmem:[%s4 + $0x200] sm:$0xff] %v5732
    %5913 = vst.msk [vmem:[%s4 + $0x208] sm:$0xff] %vm2697, %v5733
    %5914 = vst [vmem:[%s4 + $0x210] sm:$0xff] %v5734
    %5915 = vst.msk [vmem:[%s4 + $0x218] sm:$0xff] %vm2697, %v5735
    %5916 = vst [vmem:[%s4 + $0x220] sm:$0xff] %v5736
    %5917 = vst.msk [vmem:[%s4 + $0x228] sm:$0xff] %vm2697, %v5737
    %5918 = vst [vmem:[%s4 + $0x230] sm:$0xff] %v5738
    %5919 = vst.msk [vmem:[%s4 + $0x238] sm:$0xff] %vm2697, %v5739
    %5920 = vst [vmem:[%s4 + $0x240] sm:$0xff] %v5740
    %5921 = vst.msk [vmem:[%s4 + $0x248] sm:$0xff] %vm2697, %v5741
    %5922 = vst [vmem:[%s4 + $0x250] sm:$0xff] %v5742
    %5923 = vst.msk [vmem:[%s4 + $0x258] sm:$0xff] %vm2697, %v5743
    %5924 = vst [vmem:[%s4 + $0x260] sm:$0xff] %v5744
    %5925 = vst.msk [vmem:[%s4 + $0x268] sm:$0xff] %vm2697, %v5745
    %5926 = vst [vmem:[%s4 + $0x270] sm:$0xff] %v5746
    %5927 = vst.msk [vmem:[%s4 + $0x278] sm:$0xff] %vm2697, %v5747
    %5928 = vst [vmem:[%s4 + $0x280] sm:$0xff] %v5748
    %5929 = vst.msk [vmem:[%s4 + $0x288] sm:$0xff] %vm2697, %v5749
    %5930 = vst [vmem:[%s4 + $0x290] sm:$0xff] %v5750
    %5931 = vst.msk [vmem:[%s4 + $0x298] sm:$0xff] %vm2697, %v5751
    %5932 = vst [vmem:[%s4 + $0x2a0] sm:$0xff] %v5752
    %5933 = vst.msk [vmem:[%s4 + $0x2a8] sm:$0xff] %vm2697, %v5753
    %5934 = vst [vmem:[%s4 + $0x2b0] sm:$0xff] %v5754
    %5935 = vst.msk [vmem:[%s4 + $0x2b8] sm:$0xff] %vm2697, %v5755
    %5936 = vst [vmem:[%s4 + $0x2c0] sm:$0xff] %v5756
    %5937 = vst.msk [vmem:[%s4 + $0x2c8] sm:$0xff] %vm2697, %v5757
    %5938 = vst [vmem:[%s4 + $0x2d0] sm:$0xff] %v5758
    %5939 = vst.msk [vmem:[%s4 + $0x2d8] sm:$0xff] %vm2697, %v5759
    %5940 = vst [vmem:[%s4 + $0x2e0] sm:$0xff] %v5760
    %5941 = vst.msk [vmem:[%s4 + $0x2e8] sm:$0xff] %vm2697, %v5761
    %5942 = vst [vmem:[%s4 + $0x2f0] sm:$0xff] %v5762
    %5943 = vst.msk [vmem:[%s4 + $0x2f8] sm:$0xff] %vm2697, %v5763
    %5944 = vst [vmem:[%s4 + $0x300] sm:$0xff] %v5764
    %5945 = vst.msk [vmem:[%s4 + $0x308] sm:$0xff] %vm2697, %v5765
    %5946 = vst [vmem:[%s4 + $0x310] sm:$0xff] %v5766
    %5947 = vst.msk [vmem:[%s4 + $0x318] sm:$0xff] %vm2697, %v5767
    %5948 = vst [vmem:[%s4 + $0x320] sm:$0xff] %v5768
    %5949 = vst.msk [vmem:[%s4 + $0x328] sm:$0xff] %vm2697, %v5769
    %5950 = vst [vmem:[%s4 + $0x330] sm:$0xff] %v5770
    %5951 = vst.msk [vmem:[%s4 + $0x338] sm:$0xff] %vm2697, %v5771
    %5952 = vst [vmem:[%s4 + $0x340] sm:$0xff] %v5772
    %5953 = vst.msk [vmem:[%s4 + $0x348] sm:$0xff] %vm2697, %v5773
    %5954 = vst [vmem:[%s4 + $0x350] sm:$0xff] %v5774
    %5955 = vst.msk [vmem:[%s4 + $0x358] sm:$0xff] %vm2697, %v5775
    %5956 = vst [vmem:[%s4 + $0x360] sm:$0xff] %v5776
    %5957 = vst.msk [vmem:[%s4 + $0x368] sm:$0xff] %vm2697, %v5777
    %5958 = vst [vmem:[%s4 + $0x370] sm:$0xff] %v5778
    %5959 = vst.msk [vmem:[%s4 + $0x378] sm:$0xff] %vm2697, %v5779
    %5960 = vst [vmem:[%s4 + $0x380] sm:$0xff] %v5780
    %5961 = vst.msk [vmem:[%s4 + $0x388] sm:$0xff] %vm2697, %v5781
    %5962 = vst [vmem:[%s4 + $0x390] sm:$0xff] %v5782
    %5963 = vst.msk [vmem:[%s4 + $0x398] sm:$0xff] %vm2697, %v5783
    %5964 = vst [vmem:[%s4 + $0x3a0] sm:$0xff] %v5784
    %5965 = vst.msk [vmem:[%s4 + $0x3a8] sm:$0xff] %vm2697, %v5785
    %5966 = vst [vmem:[%s4 + $0x3b0] sm:$0xff] %v5786
    %5967 = vst.msk [vmem:[%s4 + $0x3b8] sm:$0xff] %vm2697, %v5787
    %5968 = vst [vmem:[%s4 + $0x3c0] sm:$0xff] %v5788
    %5969 = vst.msk [vmem:[%s4 + $0x3c8] sm:$0xff] %vm2697, %v5789
    %5970 = vst [vmem:[%s4 + $0x3d0] sm:$0xff] %v5790
    %5971 = vst.msk [vmem:[%s4 + $0x3d8] sm:$0xff] %vm2697, %v5791
    %5972 = vst [vmem:[%s4 + $0x3e0] sm:$0xff] %v5792
    %5973 = vst.msk [vmem:[%s4 + $0x3e8] sm:$0xff] %vm2697, %v5793
    %5974 = vst [vmem:[%s4 + $0x3f0] sm:$0xff] %v5794
    %5975 = vst.msk [vmem:[%s4 + $0x3f8] sm:$0xff] %vm2697, %v5795
    %5976 = vst [vmem:[%s4 + $0x400] sm:$0xff] %v5796
    %5977 = vst.msk [vmem:[%s4 + $0x408] sm:$0xff] %vm2697, %v5797
    %5978 = vst [vmem:[%s4 + $0x410] sm:$0xff] %v5798
    %5979 = vst.msk [vmem:[%s4 + $0x418] sm:$0xff] %vm2697, %v5799
    %5980 = vst [vmem:[%s4 + $0x420] sm:$0xff] %v5800
    %5981 = vst.msk [vmem:[%s4 + $0x428] sm:$0xff] %vm2697, %v5801
    %5982 = vst [vmem:[%s4 + $0x430] sm:$0xff] %v5802
    %5983 = vst.msk [vmem:[%s4 + $0x438] sm:$0xff] %vm2697, %v5803
    %5984 = vst [vmem:[%s4 + $0x440] sm:$0xff] %v5804
    %5985 = vst.msk [vmem:[%s4 + $0x448] sm:$0xff] %vm2697, %v5805
    %5986 = vst [vmem:[%s4 + $0x450] sm:$0xff] %v5806
    %5987 = vst.msk [vmem:[%s4 + $0x458] sm:$0xff] %vm2697, %v5807
    %5988 = vst [vmem:[%s4 + $0x460] sm:$0xff] %v5808
    %5989 = vst.msk [vmem:[%s4 + $0x468] sm:$0xff] %vm2697, %v5809
    %5990 = vst [vmem:[%s4 + $0x470] sm:$0xff] %v5810
    %5991 = vst.msk [vmem:[%s4 + $0x478] sm:$0xff] %vm2697, %v5811
    %5992 = vst [vmem:[%s4 + $0x480] sm:$0xff] %v5812
    %5993 = vst.msk [vmem:[%s4 + $0x488] sm:$0xff] %vm2697, %v5813
    %5994 = vst [vmem:[%s4 + $0x490] sm:$0xff] %v5814
    %5995 = vst.msk [vmem:[%s4 + $0x498] sm:$0xff] %vm2697, %v5815
    %5996 = vst [vmem:[%s4 + $0x4a0] sm:$0xff] %v5816
    %5997 = vst.msk [vmem:[%s4 + $0x4a8] sm:$0xff] %vm2697, %v5817
    %5998 = vst [vmem:[%s4 + $0x4b0] sm:$0xff] %v5818
    %5999 = vst.msk [vmem:[%s4 + $0x4b8] sm:$0xff] %vm2697, %v5819
    %6000 = vst [vmem:[%s4 + $0x4c0] sm:$0xff] %v5820
    %6001 = vst.msk [vmem:[%s4 + $0x4c8] sm:$0xff] %vm2697, %v5821
    %6002 = vst [vmem:[%s4 + $0x4d0] sm:$0xff] %v5822
    %6003 = vst.msk [vmem:[%s4 + $0x4d8] sm:$0xff] %vm2697, %v5823
    %6004 = vst [vmem:[%s4 + $0x4e0] sm:$0xff] %v5824
    %6005 = vst.msk [vmem:[%s4 + $0x4e8] sm:$0xff] %vm2697, %v5825
    %6006 = vst [vmem:[%s4 + $0x4f0] sm:$0xff] %v5826
    %6007 = vst.msk [vmem:[%s4 + $0x4f8] sm:$0xff] %vm2697, %v5827
    %6008 = vst [vmem:[%s4 + $0x500] sm:$0xff] %v5828
    %6009 = vst.msk [vmem:[%s4 + $0x508] sm:$0xff] %vm2697, %v5829
    %6010 = vst [vmem:[%s4 + $0x510] sm:$0xff] %v5830
    %6011 = vst.msk [vmem:[%s4 + $0x518] sm:$0xff] %vm2697, %v5831
    %6012 = vst [vmem:[%s4 + $0x520] sm:$0xff] %v5832
    %6013 = vst.msk [vmem:[%s4 + $0x528] sm:$0xff] %vm2697, %v5833
    %6014 = vst [vmem:[%s4 + $0x530] sm:$0xff] %v5834
    %6015 = vst.msk [vmem:[%s4 + $0x538] sm:$0xff] %vm2697, %v5835
    %6016 = vst [vmem:[%s4 + $0x540] sm:$0xff] %v5836
    %6017 = vst.msk [vmem:[%s4 + $0x548] sm:$0xff] %vm2697, %v5837
    %6018 = vst [vmem:[%s4 + $0x550] sm:$0xff] %v5838
    %6019 = vst.msk [vmem:[%s4 + $0x558] sm:$0xff] %vm2697, %v5839
    %6020 = vst [vmem:[%s4 + $0x560] sm:$0xff] %v5840
    %6021 = vst.msk [vmem:[%s4 + $0x568] sm:$0xff] %vm2697, %v5841
    %6022 = vst [vmem:[%s4 + $0x570] sm:$0xff] %v5842
    %6023 = vst.msk [vmem:[%s4 + $0x578] sm:$0xff] %vm2697, %v5843
    %6024 = vst [vmem:[%s4 + $0x580] sm:$0xff] %v5844
    %6025 = vst.msk [vmem:[%s4 + $0x588] sm:$0xff] %vm2697, %v5845
    %6026 = vst [vmem:[%s4 + $0x590] sm:$0xff] %v5846
    %6027 = vst.msk [vmem:[%s4 + $0x598] sm:$0xff] %vm2697, %v5847
    // Predicated region
    $region22: #{tpu_custom_call.1} parent=1 // pred_check
      _
    $region23: #{tpu_custom_call.1} parent=1 // pred_check_branch
      %6029 = sbr.rel (0) target = $region25
    $region24: #{tpu_custom_call.1} parent=1 // pred_region
      _
    $region25: #{tpu_custom_call.1} parent=1 // pred_fallthru
      _
    // Predicated region
    $region26: #{tpu_custom_call.1} parent=1 // pred_check
      _
    $region27: #{tpu_custom_call.1} parent=1 // pred_check_branch
      %6031 = sbr.rel (0) target = $region29
    $region28: #{tpu_custom_call.1} parent=1 // pred_region
      _
    $region29: #{tpu_custom_call.1} parent=1 // pred_fallthru
      _
    %6032 = vsyncpa [#allocation3], 1

</llo_original>
